<compile_context>
chip_gen: v7x
topology: tpu7x:2x2x1
jax: 0.10.0
libtpu: 0.0.40
codegen_flags: <defaults>
</compile_context>

<pallas_src>
import functools
import math

import jax
import jax.numpy as jnp
from jax.experimental import pallas as pl
from jax.experimental.pallas import tpu as pltpu


# ---------------------------------------------------------------------------
# Kernels
# ---------------------------------------------------------------------------
def _rope_kernel_aligned(x_ref, scale_ref, o_ref, *, half):
    # x_ref: (ts, D) tile with D % 128 == 0; scale_ref: (ts, D) float32.
    x = x_ref[...]
    # shift == D/2 of the rolled axis, so rotation direction is irrelevant.
    rolled = pltpu.roll(x, shift=half, axis=x.ndim - 1)  # XLU lane rotation
    o_ref[...] = (rolled * scale_ref[...]).astype(o_ref.dtype)


def _rope_kernel_folded(x_ref, scale_lo_ref, scale_hi_ref, o_ref, *, half):
    # x_ref: (ts, k*D) tile; each row holds k consecutive sequence positions.
    # For lane j = m*D + d:
    #   d <  D/2 -> out[j] = x[j + D/2] * scale[j]   (scale_lo nonzero there)
    #   d >= D/2 -> out[j] = x[j - D/2] * scale[j]   (scale_hi nonzero there)
    # jnp.roll (well-defined direction) is used because the shift here is NOT
    # half of the rolled axis.  TODO(synk): switch to pltpu.roll once its
    # rotation direction is pinned down, to guarantee the XLU slot is used.
    x = x_ref[...]
    left = jnp.roll(x, -half, axis=-1)    # brings element j + half to lane j
    right = jnp.roll(x, half, axis=-1)    # brings element j - half to lane j
    o_ref[...] = (left * scale_lo_ref[...] + right * scale_hi_ref[...]).astype(o_ref.dtype)


# ---------------------------------------------------------------------------
# Wrapper
# ---------------------------------------------------------------------------
def _build_scale(S, D, base):
    """float32 (S, D) table: sign * (cos(emb) - sin(emb)), sign=[+1]*D/2 ++ [-1]*D/2."""
    half = D // 2
    inv_freq = 1.0 / (base ** (jnp.arange(0, D, 2, dtype=jnp.float32) / D))   # (D/2,)
    t = jnp.arange(S, dtype=jnp.float32)                                      # (S,)
    freqs = jnp.einsum("i,j->ij", t, inv_freq)                                # (S, D/2)
    emb = jnp.concatenate([freqs, freqs], axis=-1)                            # (S, D)
    sign = jnp.concatenate([jnp.ones((half,), jnp.float32),
                            -jnp.ones((D - half,), jnp.float32)])             # (D,)
    return sign[None, :] * (jnp.cos(emb) - jnp.sin(emb))                      # f32


def _choose_tile_rows(rows, lanes, dtype, budget_bytes):
    """Rows per tile: ~budget_bytes per x block (default 2 MiB), sublane-aligned."""
    itemsize = jnp.dtype(dtype).itemsize
    sublane = max(8, 32 // itemsize)          # 8 rows (f32) / 16 rows (bf16) per vreg
    budget_rows = max(sublane, budget_bytes // max(1, lanes * itemsize))
    ts = min(rows, budget_rows)
    if ts < rows:
        ts = max(sublane, (ts // sublane) * sublane)
    return ts


def rope_pallas(x, base=10000.0, *, tile_budget_bytes=2 << 20):
    """Apply the RoPE module's forward to x of shape (B, S, D)."""
    B, S, D = x.shape
    if D % 2 != 0:
        raise ValueError("RoPE rotate_half requires an even last dimension.")
    half = D // 2

    if D % 128 == 0:
        # Lane-aligned head dim: single-roll kernel, one scale table.
        rows, lanes, s_pad = S, D, S
        x_in = x
        scale = _build_scale(S, D, base)                               # (S, D) f32
        operands = (x_in, scale)
        n_scale = 1
        kern = functools.partial(_rope_kernel_aligned, half=half)
    else:
        # Lane-dense layout: fold k consecutive positions into the lane axis.
        k = 128 // math.gcd(D, 128)
        s_pad = ((S + k - 1) // k) * k
        x_in = x if s_pad == S else jnp.pad(x, ((0, 0), (0, s_pad - S), (0, 0)))
        rows, lanes = s_pad // k, k * D
        x_in = x_in.reshape(B, rows, lanes)
        scale = _build_scale(s_pad, D, base)                           # (s_pad, D) f32
        lo_mask = (jnp.arange(D) < half)[None, :]
        scale_lo = jnp.where(lo_mask, scale, 0.0).reshape(rows, lanes)
        scale_hi = jnp.where(lo_mask, 0.0, scale).reshape(rows, lanes)
        operands = (x_in, scale_lo, scale_hi)
        n_scale = 2
        kern = functools.partial(_rope_kernel_folded, half=half)

    ts = _choose_tile_rows(rows, lanes, x.dtype, tile_budget_bytes)
    # Batch innermost: the scale block index (s, 0) is constant across the inner
    # loop, so each scale tile is DMA'd from HBM exactly once and stays resident.
    grid = (pl.cdiv(rows, ts), B)

    data_spec = pl.BlockSpec((pl.Squeezed(), ts, lanes), lambda s, b: (b, s, 0))
    scale_spec = pl.BlockSpec((ts, lanes), lambda s, b: (s, 0))        # independent of b

    out = pl.pallas_call(
        kern,
        out_shape=jax.ShapeDtypeStruct((B, rows, lanes), x.dtype),
        grid=grid,
        in_specs=[data_spec] + [scale_spec] * n_scale,
        out_specs=data_spec,
        compiler_params=pltpu.CompilerParams(
            # Both axes independent -> megacore/2-TC sharding on v7x; inert elsewhere.
            dimension_semantics=("parallel", "parallel"),
            # Lift v5e's 16 MiB default scoped VMEM; safely below v7x's 64 MiB physical.
            vmem_limit_bytes=32 * 1024 * 1024,
        ),
    )(*operands)

    out = out.reshape(B, s_pad, D)
    if s_pad != S:
        out = out[:, :S]
    return out


# ---------------------------------------------------------------------------
# Pure-JAX reference (transliteration of the PyTorch forward, two-term form)
# ---------------------------------------------------------------------------
def rope_reference(x, base=10000.0):
    B, S, D = x.shape
    inv_freq = 1.0 / (base ** (jnp.arange(0, D, 2, dtype=jnp.float32) / D))
    t = jnp.arange(S, dtype=jnp.float32)
    freqs = jnp.einsum("i,j->ij", t, inv_freq)
    emb = jnp.concatenate([freqs, freqs], axis=-1)       # (S, D)
    cos_emb, sin_emb = jnp.cos(emb), jnp.sin(emb)        # (S, D) f32
    half = D // 2
    x1, x2 = x[..., :half], x[..., half:]
    rot = jnp.concatenate([x2, -x1], axis=-1)            # rotate_half
    rot_rev = jnp.concatenate([-x2, x1], axis=-1)        # rotate_half reverse
    return (rot * cos_emb[None] + rot_rev * sin_emb[None]).astype(x.dtype)


if __name__ == "__main__":
    key = jax.random.PRNGKey(0)
    configs = [
        # (B, S, D, dtype, tile_budget_bytes, tol)
        (2, 4096, 128, jnp.float32, 2 << 20, 1e-5),    # lane-aligned, single seq tile
        (2, 1024, 128, jnp.float32, 128 << 10, 1e-5),  # lane-aligned, multi-tile grid (4 x 2)
        (2, 8, 32, jnp.float32, 2 << 20, 1e-5),        # D<128: folded x4 into lanes
        (2, 96, 48, jnp.float32, 2 << 20, 1e-5),       # D<128 non-pow2: folded x8
        (2, 250, 32, jnp.bfloat16, 2 << 20, 3e-2),     # bf16, ragged S padded to 252, folded x4
    ]
    for idx, (B, S, D, dtype, budget, tol) in enumerate(configs):
        x = jax.random.normal(jax.random.fold_in(key, idx), (B, S, D), dtype=dtype)
        out = rope_pallas(x, tile_budget_bytes=budget)
        jax.block_until_ready(out)
        ref = rope_reference(x)
        assert out.shape == (B, S, D) and out.dtype == x.dtype
        ok = jnp.allclose(out.astype(jnp.float32), ref.astype(jnp.float32),
                          atol=tol, rtol=tol)
        assert ok, f"mismatch for {(B, S, D, dtype)}"
    print("KERNEL_OK")
</pallas_src>

<mosaic_0001>
module attributes {stable_mosaic.version = 11 : i64} {
  func.func @_rope_kernel_aligned(%arg0: i32, %arg1: i32, %arg2: memref<1x4096x128xf32, #tpu.memory_space<vmem>>, %arg3: memref<4096x128xf32, #tpu.memory_space<vmem>>, %arg4: memref<1x4096x128xf32, #tpu.memory_space<vmem>>) attributes {dimension_semantics = [#tpu.dimension_semantics<parallel>, #tpu.dimension_semantics<parallel>], iteration_bounds = array<i64: 1, 2>, scalar_prefetch = 0 : i64, scratch_operands = 0 : i64, tpu.core_type = #tpu.core_type<tc>, window_params = [{transform_indices = @transform_0, window_bounds = array<i64: 1, 4096, 128>}, {transform_indices = @transform_1, window_bounds = array<i64: 4096, 128>}, {transform_indices = @transform_2, window_bounds = array<i64: 1, 4096, 128>}]} {
    %c0 = arith.constant 0 : index
    %c0_0 = arith.constant 0 : index
    %c0_1 = arith.constant 0 : index
    %0 = vector.load %arg2[%c0, %c0_0, %c0_1] : memref<1x4096x128xf32, #tpu.memory_space<vmem>>, vector<1x4096x128xf32>
    %1 = vector.shape_cast %0 : vector<1x4096x128xf32> to vector<4096x128xf32>
    %c64_i32 = arith.constant 64 : i32
    %2 = tpu.dynamic_rotate %1 by %c64_i32 dim 1 : vector<4096x128xf32>, i32 -> vector<4096x128xf32>
    %c0_2 = arith.constant 0 : index
    %c0_3 = arith.constant 0 : index
    %3 = vector.load %arg3[%c0_2, %c0_3] : memref<4096x128xf32, #tpu.memory_space<vmem>>, vector<4096x128xf32>
    %4 = arith.mulf %2, %3 : vector<4096x128xf32>
    %c0_4 = arith.constant 0 : index
    %c0_5 = arith.constant 0 : index
    %c0_6 = arith.constant 0 : index
    %5 = vector.load %arg4[%c0_4, %c0_5, %c0_6] : memref<1x4096x128xf32, #tpu.memory_space<vmem>>, vector<1x4096x128xf32>
    %6 = vector.shape_cast %5 : vector<1x4096x128xf32> to vector<4096x128xf32>
    %7 = vector.shape_cast %4 : vector<4096x128xf32> to vector<1x4096x128xf32>
    tpu.vector_store %arg4[%c0_4, %c0_5, %c0_6], %7 {strides = array<i32>} : memref<1x4096x128xf32, #tpu.memory_space<vmem>>, vector<1x4096x128xf32>,
    return
  }
  func.func @transform_0(%arg0: i32, %arg1: i32) -> (i32, i32, i32) {
    %c0_i32 = arith.constant 0 : i32
    %c0_i32_0 = arith.constant 0 : i32
    return %arg1, %arg0, %c0_i32 : i32, i32, i32
  }
  func.func @transform_1(%arg0: i32, %arg1: i32) -> (i32, i32) {
    %c0_i32 = arith.constant 0 : i32
    %c0_i32_0 = arith.constant 0 : i32
    return %arg0, %c0_i32 : i32, i32
  }
  func.func @transform_2(%arg0: i32, %arg1: i32) -> (i32, i32, i32) {
    %c0_i32 = arith.constant 0 : i32
    %c0_i32_0 = arith.constant 0 : i32
    return %arg1, %arg0, %c0_i32 : i32, i32, i32
  }
}

</mosaic_0001>

<llo_original>
// kernel: tpu_custom_call.1
$region0: #{tpu_custom_call.1}
  #allocation0 [shape = 'u32[]', space=smem, size = 0x4, offset = 0x4, fixed_abs, tag = 'smem constant byte address 0x4 - core index']
  #allocation1 [shape = 'u32[144,128]{1,0:T(1,128)}', space=vmem, size = 0x12000, scoped, tag = 'internal scratch']
  %s0 = inlined_call_operand.hbm [shape: f32[2,4096,128], index: 0, kind: input, shape index: {}]
  %s1 = inlined_call_operand.hbm [shape: f32[4096,128], index: 1, kind: input, shape index: {}]
  %s2 = inlined_call_operand.hbm [shape: f32[2,4096,128], index: 2, kind: output, shape index: {}]
  %s3 = sld [smem:[#allocation0]]
  $region49: #{tpu_custom_call.1} parent=0
    _
  %s5 = ssub.s32 1, %s3
  %s6 = scalar_select 0, %s5, %s3
  $region1: #{tpu_custom_call.1} parent=0
    #allocation2 [shape = 'u8[4194304]{0}', space=vmem, size = 0x400000, scoped, tag = 'input window, operand 0']
    #allocation3 [shape = 's32[2]{0}', space=sflag, size = 0x8, scoped, tag = 'scoped memory for tpu_custom_call.1']
    #allocation4 [shape = 's32[2]{0}', space=sflag, size = 0x8, scoped, tag = 'scoped memory for tpu_custom_call.1']
    #allocation5 [shape = 'u8[2097152]{0}', space=vmem, size = 0x200000, scoped, tag = 'input window, operand 1, single buffered']
    #allocation6 [shape = 's32[1]{0}', space=sflag, size = 0x4, scoped, tag = 'scoped memory for tpu_custom_call.1']
    #allocation7 [shape = 'u8[4194304]{0}', space=vmem, size = 0x400000, scoped, tag = 'output window, operand 0']
    %7 = vsyncpa [#allocation3], 0
    %s8 = scalar_lea.sflag [#allocation3], 1
    %9 = vsyncpa %s8, 0
    %10 = vsyncpa [#allocation6], 0
    %11 = vsyncpa [#allocation4], 0
    %s12 = scalar_lea.sflag [#allocation4], 1
    %13 = vsyncpa %s12, 0
    loop: start=0, step=1, limit=4
    $region2: #{tpu_custom_call.1} parent=1 // loop_pre_header
      _
    $region3: #{tpu_custom_call.1} parent=1 // loop_header
      %s15 = sphi 0, %s19
      %p16 = scmp.ge.s32.totalorder %s15, 4
      %s22 = sphi 0, %s34
      %s23 = sphi 0, %s30
      %s24 = sphi 0, %s22
      %s25 = sphi 0, %s23
      %s26 = sphi 0, %s24
      %s27 = sphi 0, %s25
      %s39 = sphi 0, %s41
      %s42 = sphi 0, %s39
      %s43 = sphi 0, %s42
      %s59 = sphi 0, %s43
      %s65 = sphi 0, %s67
      %s68 = sphi 0, %s65
      %s69 = sphi 0, %s68
      %s85 = sphi 0, %s69
      %s93 = sphi 0, %s95
      %s96 = sphi 0, %s93
      %s97 = sphi 0, %s96
      %s113 = sphi 0, %s97
    $region4: #{tpu_custom_call.1} parent=1 // loop_header_branch
      %18 = sbr.rel (%p16) target = $region8
    $region5: #{tpu_custom_call.1} parent=1 // loop_body
      %s20 = ssub.s32 %s15, 1
      %s21 = ssub.s32 %s15, 2
      %s28 = sadd.s32 1, %s23
      %p29 = scmp.ge.s32.totalorder %s28, 2
      %s30 = scalar_select %p29, 0, %s28
      %s31 = sadd.s32 1, %s22
      %s32 = scalar_select %p29, %s31, %s22
      %p33 = scmp.ge.s32.totalorder %s32, 1
      %s34 = scalar_select %p33, 0, %s32
      %s35 = ssub.s32 %s23, %s30
      %s36 = ssub.s32 %s22, %s34
      %s37 = sor.u32 %s35, %s36
      %p38 = scmp.eq.s32.totalorder %s37, 0
      %s40 = sadd.s32 %s39, 1
      %s41 = scalar_select %p38, %s39, %s40
      %p44 = pneg %p38
      %p45 = scmp.eq.s32.totalorder %s15, 1
      %p46 = por %p44, %p45
      %p47 = scmp.ne.s32.totalorder %s39, %s42
      %p48 = scmp.eq.s32.totalorder %s15, 0
      %p49 = por %p47, %p48
      %p50 = scmp.ne.s32.totalorder %s39, %s42
      %p51 = scmp.eq.s32.totalorder %s20, 1
      %p52 = por %p50, %p51
      %p53 = scmp.ne.s32.totalorder %s42, %s43
      %p54 = scmp.eq.s32.totalorder %s20, 0
      %p55 = por %p53, %p54
      %p56 = scmp.ne.s32.totalorder %s42, %s43
      %p57 = scmp.eq.s32.totalorder %s21, 1
      %p58 = por %p56, %p57
      %p60 = scmp.ne.s32.totalorder %s43, %s59
      %p61 = scmp.eq.s32.totalorder %s21, 0
      %p62 = por %p60, %p61
      %s63 = ssub.s32 %s22, %s34
      %p64 = scmp.eq.s32.totalorder %s63, 0
      %s66 = sadd.s32 %s65, 1
      %s67 = scalar_select %p64, %s65, %s66
      %p70 = pneg %p64
      %p71 = scmp.eq.s32.totalorder %s15, 1
      %p72 = por %p70, %p71
      %p73 = scmp.ne.s32.totalorder %s65, %s68
      %p74 = scmp.eq.s32.totalorder %s15, 0
      %p75 = por %p73, %p74
      %p76 = scmp.ne.s32.totalorder %s65, %s68
      %p77 = scmp.eq.s32.totalorder %s20, 1
      %p78 = por %p76, %p77
      %p79 = scmp.ne.s32.totalorder %s68, %s69
      %p80 = scmp.eq.s32.totalorder %s20, 0
      %p81 = por %p79, %p80
      %p82 = scmp.ne.s32.totalorder %s68, %s69
      %p83 = scmp.eq.s32.totalorder %s21, 1
      %p84 = por %p82, %p83
      %p86 = scmp.ne.s32.totalorder %s69, %s85
      %p87 = scmp.eq.s32.totalorder %s21, 0
      %p88 = por %p86, %p87
      %s89 = ssub.s32 %s23, %s30
      %s90 = ssub.s32 %s22, %s34
      %s91 = sor.u32 %s89, %s90
      %p92 = scmp.eq.s32.totalorder %s91, 0
      %s94 = sadd.s32 %s93, 1
      %s95 = scalar_select %p92, %s93, %s94
      %p98 = pneg %p92
      %p99 = scmp.eq.s32.totalorder %s15, 1
      %p100 = por %p98, %p99
      %p101 = scmp.ne.s32.totalorder %s93, %s96
      %p102 = scmp.eq.s32.totalorder %s15, 0
      %p103 = por %p101, %p102
      %p104 = scmp.ne.s32.totalorder %s93, %s96
      %p105 = scmp.eq.s32.totalorder %s20, 1
      %p106 = por %p104, %p105
      %p107 = scmp.ne.s32.totalorder %s96, %s97
      %p108 = scmp.eq.s32.totalorder %s20, 0
      %p109 = por %p107, %p108
      %p110 = scmp.ne.s32.totalorder %s96, %s97
      %p111 = scmp.eq.s32.totalorder %s21, 1
      %p112 = por %p110, %p111
      %p114 = scmp.ne.s32.totalorder %s97, %s113
      %p115 = scmp.eq.s32.totalorder %s21, 0
      %p116 = por %p114, %p115
      %p117 = scmp.le.s32.totalorder 1, %s15
      %p118 = scmp.lt.s32.totalorder %s15, 3
      %p119 = pnand %p117, %p118
      %p120 = pneg %p119
      // Predicated region
      $region9: #{tpu_custom_call.1} parent=5 // pred_check
        _
      $region10: #{tpu_custom_call.1} parent=5 // pred_check_branch
        %122 = sbr.rel (%p119) target = $region12
      $region11: #{tpu_custom_call.1} parent=5 // pred_region
        %s123 = ssub.s32 %s15, 1
        // Predicated region
        $region13: #{tpu_custom_call.1} parent=11 // pred_check
          %p124 = pneg %p81
        $region14: #{tpu_custom_call.1} parent=11 // pred_check_branch
          %126 = sbr.rel (%p124) target = $region16
        $region15: #{tpu_custom_call.1} parent=11 // pred_region
          %s127 = smul.u32 512, %s24
          %s129 = ssub.s32 65536, 65536
          %130 = vsyncadd [#allocation6], %s129
          %s131 = smul.addr %s127, 128
          %s132 = scalar_lea.hbm %s1, %s131
          %s133 = sshll.u32 [#allocation5], 4
          %s134 = int_to_ptr.vmem [resolvable:$true] %s133
          %139 = dma.hbm_to_vmem [thread:$0]  %s132, 65536, %s134, [#allocation6], 128, 128, 8
        $region16: #{tpu_custom_call.1} parent=11 // pred_fallthru
          _
      $region12: #{tpu_custom_call.1} parent=5 // pred_fallthru
        _
      %p140 = scmp.lt.s32.totalorder %s15, 2
      // Predicated region
      $region17: #{tpu_custom_call.1} parent=5 // pred_check
        %p141 = pneg %p140
      $region18: #{tpu_custom_call.1} parent=5 // pred_check_branch
        %143 = sbr.rel (%p141) target = $region20
      $region19: #{tpu_custom_call.1} parent=5 // pred_region
        // Predicated region
        $region21: #{tpu_custom_call.1} parent=19 // pred_check
          %p144 = pneg %p49
        $region22: #{tpu_custom_call.1} parent=19 // pred_check_branch
          %146 = sbr.rel (%p144) target = $region24
        $region23: #{tpu_custom_call.1} parent=19 // pred_region
          %s147 = sand.u32 %s39, 1
          %s148 = scalar_lea.sflag [#allocation3], %s147
          %s149 = sand.u32 %s39, 1
          %s150 = smul.addr %s149, 4096
          %s151 = scalar_lea.vmem [#allocation2], %s150
          %s152 = smul.u32 512, %s22
          %s154 = ssub.s32 65536, 65536
          %155 = vsyncadd %s148, %s154
          %s156 = smul.addr %s23, 512
          %s157 = sadd.s32 %s152, %s156
          %s158 = smul.addr %s157, 128
          %s159 = scalar_lea.hbm %s0, %s158
          %s160 = sshll.u32 %s151, 4
          %s161 = int_to_ptr.vmem [resolvable:$true] %s160
          %166 = dma.hbm_to_vmem [thread:$0]  %s159, 65536, %s161, %s148, 128, 128, 8
        $region24: #{tpu_custom_call.1} parent=19 // pred_fallthru
          _
      $region20: #{tpu_custom_call.1} parent=5 // pred_fallthru
        _
      %p167 = scmp.le.s32.totalorder 1, %s15
      %p168 = scmp.lt.s32.totalorder %s15, 3
      %p169 = pnand %p167, %p168
      %p170 = pneg %p169
      // Predicated region
      $region25: #{tpu_custom_call.1} parent=5 // pred_check
        _
      $region26: #{tpu_custom_call.1} parent=5 // pred_check_branch
        %172 = sbr.rel (%p169) target = $region28
      $region27: #{tpu_custom_call.1} parent=5 // pred_region
        %s173 = ssub.s32 %s15, 1
        %s174 = sand.u32 %s42, 1
        %s175 = scalar_lea.sflag [#allocation3], %s174
        %s176 = sand.u32 %s42, 1
        %s177 = smul.addr %s176, 4096
        %s178 = scalar_lea.vmem [#allocation2], %s177
        // Predicated region
        $region29: #{tpu_custom_call.1} parent=27 // pred_check
          %p179 = pneg %p55
        $region30: #{tpu_custom_call.1} parent=27 // pred_check_branch
          %181 = sbr.rel (%p179) target = $region32
        $region31: #{tpu_custom_call.1} parent=27 // pred_region
          %182 = dma.done %s175, 65536
        $region32: #{tpu_custom_call.1} parent=27 // pred_fallthru
          _
        // Predicated region
        $region33: #{tpu_custom_call.1} parent=27 // pred_check
          %p183 = pneg %p81
        $region34: #{tpu_custom_call.1} parent=27 // pred_check_branch
          %185 = sbr.rel (%p183) target = $region36
        $region35: #{tpu_custom_call.1} parent=27 // pred_region
          %186 = dma.done [#allocation6], 65536
        $region36: #{tpu_custom_call.1} parent=27 // pred_fallthru
          _
        %s187 = sand.u32 %s42, 1
        %s188 = scalar_lea.sflag [#allocation3], %s187
        %s189 = sand.u32 %s42, 1
        %s190 = smul.addr %s189, 4096
        %s191 = scalar_lea.vmem [#allocation2], %s190
        %p192 = pneg %p55
        %p193 = pneg %p52
        %p194 = pneg %p81
        %p195 = pneg %p78
        %p196 = pneg %p109
        %p197 = pneg %p106
        %s198 = sand.u32 %s96, 1
        %s199 = scalar_lea.sflag [#allocation4], %s198
        %s200 = sand.u32 %s96, 1
        %s201 = smul.addr %s200, 4096
        %s202 = scalar_lea.vmem [#allocation7], %s201
        %s203 = smul.u32 512, %s24
        %s204 = smul.u32 512, %s24
        %s205 = smul.u32 512, %s24
        %v206 = vld [vmem:[%s178] sm:$0xff]
        %v207 = vld [vmem:[%s178 + $0x8] sm:$0xff]
        %v208 = vld [vmem:[%s178 + $0x10] sm:$0xff]
        %v209 = vld [vmem:[%s178 + $0x18] sm:$0xff]
        %v210 = vld [vmem:[%s178 + $0x20] sm:$0xff]
        %v211 = vld [vmem:[%s178 + $0x28] sm:$0xff]
        %v212 = vld [vmem:[%s178 + $0x30] sm:$0xff]
        %v213 = vld [vmem:[%s178 + $0x38] sm:$0xff]
        %v214 = vld [vmem:[%s178 + $0x40] sm:$0xff]
        %v215 = vld [vmem:[%s178 + $0x48] sm:$0xff]
        %v216 = vld [vmem:[%s178 + $0x50] sm:$0xff]
        %v217 = vld [vmem:[%s178 + $0x58] sm:$0xff]
        %v218 = vld [vmem:[%s178 + $0x60] sm:$0xff]
        %v219 = vld [vmem:[%s178 + $0x68] sm:$0xff]
        %v220 = vld [vmem:[%s178 + $0x70] sm:$0xff]
        %v221 = vld [vmem:[%s178 + $0x78] sm:$0xff]
        %v222 = vld [vmem:[%s178 + $0x80] sm:$0xff]
        %v223 = vld [vmem:[%s178 + $0x88] sm:$0xff]
        %v224 = vld [vmem:[%s178 + $0x90] sm:$0xff]
        %v225 = vld [vmem:[%s178 + $0x98] sm:$0xff]
        %v226 = vld [vmem:[%s178 + $0xa0] sm:$0xff]
        %v227 = vld [vmem:[%s178 + $0xa8] sm:$0xff]
        %v228 = vld [vmem:[%s178 + $0xb0] sm:$0xff]
        %v229 = vld [vmem:[%s178 + $0xb8] sm:$0xff]
        %v230 = vld [vmem:[%s178 + $0xc0] sm:$0xff]
        %v231 = vld [vmem:[%s178 + $0xc8] sm:$0xff]
        %v232 = vld [vmem:[%s178 + $0xd0] sm:$0xff]
        %v233 = vld [vmem:[%s178 + $0xd8] sm:$0xff]
        %v234 = vld [vmem:[%s178 + $0xe0] sm:$0xff]
        %v235 = vld [vmem:[%s178 + $0xe8] sm:$0xff]
        %v236 = vld [vmem:[%s178 + $0xf0] sm:$0xff]
        %v237 = vld [vmem:[%s178 + $0xf8] sm:$0xff]
        %v238 = vld [vmem:[%s178 + $0x100] sm:$0xff]
        %v239 = vld [vmem:[%s178 + $0x108] sm:$0xff]
        %v240 = vld [vmem:[%s178 + $0x110] sm:$0xff]
        %v241 = vld [vmem:[%s178 + $0x118] sm:$0xff]
        %v242 = vld [vmem:[%s178 + $0x120] sm:$0xff]
        %v243 = vld [vmem:[%s178 + $0x128] sm:$0xff]
        %v244 = vld [vmem:[%s178 + $0x130] sm:$0xff]
        %v245 = vld [vmem:[%s178 + $0x138] sm:$0xff]
        %v246 = vld [vmem:[%s178 + $0x140] sm:$0xff]
        %v247 = vld [vmem:[%s178 + $0x148] sm:$0xff]
        %v248 = vld [vmem:[%s178 + $0x150] sm:$0xff]
        %v249 = vld [vmem:[%s178 + $0x158] sm:$0xff]
        %v250 = vld [vmem:[%s178 + $0x160] sm:$0xff]
        %v251 = vld [vmem:[%s178 + $0x168] sm:$0xff]
        %v252 = vld [vmem:[%s178 + $0x170] sm:$0xff]
        %v253 = vld [vmem:[%s178 + $0x178] sm:$0xff]
        %v254 = vld [vmem:[%s178 + $0x180] sm:$0xff]
        %v255 = vld [vmem:[%s178 + $0x188] sm:$0xff]
        %v256 = vld [vmem:[%s178 + $0x190] sm:$0xff]
        %v257 = vld [vmem:[%s178 + $0x198] sm:$0xff]
        %v258 = vld [vmem:[%s178 + $0x1a0] sm:$0xff]
        %v259 = vld [vmem:[%s178 + $0x1a8] sm:$0xff]
        %v260 = vld [vmem:[%s178 + $0x1b0] sm:$0xff]
        %v261 = vld [vmem:[%s178 + $0x1b8] sm:$0xff]
        %v262 = vld [vmem:[%s178 + $0x1c0] sm:$0xff]
        %v263 = vld [vmem:[%s178 + $0x1c8] sm:$0xff]
        %v264 = vld [vmem:[%s178 + $0x1d0] sm:$0xff]
        %v265 = vld [vmem:[%s178 + $0x1d8] sm:$0xff]
        %v266 = vld [vmem:[%s178 + $0x1e0] sm:$0xff]
        %v267 = vld [vmem:[%s178 + $0x1e8] sm:$0xff]
        %v268 = vld [vmem:[%s178 + $0x1f0] sm:$0xff]
        %v269 = vld [vmem:[%s178 + $0x1f8] sm:$0xff]
        %v270 = vld [vmem:[%s178 + $0x200] sm:$0xff]
        %v271 = vld [vmem:[%s178 + $0x208] sm:$0xff]
        %v272 = vld [vmem:[%s178 + $0x210] sm:$0xff]
        %v273 = vld [vmem:[%s178 + $0x218] sm:$0xff]
        %v274 = vld [vmem:[%s178 + $0x220] sm:$0xff]
        %v275 = vld [vmem:[%s178 + $0x228] sm:$0xff]
        %v276 = vld [vmem:[%s178 + $0x230] sm:$0xff]
        %v277 = vld [vmem:[%s178 + $0x238] sm:$0xff]
        %v278 = vld [vmem:[%s178 + $0x240] sm:$0xff]
        %v279 = vld [vmem:[%s178 + $0x248] sm:$0xff]
        %v280 = vld [vmem:[%s178 + $0x250] sm:$0xff]
        %v281 = vld [vmem:[%s178 + $0x258] sm:$0xff]
        %v282 = vld [vmem:[%s178 + $0x260] sm:$0xff]
        %v283 = vld [vmem:[%s178 + $0x268] sm:$0xff]
        %v284 = vld [vmem:[%s178 + $0x270] sm:$0xff]
        %v285 = vld [vmem:[%s178 + $0x278] sm:$0xff]
        %v286 = vld [vmem:[%s178 + $0x280] sm:$0xff]
        %v287 = vld [vmem:[%s178 + $0x288] sm:$0xff]
        %v288 = vld [vmem:[%s178 + $0x290] sm:$0xff]
        %v289 = vld [vmem:[%s178 + $0x298] sm:$0xff]
        %v290 = vld [vmem:[%s178 + $0x2a0] sm:$0xff]
        %v291 = vld [vmem:[%s178 + $0x2a8] sm:$0xff]
        %v292 = vld [vmem:[%s178 + $0x2b0] sm:$0xff]
        %v293 = vld [vmem:[%s178 + $0x2b8] sm:$0xff]
        %v294 = vld [vmem:[%s178 + $0x2c0] sm:$0xff]
        %v295 = vld [vmem:[%s178 + $0x2c8] sm:$0xff]
        %v296 = vld [vmem:[%s178 + $0x2d0] sm:$0xff]
        %v297 = vld [vmem:[%s178 + $0x2d8] sm:$0xff]
        %v298 = vld [vmem:[%s178 + $0x2e0] sm:$0xff]
        %v299 = vld [vmem:[%s178 + $0x2e8] sm:$0xff]
        %v300 = vld [vmem:[%s178 + $0x2f0] sm:$0xff]
        %v301 = vld [vmem:[%s178 + $0x2f8] sm:$0xff]
        %v302 = vld [vmem:[%s178 + $0x300] sm:$0xff]
        %v303 = vld [vmem:[%s178 + $0x308] sm:$0xff]
        %v304 = vld [vmem:[%s178 + $0x310] sm:$0xff]
        %v305 = vld [vmem:[%s178 + $0x318] sm:$0xff]
        %v306 = vld [vmem:[%s178 + $0x320] sm:$0xff]
        %v307 = vld [vmem:[%s178 + $0x328] sm:$0xff]
        %v308 = vld [vmem:[%s178 + $0x330] sm:$0xff]
        %v309 = vld [vmem:[%s178 + $0x338] sm:$0xff]
        %v310 = vld [vmem:[%s178 + $0x340] sm:$0xff]
        %v311 = vld [vmem:[%s178 + $0x348] sm:$0xff]
        %v312 = vld [vmem:[%s178 + $0x350] sm:$0xff]
        %v313 = vld [vmem:[%s178 + $0x358] sm:$0xff]
        %v314 = vld [vmem:[%s178 + $0x360] sm:$0xff]
        %v315 = vld [vmem:[%s178 + $0x368] sm:$0xff]
        %v316 = vld [vmem:[%s178 + $0x370] sm:$0xff]
        %v317 = vld [vmem:[%s178 + $0x378] sm:$0xff]
        %v318 = vld [vmem:[%s178 + $0x380] sm:$0xff]
        %v319 = vld [vmem:[%s178 + $0x388] sm:$0xff]
        %v320 = vld [vmem:[%s178 + $0x390] sm:$0xff]
        %v321 = vld [vmem:[%s178 + $0x398] sm:$0xff]
        %v322 = vld [vmem:[%s178 + $0x3a0] sm:$0xff]
        %v323 = vld [vmem:[%s178 + $0x3a8] sm:$0xff]
        %v324 = vld [vmem:[%s178 + $0x3b0] sm:$0xff]
        %v325 = vld [vmem:[%s178 + $0x3b8] sm:$0xff]
        %v326 = vld [vmem:[%s178 + $0x3c0] sm:$0xff]
        %v327 = vld [vmem:[%s178 + $0x3c8] sm:$0xff]
        %v328 = vld [vmem:[%s178 + $0x3d0] sm:$0xff]
        %v329 = vld [vmem:[%s178 + $0x3d8] sm:$0xff]
        %v330 = vld [vmem:[%s178 + $0x3e0] sm:$0xff]
        %v331 = vld [vmem:[%s178 + $0x3e8] sm:$0xff]
        %v332 = vld [vmem:[%s178 + $0x3f0] sm:$0xff]
        %v333 = vld [vmem:[%s178 + $0x3f8] sm:$0xff]
        %v334 = vld [vmem:[%s178 + $0x400] sm:$0xff]
        %v335 = vld [vmem:[%s178 + $0x408] sm:$0xff]
        %v336 = vld [vmem:[%s178 + $0x410] sm:$0xff]
        %v337 = vld [vmem:[%s178 + $0x418] sm:$0xff]
        %v338 = vld [vmem:[%s178 + $0x420] sm:$0xff]
        %v339 = vld [vmem:[%s178 + $0x428] sm:$0xff]
        %v340 = vld [vmem:[%s178 + $0x430] sm:$0xff]
        %v341 = vld [vmem:[%s178 + $0x438] sm:$0xff]
        %v342 = vld [vmem:[%s178 + $0x440] sm:$0xff]
        %v343 = vld [vmem:[%s178 + $0x448] sm:$0xff]
        %v344 = vld [vmem:[%s178 + $0x450] sm:$0xff]
        %v345 = vld [vmem:[%s178 + $0x458] sm:$0xff]
        %v346 = vld [vmem:[%s178 + $0x460] sm:$0xff]
        %v347 = vld [vmem:[%s178 + $0x468] sm:$0xff]
        %v348 = vld [vmem:[%s178 + $0x470] sm:$0xff]
        %v349 = vld [vmem:[%s178 + $0x478] sm:$0xff]
        %v350 = vld [vmem:[%s178 + $0x480] sm:$0xff]
        %v351 = vld [vmem:[%s178 + $0x488] sm:$0xff]
        %v352 = vld [vmem:[%s178 + $0x490] sm:$0xff]
        %v353 = vld [vmem:[%s178 + $0x498] sm:$0xff]
        %v354 = vld [vmem:[%s178 + $0x4a0] sm:$0xff]
        %v355 = vld [vmem:[%s178 + $0x4a8] sm:$0xff]
        %v356 = vld [vmem:[%s178 + $0x4b0] sm:$0xff]
        %v357 = vld [vmem:[%s178 + $0x4b8] sm:$0xff]
        %v358 = vld [vmem:[%s178 + $0x4c0] sm:$0xff]
        %v359 = vld [vmem:[%s178 + $0x4c8] sm:$0xff]
        %v360 = vld [vmem:[%s178 + $0x4d0] sm:$0xff]
        %v361 = vld [vmem:[%s178 + $0x4d8] sm:$0xff]
        %v362 = vld [vmem:[%s178 + $0x4e0] sm:$0xff]
        %v363 = vld [vmem:[%s178 + $0x4e8] sm:$0xff]
        %v364 = vld [vmem:[%s178 + $0x4f0] sm:$0xff]
        %v365 = vld [vmem:[%s178 + $0x4f8] sm:$0xff]
        %v366 = vld [vmem:[%s178 + $0x500] sm:$0xff]
        %v367 = vld [vmem:[%s178 + $0x508] sm:$0xff]
        %v368 = vld [vmem:[%s178 + $0x510] sm:$0xff]
        %v369 = vld [vmem:[%s178 + $0x518] sm:$0xff]
        %v370 = vld [vmem:[%s178 + $0x520] sm:$0xff]
        %v371 = vld [vmem:[%s178 + $0x528] sm:$0xff]
        %v372 = vld [vmem:[%s178 + $0x530] sm:$0xff]
        %v373 = vld [vmem:[%s178 + $0x538] sm:$0xff]
        %v374 = vld [vmem:[%s178 + $0x540] sm:$0xff]
        %v375 = vld [vmem:[%s178 + $0x548] sm:$0xff]
        %v376 = vld [vmem:[%s178 + $0x550] sm:$0xff]
        %v377 = vld [vmem:[%s178 + $0x558] sm:$0xff]
        %v378 = vld [vmem:[%s178 + $0x560] sm:$0xff]
        %v379 = vld [vmem:[%s178 + $0x568] sm:$0xff]
        %v380 = vld [vmem:[%s178 + $0x570] sm:$0xff]
        %v381 = vld [vmem:[%s178 + $0x578] sm:$0xff]
        %v382 = vld [vmem:[%s178 + $0x580] sm:$0xff]
        %v383 = vld [vmem:[%s178 + $0x588] sm:$0xff]
        %v384 = vld [vmem:[%s178 + $0x590] sm:$0xff]
        %v385 = vld [vmem:[%s178 + $0x598] sm:$0xff]
        %v386 = vld [vmem:[%s178 + $0x5a0] sm:$0xff]
        %v387 = vld [vmem:[%s178 + $0x5a8] sm:$0xff]
        %v388 = vld [vmem:[%s178 + $0x5b0] sm:$0xff]
        %v389 = vld [vmem:[%s178 + $0x5b8] sm:$0xff]
        %v390 = vld [vmem:[%s178 + $0x5c0] sm:$0xff]
        %v391 = vld [vmem:[%s178 + $0x5c8] sm:$0xff]
        %v392 = vld [vmem:[%s178 + $0x5d0] sm:$0xff]
        %v393 = vld [vmem:[%s178 + $0x5d8] sm:$0xff]
        %v394 = vld [vmem:[%s178 + $0x5e0] sm:$0xff]
        %v395 = vld [vmem:[%s178 + $0x5e8] sm:$0xff]
        %v396 = vld [vmem:[%s178 + $0x5f0] sm:$0xff]
        %v397 = vld [vmem:[%s178 + $0x5f8] sm:$0xff]
        %v398 = vld [vmem:[%s178 + $0x600] sm:$0xff]
        %v399 = vld [vmem:[%s178 + $0x608] sm:$0xff]
        %v400 = vld [vmem:[%s178 + $0x610] sm:$0xff]
        %v401 = vld [vmem:[%s178 + $0x618] sm:$0xff]
        %v402 = vld [vmem:[%s178 + $0x620] sm:$0xff]
        %v403 = vld [vmem:[%s178 + $0x628] sm:$0xff]
        %v404 = vld [vmem:[%s178 + $0x630] sm:$0xff]
        %v405 = vld [vmem:[%s178 + $0x638] sm:$0xff]
        %v406 = vld [vmem:[%s178 + $0x640] sm:$0xff]
        %v407 = vld [vmem:[%s178 + $0x648] sm:$0xff]
        %v408 = vld [vmem:[%s178 + $0x650] sm:$0xff]
        %v409 = vld [vmem:[%s178 + $0x658] sm:$0xff]
        %v410 = vld [vmem:[%s178 + $0x660] sm:$0xff]
        %v411 = vld [vmem:[%s178 + $0x668] sm:$0xff]
        %v412 = vld [vmem:[%s178 + $0x670] sm:$0xff]
        %v413 = vld [vmem:[%s178 + $0x678] sm:$0xff]
        %v414 = vld [vmem:[%s178 + $0x680] sm:$0xff]
        %v415 = vld [vmem:[%s178 + $0x688] sm:$0xff]
        %v416 = vld [vmem:[%s178 + $0x690] sm:$0xff]
        %v417 = vld [vmem:[%s178 + $0x698] sm:$0xff]
        %v418 = vld [vmem:[%s178 + $0x6a0] sm:$0xff]
        %v419 = vld [vmem:[%s178 + $0x6a8] sm:$0xff]
        %v420 = vld [vmem:[%s178 + $0x6b0] sm:$0xff]
        %v421 = vld [vmem:[%s178 + $0x6b8] sm:$0xff]
        %v422 = vld [vmem:[%s178 + $0x6c0] sm:$0xff]
        %v423 = vld [vmem:[%s178 + $0x6c8] sm:$0xff]
        %v424 = vld [vmem:[%s178 + $0x6d0] sm:$0xff]
        %v425 = vld [vmem:[%s178 + $0x6d8] sm:$0xff]
        %v426 = vld [vmem:[%s178 + $0x6e0] sm:$0xff]
        %v427 = vld [vmem:[%s178 + $0x6e8] sm:$0xff]
        %v428 = vld [vmem:[%s178 + $0x6f0] sm:$0xff]
        %v429 = vld [vmem:[%s178 + $0x6f8] sm:$0xff]
        %v430 = vld [vmem:[%s178 + $0x700] sm:$0xff]
        %v431 = vld [vmem:[%s178 + $0x708] sm:$0xff]
        %v432 = vld [vmem:[%s178 + $0x710] sm:$0xff]
        %v433 = vld [vmem:[%s178 + $0x718] sm:$0xff]
        %v434 = vld [vmem:[%s178 + $0x720] sm:$0xff]
        %v435 = vld [vmem:[%s178 + $0x728] sm:$0xff]
        %v436 = vld [vmem:[%s178 + $0x730] sm:$0xff]
        %v437 = vld [vmem:[%s178 + $0x738] sm:$0xff]
        %v438 = vld [vmem:[%s178 + $0x740] sm:$0xff]
        %v439 = vld [vmem:[%s178 + $0x748] sm:$0xff]
        %v440 = vld [vmem:[%s178 + $0x750] sm:$0xff]
        %v441 = vld [vmem:[%s178 + $0x758] sm:$0xff]
        %v442 = vld [vmem:[%s178 + $0x760] sm:$0xff]
        %v443 = vld [vmem:[%s178 + $0x768] sm:$0xff]
        %v444 = vld [vmem:[%s178 + $0x770] sm:$0xff]
        %v445 = vld [vmem:[%s178 + $0x778] sm:$0xff]
        %v446 = vld [vmem:[%s178 + $0x780] sm:$0xff]
        %v447 = vld [vmem:[%s178 + $0x788] sm:$0xff]
        %v448 = vld [vmem:[%s178 + $0x790] sm:$0xff]
        %v449 = vld [vmem:[%s178 + $0x798] sm:$0xff]
        %v450 = vld [vmem:[%s178 + $0x7a0] sm:$0xff]
        %v451 = vld [vmem:[%s178 + $0x7a8] sm:$0xff]
        %v452 = vld [vmem:[%s178 + $0x7b0] sm:$0xff]
        %v453 = vld [vmem:[%s178 + $0x7b8] sm:$0xff]
        %v454 = vld [vmem:[%s178 + $0x7c0] sm:$0xff]
        %v455 = vld [vmem:[%s178 + $0x7c8] sm:$0xff]
        %v456 = vld [vmem:[%s178 + $0x7d0] sm:$0xff]
        %v457 = vld [vmem:[%s178 + $0x7d8] sm:$0xff]
        %v458 = vld [vmem:[%s178 + $0x7e0] sm:$0xff]
        %v459 = vld [vmem:[%s178 + $0x7e8] sm:$0xff]
        %v460 = vld [vmem:[%s178 + $0x7f0] sm:$0xff]
        %v461 = vld [vmem:[%s178 + $0x7f8] sm:$0xff]
        %v462 = vld [vmem:[%s178 + $0x800] sm:$0xff]
        %v463 = vld [vmem:[%s178 + $0x808] sm:$0xff]
        %v464 = vld [vmem:[%s178 + $0x810] sm:$0xff]
        %v465 = vld [vmem:[%s178 + $0x818] sm:$0xff]
        %v466 = vld [vmem:[%s178 + $0x820] sm:$0xff]
        %v467 = vld [vmem:[%s178 + $0x828] sm:$0xff]
        %v468 = vld [vmem:[%s178 + $0x830] sm:$0xff]
        %v469 = vld [vmem:[%s178 + $0x838] sm:$0xff]
        %v470 = vld [vmem:[%s178 + $0x840] sm:$0xff]
        %v471 = vld [vmem:[%s178 + $0x848] sm:$0xff]
        %v472 = vld [vmem:[%s178 + $0x850] sm:$0xff]
        %v473 = vld [vmem:[%s178 + $0x858] sm:$0xff]
        %v474 = vld [vmem:[%s178 + $0x860] sm:$0xff]
        %v475 = vld [vmem:[%s178 + $0x868] sm:$0xff]
        %v476 = vld [vmem:[%s178 + $0x870] sm:$0xff]
        %v477 = vld [vmem:[%s178 + $0x878] sm:$0xff]
        %v478 = vld [vmem:[%s178 + $0x880] sm:$0xff]
        %v479 = vld [vmem:[%s178 + $0x888] sm:$0xff]
        %v480 = vld [vmem:[%s178 + $0x890] sm:$0xff]
        %v481 = vld [vmem:[%s178 + $0x898] sm:$0xff]
        %v482 = vld [vmem:[%s178 + $0x8a0] sm:$0xff]
        %v483 = vld [vmem:[%s178 + $0x8a8] sm:$0xff]
        %v484 = vld [vmem:[%s178 + $0x8b0] sm:$0xff]
        %v485 = vld [vmem:[%s178 + $0x8b8] sm:$0xff]
        %v486 = vld [vmem:[%s178 + $0x8c0] sm:$0xff]
        %v487 = vld [vmem:[%s178 + $0x8c8] sm:$0xff]
        %v488 = vld [vmem:[%s178 + $0x8d0] sm:$0xff]
        %v489 = vld [vmem:[%s178 + $0x8d8] sm:$0xff]
        %v490 = vld [vmem:[%s178 + $0x8e0] sm:$0xff]
        %v491 = vld [vmem:[%s178 + $0x8e8] sm:$0xff]
        %v492 = vld [vmem:[%s178 + $0x8f0] sm:$0xff]
        %v493 = vld [vmem:[%s178 + $0x8f8] sm:$0xff]
        %v494 = vld [vmem:[%s178 + $0x900] sm:$0xff]
        %v495 = vld [vmem:[%s178 + $0x908] sm:$0xff]
        %v496 = vld [vmem:[%s178 + $0x910] sm:$0xff]
        %v497 = vld [vmem:[%s178 + $0x918] sm:$0xff]
        %v498 = vld [vmem:[%s178 + $0x920] sm:$0xff]
        %v499 = vld [vmem:[%s178 + $0x928] sm:$0xff]
        %v500 = vld [vmem:[%s178 + $0x930] sm:$0xff]
        %v501 = vld [vmem:[%s178 + $0x938] sm:$0xff]
        %v502 = vld [vmem:[%s178 + $0x940] sm:$0xff]
        %v503 = vld [vmem:[%s178 + $0x948] sm:$0xff]
        %v504 = vld [vmem:[%s178 + $0x950] sm:$0xff]
        %v505 = vld [vmem:[%s178 + $0x958] sm:$0xff]
        %v506 = vld [vmem:[%s178 + $0x960] sm:$0xff]
        %v507 = vld [vmem:[%s178 + $0x968] sm:$0xff]
        %v508 = vld [vmem:[%s178 + $0x970] sm:$0xff]
        %v509 = vld [vmem:[%s178 + $0x978] sm:$0xff]
        %v510 = vld [vmem:[%s178 + $0x980] sm:$0xff]
        %v511 = vld [vmem:[%s178 + $0x988] sm:$0xff]
        %v512 = vld [vmem:[%s178 + $0x990] sm:$0xff]
        %v513 = vld [vmem:[%s178 + $0x998] sm:$0xff]
        %v514 = vld [vmem:[%s178 + $0x9a0] sm:$0xff]
        %v515 = vld [vmem:[%s178 + $0x9a8] sm:$0xff]
        %v516 = vld [vmem:[%s178 + $0x9b0] sm:$0xff]
        %v517 = vld [vmem:[%s178 + $0x9b8] sm:$0xff]
        %v518 = vld [vmem:[%s178 + $0x9c0] sm:$0xff]
        %v519 = vld [vmem:[%s178 + $0x9c8] sm:$0xff]
        %v520 = vld [vmem:[%s178 + $0x9d0] sm:$0xff]
        %v521 = vld [vmem:[%s178 + $0x9d8] sm:$0xff]
        %v522 = vld [vmem:[%s178 + $0x9e0] sm:$0xff]
        %v523 = vld [vmem:[%s178 + $0x9e8] sm:$0xff]
        %v524 = vld [vmem:[%s178 + $0x9f0] sm:$0xff]
        %v525 = vld [vmem:[%s178 + $0x9f8] sm:$0xff]
        %v526 = vld [vmem:[%s178 + $0xa00] sm:$0xff]
        %v527 = vld [vmem:[%s178 + $0xa08] sm:$0xff]
        %v528 = vld [vmem:[%s178 + $0xa10] sm:$0xff]
        %v529 = vld [vmem:[%s178 + $0xa18] sm:$0xff]
        %v530 = vld [vmem:[%s178 + $0xa20] sm:$0xff]
        %v531 = vld [vmem:[%s178 + $0xa28] sm:$0xff]
        %v532 = vld [vmem:[%s178 + $0xa30] sm:$0xff]
        %v533 = vld [vmem:[%s178 + $0xa38] sm:$0xff]
        %v534 = vld [vmem:[%s178 + $0xa40] sm:$0xff]
        %v535 = vld [vmem:[%s178 + $0xa48] sm:$0xff]
        %v536 = vld [vmem:[%s178 + $0xa50] sm:$0xff]
        %v537 = vld [vmem:[%s178 + $0xa58] sm:$0xff]
        %v538 = vld [vmem:[%s178 + $0xa60] sm:$0xff]
        %v539 = vld [vmem:[%s178 + $0xa68] sm:$0xff]
        %v540 = vld [vmem:[%s178 + $0xa70] sm:$0xff]
        %v541 = vld [vmem:[%s178 + $0xa78] sm:$0xff]
        %v542 = vld [vmem:[%s178 + $0xa80] sm:$0xff]
        %v543 = vld [vmem:[%s178 + $0xa88] sm:$0xff]
        %v544 = vld [vmem:[%s178 + $0xa90] sm:$0xff]
        %v545 = vld [vmem:[%s178 + $0xa98] sm:$0xff]
        %v546 = vld [vmem:[%s178 + $0xaa0] sm:$0xff]
        %v547 = vld [vmem:[%s178 + $0xaa8] sm:$0xff]
        %v548 = vld [vmem:[%s178 + $0xab0] sm:$0xff]
        %v549 = vld [vmem:[%s178 + $0xab8] sm:$0xff]
        %v550 = vld [vmem:[%s178 + $0xac0] sm:$0xff]
        %v551 = vld [vmem:[%s178 + $0xac8] sm:$0xff]
        %v552 = vld [vmem:[%s178 + $0xad0] sm:$0xff]
        %v553 = vld [vmem:[%s178 + $0xad8] sm:$0xff]
        %v554 = vld [vmem:[%s178 + $0xae0] sm:$0xff]
        %v555 = vld [vmem:[%s178 + $0xae8] sm:$0xff]
        %v556 = vld [vmem:[%s178 + $0xaf0] sm:$0xff]
        %v557 = vld [vmem:[%s178 + $0xaf8] sm:$0xff]
        %v558 = vld [vmem:[%s178 + $0xb00] sm:$0xff]
        %v559 = vld [vmem:[%s178 + $0xb08] sm:$0xff]
        %v560 = vld [vmem:[%s178 + $0xb10] sm:$0xff]
        %v561 = vld [vmem:[%s178 + $0xb18] sm:$0xff]
        %v562 = vld [vmem:[%s178 + $0xb20] sm:$0xff]
        %v563 = vld [vmem:[%s178 + $0xb28] sm:$0xff]
        %v564 = vld [vmem:[%s178 + $0xb30] sm:$0xff]
        %v565 = vld [vmem:[%s178 + $0xb38] sm:$0xff]
        %v566 = vld [vmem:[%s178 + $0xb40] sm:$0xff]
        %v567 = vld [vmem:[%s178 + $0xb48] sm:$0xff]
        %v568 = vld [vmem:[%s178 + $0xb50] sm:$0xff]
        %v569 = vld [vmem:[%s178 + $0xb58] sm:$0xff]
        %v570 = vld [vmem:[%s178 + $0xb60] sm:$0xff]
        %v571 = vld [vmem:[%s178 + $0xb68] sm:$0xff]
        %v572 = vld [vmem:[%s178 + $0xb70] sm:$0xff]
        %v573 = vld [vmem:[%s178 + $0xb78] sm:$0xff]
        %v574 = vld [vmem:[%s178 + $0xb80] sm:$0xff]
        %v575 = vld [vmem:[%s178 + $0xb88] sm:$0xff]
        %v576 = vld [vmem:[%s178 + $0xb90] sm:$0xff]
        %v577 = vld [vmem:[%s178 + $0xb98] sm:$0xff]
        %v578 = vld [vmem:[%s178 + $0xba0] sm:$0xff]
        %v579 = vld [vmem:[%s178 + $0xba8] sm:$0xff]
        %v580 = vld [vmem:[%s178 + $0xbb0] sm:$0xff]
        %v581 = vld [vmem:[%s178 + $0xbb8] sm:$0xff]
        %v582 = vld [vmem:[%s178 + $0xbc0] sm:$0xff]
        %v583 = vld [vmem:[%s178 + $0xbc8] sm:$0xff]
        %v584 = vld [vmem:[%s178 + $0xbd0] sm:$0xff]
        %v585 = vld [vmem:[%s178 + $0xbd8] sm:$0xff]
        %v586 = vld [vmem:[%s178 + $0xbe0] sm:$0xff]
        %v587 = vld [vmem:[%s178 + $0xbe8] sm:$0xff]
        %v588 = vld [vmem:[%s178 + $0xbf0] sm:$0xff]
        %v589 = vld [vmem:[%s178 + $0xbf8] sm:$0xff]
        %v590 = vld [vmem:[%s178 + $0xc00] sm:$0xff]
        %v591 = vld [vmem:[%s178 + $0xc08] sm:$0xff]
        %v592 = vld [vmem:[%s178 + $0xc10] sm:$0xff]
        %v593 = vld [vmem:[%s178 + $0xc18] sm:$0xff]
        %v594 = vld [vmem:[%s178 + $0xc20] sm:$0xff]
        %v595 = vld [vmem:[%s178 + $0xc28] sm:$0xff]
        %v596 = vld [vmem:[%s178 + $0xc30] sm:$0xff]
        %v597 = vld [vmem:[%s178 + $0xc38] sm:$0xff]
        %v598 = vld [vmem:[%s178 + $0xc40] sm:$0xff]
        %v599 = vld [vmem:[%s178 + $0xc48] sm:$0xff]
        %v600 = vld [vmem:[%s178 + $0xc50] sm:$0xff]
        %v601 = vld [vmem:[%s178 + $0xc58] sm:$0xff]
        %v602 = vld [vmem:[%s178 + $0xc60] sm:$0xff]
        %v603 = vld [vmem:[%s178 + $0xc68] sm:$0xff]
        %v604 = vld [vmem:[%s178 + $0xc70] sm:$0xff]
        %v605 = vld [vmem:[%s178 + $0xc78] sm:$0xff]
        %v606 = vld [vmem:[%s178 + $0xc80] sm:$0xff]
        %v607 = vld [vmem:[%s178 + $0xc88] sm:$0xff]
        %v608 = vld [vmem:[%s178 + $0xc90] sm:$0xff]
        %v609 = vld [vmem:[%s178 + $0xc98] sm:$0xff]
        %v610 = vld [vmem:[%s178 + $0xca0] sm:$0xff]
        %v611 = vld [vmem:[%s178 + $0xca8] sm:$0xff]
        %v612 = vld [vmem:[%s178 + $0xcb0] sm:$0xff]
        %v613 = vld [vmem:[%s178 + $0xcb8] sm:$0xff]
        %v614 = vld [vmem:[%s178 + $0xcc0] sm:$0xff]
        %v615 = vld [vmem:[%s178 + $0xcc8] sm:$0xff]
        %v616 = vld [vmem:[%s178 + $0xcd0] sm:$0xff]
        %v617 = vld [vmem:[%s178 + $0xcd8] sm:$0xff]
        %v618 = vld [vmem:[%s178 + $0xce0] sm:$0xff]
        %v619 = vld [vmem:[%s178 + $0xce8] sm:$0xff]
        %v620 = vld [vmem:[%s178 + $0xcf0] sm:$0xff]
        %v621 = vld [vmem:[%s178 + $0xcf8] sm:$0xff]
        %v622 = vld [vmem:[%s178 + $0xd00] sm:$0xff]
        %v623 = vld [vmem:[%s178 + $0xd08] sm:$0xff]
        %v624 = vld [vmem:[%s178 + $0xd10] sm:$0xff]
        %v625 = vld [vmem:[%s178 + $0xd18] sm:$0xff]
        %v626 = vld [vmem:[%s178 + $0xd20] sm:$0xff]
        %v627 = vld [vmem:[%s178 + $0xd28] sm:$0xff]
        %v628 = vld [vmem:[%s178 + $0xd30] sm:$0xff]
        %v629 = vld [vmem:[%s178 + $0xd38] sm:$0xff]
        %v630 = vld [vmem:[%s178 + $0xd40] sm:$0xff]
        %v631 = vld [vmem:[%s178 + $0xd48] sm:$0xff]
        %v632 = vld [vmem:[%s178 + $0xd50] sm:$0xff]
        %v633 = vld [vmem:[%s178 + $0xd58] sm:$0xff]
        %v634 = vld [vmem:[%s178 + $0xd60] sm:$0xff]
        %v635 = vld [vmem:[%s178 + $0xd68] sm:$0xff]
        %v636 = vld [vmem:[%s178 + $0xd70] sm:$0xff]
        %v637 = vld [vmem:[%s178 + $0xd78] sm:$0xff]
        %v638 = vld [vmem:[%s178 + $0xd80] sm:$0xff]
        %v639 = vld [vmem:[%s178 + $0xd88] sm:$0xff]
        %v640 = vld [vmem:[%s178 + $0xd90] sm:$0xff]
        %v641 = vld [vmem:[%s178 + $0xd98] sm:$0xff]
        %v642 = vld [vmem:[%s178 + $0xda0] sm:$0xff]
        %v643 = vld [vmem:[%s178 + $0xda8] sm:$0xff]
        %v644 = vld [vmem:[%s178 + $0xdb0] sm:$0xff]
        %v645 = vld [vmem:[%s178 + $0xdb8] sm:$0xff]
        %v646 = vld [vmem:[%s178 + $0xdc0] sm:$0xff]
        %v647 = vld [vmem:[%s178 + $0xdc8] sm:$0xff]
        %v648 = vld [vmem:[%s178 + $0xdd0] sm:$0xff]
        %v649 = vld [vmem:[%s178 + $0xdd8] sm:$0xff]
        %v650 = vld [vmem:[%s178 + $0xde0] sm:$0xff]
        %v651 = vld [vmem:[%s178 + $0xde8] sm:$0xff]
        %v652 = vld [vmem:[%s178 + $0xdf0] sm:$0xff]
        %v653 = vld [vmem:[%s178 + $0xdf8] sm:$0xff]
        %v654 = vld [vmem:[%s178 + $0xe00] sm:$0xff]
        %v655 = vld [vmem:[%s178 + $0xe08] sm:$0xff]
        %v656 = vld [vmem:[%s178 + $0xe10] sm:$0xff]
        %v657 = vld [vmem:[%s178 + $0xe18] sm:$0xff]
        %v658 = vld [vmem:[%s178 + $0xe20] sm:$0xff]
        %v659 = vld [vmem:[%s178 + $0xe28] sm:$0xff]
        %v660 = vld [vmem:[%s178 + $0xe30] sm:$0xff]
        %v661 = vld [vmem:[%s178 + $0xe38] sm:$0xff]
        %v662 = vld [vmem:[%s178 + $0xe40] sm:$0xff]
        %v663 = vld [vmem:[%s178 + $0xe48] sm:$0xff]
        %v664 = vld [vmem:[%s178 + $0xe50] sm:$0xff]
        %v665 = vld [vmem:[%s178 + $0xe58] sm:$0xff]
        %v666 = vld [vmem:[%s178 + $0xe60] sm:$0xff]
        %v667 = vld [vmem:[%s178 + $0xe68] sm:$0xff]
        %v668 = vld [vmem:[%s178 + $0xe70] sm:$0xff]
        %v669 = vld [vmem:[%s178 + $0xe78] sm:$0xff]
        %v670 = vld [vmem:[%s178 + $0xe80] sm:$0xff]
        %v671 = vld [vmem:[%s178 + $0xe88] sm:$0xff]
        %v672 = vld [vmem:[%s178 + $0xe90] sm:$0xff]
        %v673 = vld [vmem:[%s178 + $0xe98] sm:$0xff]
        %v674 = vld [vmem:[%s178 + $0xea0] sm:$0xff]
        %v675 = vld [vmem:[%s178 + $0xea8] sm:$0xff]
        %v676 = vld [vmem:[%s178 + $0xeb0] sm:$0xff]
        %v677 = vld [vmem:[%s178 + $0xeb8] sm:$0xff]
        %v678 = vld [vmem:[%s178 + $0xec0] sm:$0xff]
        %v679 = vld [vmem:[%s178 + $0xec8] sm:$0xff]
        %v680 = vld [vmem:[%s178 + $0xed0] sm:$0xff]
        %v681 = vld [vmem:[%s178 + $0xed8] sm:$0xff]
        %v682 = vld [vmem:[%s178 + $0xee0] sm:$0xff]
        %v683 = vld [vmem:[%s178 + $0xee8] sm:$0xff]
        %v684 = vld [vmem:[%s178 + $0xef0] sm:$0xff]
        %v685 = vld [vmem:[%s178 + $0xef8] sm:$0xff]
        %v686 = vld [vmem:[%s178 + $0xf00] sm:$0xff]
        %v687 = vld [vmem:[%s178 + $0xf08] sm:$0xff]
        %v688 = vld [vmem:[%s178 + $0xf10] sm:$0xff]
        %v689 = vld [vmem:[%s178 + $0xf18] sm:$0xff]
        %v690 = vld [vmem:[%s178 + $0xf20] sm:$0xff]
        %v691 = vld [vmem:[%s178 + $0xf28] sm:$0xff]
        %v692 = vld [vmem:[%s178 + $0xf30] sm:$0xff]
        %v693 = vld [vmem:[%s178 + $0xf38] sm:$0xff]
        %v694 = vld [vmem:[%s178 + $0xf40] sm:$0xff]
        %v695 = vld [vmem:[%s178 + $0xf48] sm:$0xff]
        %v696 = vld [vmem:[%s178 + $0xf50] sm:$0xff]
        %v697 = vld [vmem:[%s178 + $0xf58] sm:$0xff]
        %v698 = vld [vmem:[%s178 + $0xf60] sm:$0xff]
        %v699 = vld [vmem:[%s178 + $0xf68] sm:$0xff]
        %v700 = vld [vmem:[%s178 + $0xf70] sm:$0xff]
        %v701 = vld [vmem:[%s178 + $0xf78] sm:$0xff]
        %v702 = vld [vmem:[%s178 + $0xf80] sm:$0xff]
        %v703 = vld [vmem:[%s178 + $0xf88] sm:$0xff]
        %v704 = vld [vmem:[%s178 + $0xf90] sm:$0xff]
        %v705 = vld [vmem:[%s178 + $0xf98] sm:$0xff]
        %v706 = vld [vmem:[%s178 + $0xfa0] sm:$0xff]
        %v707 = vld [vmem:[%s178 + $0xfa8] sm:$0xff]
        %v708 = vld [vmem:[%s178 + $0xfb0] sm:$0xff]
        %v709 = vld [vmem:[%s178 + $0xfb8] sm:$0xff]
        %v710 = vld [vmem:[%s178 + $0xfc0] sm:$0xff]
        %v711 = vld [vmem:[%s178 + $0xfc8] sm:$0xff]
        %v712 = vld [vmem:[%s178 + $0xfd0] sm:$0xff]
        %v713 = vld [vmem:[%s178 + $0xfd8] sm:$0xff]
        %v714 = vld [vmem:[%s178 + $0xfe0] sm:$0xff]
        %v715 = vld [vmem:[%s178 + $0xfe8] sm:$0xff]
        %v716 = vld [vmem:[%s178 + $0xff0] sm:$0xff]
        %v717 = vld [vmem:[%s178 + $0xff8] sm:$0xff]
        %718 = vrot.lane.b32.xlu0 %v206, 64
        %v719 = vpop.permute.xlu0 %718
        %720 = vrot.lane.b32.xlu0 %v207, 64
        %v721 = vpop.permute.xlu0 %720
        %722 = vrot.lane.b32.xlu0 %v208, 64
        %v723 = vpop.permute.xlu0 %722
        %724 = vrot.lane.b32.xlu0 %v209, 64
        %v725 = vpop.permute.xlu0 %724
        %726 = vrot.lane.b32.xlu0 %v210, 64
        %v727 = vpop.permute.xlu0 %726
        %728 = vrot.lane.b32.xlu0 %v211, 64
        %v729 = vpop.permute.xlu0 %728
        %730 = vrot.lane.b32.xlu0 %v212, 64
        %v731 = vpop.permute.xlu0 %730
        %732 = vrot.lane.b32.xlu0 %v213, 64
        %v733 = vpop.permute.xlu0 %732
        %734 = vrot.lane.b32.xlu0 %v214, 64
        %v735 = vpop.permute.xlu0 %734
        %736 = vrot.lane.b32.xlu0 %v215, 64
        %v737 = vpop.permute.xlu0 %736
        %738 = vrot.lane.b32.xlu0 %v216, 64
        %v739 = vpop.permute.xlu0 %738
        %740 = vrot.lane.b32.xlu0 %v217, 64
        %v741 = vpop.permute.xlu0 %740
        %742 = vrot.lane.b32.xlu0 %v218, 64
        %v743 = vpop.permute.xlu0 %742
        %744 = vrot.lane.b32.xlu0 %v219, 64
        %v745 = vpop.permute.xlu0 %744
        %746 = vrot.lane.b32.xlu0 %v220, 64
        %v747 = vpop.permute.xlu0 %746
        %748 = vrot.lane.b32.xlu0 %v221, 64
        %v749 = vpop.permute.xlu0 %748
        %750 = vrot.lane.b32.xlu0 %v222, 64
        %v751 = vpop.permute.xlu0 %750
        %752 = vrot.lane.b32.xlu0 %v223, 64
        %v753 = vpop.permute.xlu0 %752
        %754 = vrot.lane.b32.xlu0 %v224, 64
        %v755 = vpop.permute.xlu0 %754
        %756 = vrot.lane.b32.xlu0 %v225, 64
        %v757 = vpop.permute.xlu0 %756
        %758 = vrot.lane.b32.xlu0 %v226, 64
        %v759 = vpop.permute.xlu0 %758
        %760 = vrot.lane.b32.xlu0 %v227, 64
        %v761 = vpop.permute.xlu0 %760
        %762 = vrot.lane.b32.xlu0 %v228, 64
        %v763 = vpop.permute.xlu0 %762
        %764 = vrot.lane.b32.xlu0 %v229, 64
        %v765 = vpop.permute.xlu0 %764
        %766 = vrot.lane.b32.xlu0 %v230, 64
        %v767 = vpop.permute.xlu0 %766
        %768 = vrot.lane.b32.xlu0 %v231, 64
        %v769 = vpop.permute.xlu0 %768
        %770 = vrot.lane.b32.xlu0 %v232, 64
        %v771 = vpop.permute.xlu0 %770
        %772 = vrot.lane.b32.xlu0 %v233, 64
        %v773 = vpop.permute.xlu0 %772
        %774 = vrot.lane.b32.xlu0 %v234, 64
        %v775 = vpop.permute.xlu0 %774
        %776 = vrot.lane.b32.xlu0 %v235, 64
        %v777 = vpop.permute.xlu0 %776
        %778 = vrot.lane.b32.xlu0 %v236, 64
        %v779 = vpop.permute.xlu0 %778
        %780 = vrot.lane.b32.xlu0 %v237, 64
        %v781 = vpop.permute.xlu0 %780
        %782 = vrot.lane.b32.xlu0 %v238, 64
        %v783 = vpop.permute.xlu0 %782
        %784 = vrot.lane.b32.xlu0 %v239, 64
        %v785 = vpop.permute.xlu0 %784
        %786 = vrot.lane.b32.xlu0 %v240, 64
        %v787 = vpop.permute.xlu0 %786
        %788 = vrot.lane.b32.xlu0 %v241, 64
        %v789 = vpop.permute.xlu0 %788
        %790 = vrot.lane.b32.xlu0 %v242, 64
        %v791 = vpop.permute.xlu0 %790
        %792 = vrot.lane.b32.xlu0 %v243, 64
        %v793 = vpop.permute.xlu0 %792
        %794 = vrot.lane.b32.xlu0 %v244, 64
        %v795 = vpop.permute.xlu0 %794
        %796 = vrot.lane.b32.xlu0 %v245, 64
        %v797 = vpop.permute.xlu0 %796
        %798 = vrot.lane.b32.xlu0 %v246, 64
        %v799 = vpop.permute.xlu0 %798
        %800 = vrot.lane.b32.xlu0 %v247, 64
        %v801 = vpop.permute.xlu0 %800
        %802 = vrot.lane.b32.xlu0 %v248, 64
        %v803 = vpop.permute.xlu0 %802
        %804 = vrot.lane.b32.xlu0 %v249, 64
        %v805 = vpop.permute.xlu0 %804
        %806 = vrot.lane.b32.xlu0 %v250, 64
        %v807 = vpop.permute.xlu0 %806
        %808 = vrot.lane.b32.xlu0 %v251, 64
        %v809 = vpop.permute.xlu0 %808
        %810 = vrot.lane.b32.xlu0 %v252, 64
        %v811 = vpop.permute.xlu0 %810
        %812 = vrot.lane.b32.xlu0 %v253, 64
        %v813 = vpop.permute.xlu0 %812
        %814 = vrot.lane.b32.xlu0 %v254, 64
        %v815 = vpop.permute.xlu0 %814
        %816 = vrot.lane.b32.xlu0 %v255, 64
        %v817 = vpop.permute.xlu0 %816
        %818 = vrot.lane.b32.xlu0 %v256, 64
        %v819 = vpop.permute.xlu0 %818
        %820 = vrot.lane.b32.xlu0 %v257, 64
        %v821 = vpop.permute.xlu0 %820
        %822 = vrot.lane.b32.xlu0 %v258, 64
        %v823 = vpop.permute.xlu0 %822
        %824 = vrot.lane.b32.xlu0 %v259, 64
        %v825 = vpop.permute.xlu0 %824
        %826 = vrot.lane.b32.xlu0 %v260, 64
        %v827 = vpop.permute.xlu0 %826
        %828 = vrot.lane.b32.xlu0 %v261, 64
        %v829 = vpop.permute.xlu0 %828
        %830 = vrot.lane.b32.xlu0 %v262, 64
        %v831 = vpop.permute.xlu0 %830
        %832 = vrot.lane.b32.xlu0 %v263, 64
        %v833 = vpop.permute.xlu0 %832
        %834 = vrot.lane.b32.xlu0 %v264, 64
        %v835 = vpop.permute.xlu0 %834
        %836 = vrot.lane.b32.xlu0 %v265, 64
        %v837 = vpop.permute.xlu0 %836
        %838 = vrot.lane.b32.xlu0 %v266, 64
        %v839 = vpop.permute.xlu0 %838
        %840 = vrot.lane.b32.xlu0 %v267, 64
        %v841 = vpop.permute.xlu0 %840
        %842 = vrot.lane.b32.xlu0 %v268, 64
        %v843 = vpop.permute.xlu0 %842
        %844 = vrot.lane.b32.xlu0 %v269, 64
        %v845 = vpop.permute.xlu0 %844
        %846 = vrot.lane.b32.xlu0 %v270, 64
        %v847 = vpop.permute.xlu0 %846
        %848 = vrot.lane.b32.xlu0 %v271, 64
        %v849 = vpop.permute.xlu0 %848
        %850 = vrot.lane.b32.xlu0 %v272, 64
        %v851 = vpop.permute.xlu0 %850
        %852 = vrot.lane.b32.xlu0 %v273, 64
        %v853 = vpop.permute.xlu0 %852
        %854 = vrot.lane.b32.xlu0 %v274, 64
        %v855 = vpop.permute.xlu0 %854
        %856 = vrot.lane.b32.xlu0 %v275, 64
        %v857 = vpop.permute.xlu0 %856
        %858 = vrot.lane.b32.xlu0 %v276, 64
        %v859 = vpop.permute.xlu0 %858
        %860 = vrot.lane.b32.xlu0 %v277, 64
        %v861 = vpop.permute.xlu0 %860
        %862 = vrot.lane.b32.xlu0 %v278, 64
        %v863 = vpop.permute.xlu0 %862
        %864 = vrot.lane.b32.xlu0 %v279, 64
        %v865 = vpop.permute.xlu0 %864
        %866 = vrot.lane.b32.xlu0 %v280, 64
        %v867 = vpop.permute.xlu0 %866
        %868 = vrot.lane.b32.xlu0 %v281, 64
        %v869 = vpop.permute.xlu0 %868
        %870 = vrot.lane.b32.xlu0 %v282, 64
        %v871 = vpop.permute.xlu0 %870
        %872 = vrot.lane.b32.xlu0 %v283, 64
        %v873 = vpop.permute.xlu0 %872
        %874 = vrot.lane.b32.xlu0 %v284, 64
        %v875 = vpop.permute.xlu0 %874
        %876 = vrot.lane.b32.xlu0 %v285, 64
        %v877 = vpop.permute.xlu0 %876
        %878 = vrot.lane.b32.xlu0 %v286, 64
        %v879 = vpop.permute.xlu0 %878
        %880 = vrot.lane.b32.xlu0 %v287, 64
        %v881 = vpop.permute.xlu0 %880
        %882 = vrot.lane.b32.xlu0 %v288, 64
        %v883 = vpop.permute.xlu0 %882
        %884 = vrot.lane.b32.xlu0 %v289, 64
        %v885 = vpop.permute.xlu0 %884
        %886 = vrot.lane.b32.xlu0 %v290, 64
        %v887 = vpop.permute.xlu0 %886
        %888 = vrot.lane.b32.xlu0 %v291, 64
        %v889 = vpop.permute.xlu0 %888
        %890 = vrot.lane.b32.xlu0 %v292, 64
        %v891 = vpop.permute.xlu0 %890
        %892 = vrot.lane.b32.xlu0 %v293, 64
        %v893 = vpop.permute.xlu0 %892
        %894 = vrot.lane.b32.xlu0 %v294, 64
        %v895 = vpop.permute.xlu0 %894
        %896 = vrot.lane.b32.xlu0 %v295, 64
        %v897 = vpop.permute.xlu0 %896
        %898 = vrot.lane.b32.xlu0 %v296, 64
        %v899 = vpop.permute.xlu0 %898
        %900 = vrot.lane.b32.xlu0 %v297, 64
        %v901 = vpop.permute.xlu0 %900
        %902 = vrot.lane.b32.xlu0 %v298, 64
        %v903 = vpop.permute.xlu0 %902
        %904 = vrot.lane.b32.xlu0 %v299, 64
        %v905 = vpop.permute.xlu0 %904
        %906 = vrot.lane.b32.xlu0 %v300, 64
        %v907 = vpop.permute.xlu0 %906
        %908 = vrot.lane.b32.xlu0 %v301, 64
        %v909 = vpop.permute.xlu0 %908
        %910 = vrot.lane.b32.xlu0 %v302, 64
        %v911 = vpop.permute.xlu0 %910
        %912 = vrot.lane.b32.xlu0 %v303, 64
        %v913 = vpop.permute.xlu0 %912
        %914 = vrot.lane.b32.xlu0 %v304, 64
        %v915 = vpop.permute.xlu0 %914
        %916 = vrot.lane.b32.xlu0 %v305, 64
        %v917 = vpop.permute.xlu0 %916
        %918 = vrot.lane.b32.xlu0 %v306, 64
        %v919 = vpop.permute.xlu0 %918
        %920 = vrot.lane.b32.xlu0 %v307, 64
        %v921 = vpop.permute.xlu0 %920
        %922 = vrot.lane.b32.xlu0 %v308, 64
        %v923 = vpop.permute.xlu0 %922
        %924 = vrot.lane.b32.xlu0 %v309, 64
        %v925 = vpop.permute.xlu0 %924
        %926 = vrot.lane.b32.xlu0 %v310, 64
        %v927 = vpop.permute.xlu0 %926
        %928 = vrot.lane.b32.xlu0 %v311, 64
        %v929 = vpop.permute.xlu0 %928
        %930 = vrot.lane.b32.xlu0 %v312, 64
        %v931 = vpop.permute.xlu0 %930
        %932 = vrot.lane.b32.xlu0 %v313, 64
        %v933 = vpop.permute.xlu0 %932
        %934 = vrot.lane.b32.xlu0 %v314, 64
        %v935 = vpop.permute.xlu0 %934
        %936 = vrot.lane.b32.xlu0 %v315, 64
        %v937 = vpop.permute.xlu0 %936
        %938 = vrot.lane.b32.xlu0 %v316, 64
        %v939 = vpop.permute.xlu0 %938
        %940 = vrot.lane.b32.xlu0 %v317, 64
        %v941 = vpop.permute.xlu0 %940
        %942 = vrot.lane.b32.xlu0 %v318, 64
        %v943 = vpop.permute.xlu0 %942
        %944 = vrot.lane.b32.xlu0 %v319, 64
        %v945 = vpop.permute.xlu0 %944
        %946 = vrot.lane.b32.xlu0 %v320, 64
        %v947 = vpop.permute.xlu0 %946
        %948 = vrot.lane.b32.xlu0 %v321, 64
        %v949 = vpop.permute.xlu0 %948
        %950 = vrot.lane.b32.xlu0 %v322, 64
        %v951 = vpop.permute.xlu0 %950
        %952 = vrot.lane.b32.xlu0 %v323, 64
        %v953 = vpop.permute.xlu0 %952
        %954 = vrot.lane.b32.xlu0 %v324, 64
        %v955 = vpop.permute.xlu0 %954
        %956 = vrot.lane.b32.xlu0 %v325, 64
        %v957 = vpop.permute.xlu0 %956
        %958 = vrot.lane.b32.xlu0 %v326, 64
        %v959 = vpop.permute.xlu0 %958
        %960 = vrot.lane.b32.xlu0 %v327, 64
        %v961 = vpop.permute.xlu0 %960
        %962 = vrot.lane.b32.xlu0 %v328, 64
        %v963 = vpop.permute.xlu0 %962
        %964 = vrot.lane.b32.xlu0 %v329, 64
        %v965 = vpop.permute.xlu0 %964
        %966 = vrot.lane.b32.xlu0 %v330, 64
        %v967 = vpop.permute.xlu0 %966
        %968 = vrot.lane.b32.xlu0 %v331, 64
        %v969 = vpop.permute.xlu0 %968
        %970 = vrot.lane.b32.xlu0 %v332, 64
        %v971 = vpop.permute.xlu0 %970
        %972 = vrot.lane.b32.xlu0 %v333, 64
        %v973 = vpop.permute.xlu0 %972
        %974 = vrot.lane.b32.xlu0 %v334, 64
        %v975 = vpop.permute.xlu0 %974
        %976 = vrot.lane.b32.xlu0 %v335, 64
        %v977 = vpop.permute.xlu0 %976
        %978 = vrot.lane.b32.xlu0 %v336, 64
        %v979 = vpop.permute.xlu0 %978
        %980 = vrot.lane.b32.xlu0 %v337, 64
        %v981 = vpop.permute.xlu0 %980
        %982 = vrot.lane.b32.xlu0 %v338, 64
        %v983 = vpop.permute.xlu0 %982
        %984 = vrot.lane.b32.xlu0 %v339, 64
        %v985 = vpop.permute.xlu0 %984
        %986 = vrot.lane.b32.xlu0 %v340, 64
        %v987 = vpop.permute.xlu0 %986
        %988 = vrot.lane.b32.xlu0 %v341, 64
        %v989 = vpop.permute.xlu0 %988
        %990 = vrot.lane.b32.xlu0 %v342, 64
        %v991 = vpop.permute.xlu0 %990
        %992 = vrot.lane.b32.xlu0 %v343, 64
        %v993 = vpop.permute.xlu0 %992
        %994 = vrot.lane.b32.xlu0 %v344, 64
        %v995 = vpop.permute.xlu0 %994
        %996 = vrot.lane.b32.xlu0 %v345, 64
        %v997 = vpop.permute.xlu0 %996
        %998 = vrot.lane.b32.xlu0 %v346, 64
        %v999 = vpop.permute.xlu0 %998
        %1000 = vrot.lane.b32.xlu0 %v347, 64
        %v1001 = vpop.permute.xlu0 %1000
        %1002 = vrot.lane.b32.xlu0 %v348, 64
        %v1003 = vpop.permute.xlu0 %1002
        %1004 = vrot.lane.b32.xlu0 %v349, 64
        %v1005 = vpop.permute.xlu0 %1004
        %1006 = vrot.lane.b32.xlu0 %v350, 64
        %v1007 = vpop.permute.xlu0 %1006
        %1008 = vrot.lane.b32.xlu0 %v351, 64
        %v1009 = vpop.permute.xlu0 %1008
        %1010 = vrot.lane.b32.xlu0 %v352, 64
        %v1011 = vpop.permute.xlu0 %1010
        %1012 = vrot.lane.b32.xlu0 %v353, 64
        %v1013 = vpop.permute.xlu0 %1012
        %1014 = vrot.lane.b32.xlu0 %v354, 64
        %v1015 = vpop.permute.xlu0 %1014
        %1016 = vrot.lane.b32.xlu0 %v355, 64
        %v1017 = vpop.permute.xlu0 %1016
        %1018 = vrot.lane.b32.xlu0 %v356, 64
        %v1019 = vpop.permute.xlu0 %1018
        %1020 = vrot.lane.b32.xlu0 %v357, 64
        %v1021 = vpop.permute.xlu0 %1020
        %1022 = vrot.lane.b32.xlu0 %v358, 64
        %v1023 = vpop.permute.xlu0 %1022
        %1024 = vrot.lane.b32.xlu0 %v359, 64
        %v1025 = vpop.permute.xlu0 %1024
        %1026 = vrot.lane.b32.xlu0 %v360, 64
        %v1027 = vpop.permute.xlu0 %1026
        %1028 = vrot.lane.b32.xlu0 %v361, 64
        %v1029 = vpop.permute.xlu0 %1028
        %1030 = vrot.lane.b32.xlu0 %v362, 64
        %v1031 = vpop.permute.xlu0 %1030
        %1032 = vrot.lane.b32.xlu0 %v363, 64
        %v1033 = vpop.permute.xlu0 %1032
        %1034 = vrot.lane.b32.xlu0 %v364, 64
        %v1035 = vpop.permute.xlu0 %1034
        %1036 = vrot.lane.b32.xlu0 %v365, 64
        %v1037 = vpop.permute.xlu0 %1036
        %1038 = vrot.lane.b32.xlu0 %v366, 64
        %v1039 = vpop.permute.xlu0 %1038
        %1040 = vrot.lane.b32.xlu0 %v367, 64
        %v1041 = vpop.permute.xlu0 %1040
        %1042 = vrot.lane.b32.xlu0 %v368, 64
        %v1043 = vpop.permute.xlu0 %1042
        %1044 = vrot.lane.b32.xlu0 %v369, 64
        %v1045 = vpop.permute.xlu0 %1044
        %1046 = vrot.lane.b32.xlu0 %v370, 64
        %v1047 = vpop.permute.xlu0 %1046
        %1048 = vrot.lane.b32.xlu0 %v371, 64
        %v1049 = vpop.permute.xlu0 %1048
        %1050 = vrot.lane.b32.xlu0 %v372, 64
        %v1051 = vpop.permute.xlu0 %1050
        %1052 = vrot.lane.b32.xlu0 %v373, 64
        %v1053 = vpop.permute.xlu0 %1052
        %1054 = vrot.lane.b32.xlu0 %v374, 64
        %v1055 = vpop.permute.xlu0 %1054
        %1056 = vrot.lane.b32.xlu0 %v375, 64
        %v1057 = vpop.permute.xlu0 %1056
        %1058 = vrot.lane.b32.xlu0 %v376, 64
        %v1059 = vpop.permute.xlu0 %1058
        %1060 = vrot.lane.b32.xlu0 %v377, 64
        %v1061 = vpop.permute.xlu0 %1060
        %1062 = vrot.lane.b32.xlu0 %v378, 64
        %v1063 = vpop.permute.xlu0 %1062
        %1064 = vrot.lane.b32.xlu0 %v379, 64
        %v1065 = vpop.permute.xlu0 %1064
        %1066 = vrot.lane.b32.xlu0 %v380, 64
        %v1067 = vpop.permute.xlu0 %1066
        %1068 = vrot.lane.b32.xlu0 %v381, 64
        %v1069 = vpop.permute.xlu0 %1068
        %1070 = vrot.lane.b32.xlu0 %v382, 64
        %v1071 = vpop.permute.xlu0 %1070
        %1072 = vrot.lane.b32.xlu0 %v383, 64
        %v1073 = vpop.permute.xlu0 %1072
        %1074 = vrot.lane.b32.xlu0 %v384, 64
        %v1075 = vpop.permute.xlu0 %1074
        %1076 = vrot.lane.b32.xlu0 %v385, 64
        %v1077 = vpop.permute.xlu0 %1076
        %1078 = vrot.lane.b32.xlu0 %v386, 64
        %v1079 = vpop.permute.xlu0 %1078
        %1080 = vrot.lane.b32.xlu0 %v387, 64
        %v1081 = vpop.permute.xlu0 %1080
        %1082 = vrot.lane.b32.xlu0 %v388, 64
        %v1083 = vpop.permute.xlu0 %1082
        %1084 = vrot.lane.b32.xlu0 %v389, 64
        %v1085 = vpop.permute.xlu0 %1084
        %1086 = vrot.lane.b32.xlu0 %v390, 64
        %v1087 = vpop.permute.xlu0 %1086
        %1088 = vrot.lane.b32.xlu0 %v391, 64
        %v1089 = vpop.permute.xlu0 %1088
        %1090 = vrot.lane.b32.xlu0 %v392, 64
        %v1091 = vpop.permute.xlu0 %1090
        %1092 = vrot.lane.b32.xlu0 %v393, 64
        %v1093 = vpop.permute.xlu0 %1092
        %1094 = vrot.lane.b32.xlu0 %v394, 64
        %v1095 = vpop.permute.xlu0 %1094
        %1096 = vrot.lane.b32.xlu0 %v395, 64
        %v1097 = vpop.permute.xlu0 %1096
        %1098 = vrot.lane.b32.xlu0 %v396, 64
        %v1099 = vpop.permute.xlu0 %1098
        %1100 = vrot.lane.b32.xlu0 %v397, 64
        %v1101 = vpop.permute.xlu0 %1100
        %1102 = vrot.lane.b32.xlu0 %v398, 64
        %v1103 = vpop.permute.xlu0 %1102
        %1104 = vrot.lane.b32.xlu0 %v399, 64
        %v1105 = vpop.permute.xlu0 %1104
        %1106 = vrot.lane.b32.xlu0 %v400, 64
        %v1107 = vpop.permute.xlu0 %1106
        %1108 = vrot.lane.b32.xlu0 %v401, 64
        %v1109 = vpop.permute.xlu0 %1108
        %1110 = vrot.lane.b32.xlu0 %v402, 64
        %v1111 = vpop.permute.xlu0 %1110
        %1112 = vrot.lane.b32.xlu0 %v403, 64
        %v1113 = vpop.permute.xlu0 %1112
        %1114 = vrot.lane.b32.xlu0 %v404, 64
        %v1115 = vpop.permute.xlu0 %1114
        %1116 = vrot.lane.b32.xlu0 %v405, 64
        %v1117 = vpop.permute.xlu0 %1116
        %1118 = vrot.lane.b32.xlu0 %v406, 64
        %v1119 = vpop.permute.xlu0 %1118
        %1120 = vrot.lane.b32.xlu0 %v407, 64
        %v1121 = vpop.permute.xlu0 %1120
        %1122 = vrot.lane.b32.xlu0 %v408, 64
        %v1123 = vpop.permute.xlu0 %1122
        %1124 = vrot.lane.b32.xlu0 %v409, 64
        %v1125 = vpop.permute.xlu0 %1124
        %1126 = vrot.lane.b32.xlu0 %v410, 64
        %v1127 = vpop.permute.xlu0 %1126
        %1128 = vrot.lane.b32.xlu0 %v411, 64
        %v1129 = vpop.permute.xlu0 %1128
        %1130 = vrot.lane.b32.xlu0 %v412, 64
        %v1131 = vpop.permute.xlu0 %1130
        %1132 = vrot.lane.b32.xlu0 %v413, 64
        %v1133 = vpop.permute.xlu0 %1132
        %1134 = vrot.lane.b32.xlu0 %v414, 64
        %v1135 = vpop.permute.xlu0 %1134
        %1136 = vrot.lane.b32.xlu0 %v415, 64
        %v1137 = vpop.permute.xlu0 %1136
        %1138 = vrot.lane.b32.xlu0 %v416, 64
        %v1139 = vpop.permute.xlu0 %1138
        %1140 = vrot.lane.b32.xlu0 %v417, 64
        %v1141 = vpop.permute.xlu0 %1140
        %1142 = vrot.lane.b32.xlu0 %v418, 64
        %v1143 = vpop.permute.xlu0 %1142
        %1144 = vrot.lane.b32.xlu0 %v419, 64
        %v1145 = vpop.permute.xlu0 %1144
        %1146 = vrot.lane.b32.xlu0 %v420, 64
        %v1147 = vpop.permute.xlu0 %1146
        %1148 = vrot.lane.b32.xlu0 %v421, 64
        %v1149 = vpop.permute.xlu0 %1148
        %1150 = vrot.lane.b32.xlu0 %v422, 64
        %v1151 = vpop.permute.xlu0 %1150
        %1152 = vrot.lane.b32.xlu0 %v423, 64
        %v1153 = vpop.permute.xlu0 %1152
        %1154 = vrot.lane.b32.xlu0 %v424, 64
        %v1155 = vpop.permute.xlu0 %1154
        %1156 = vrot.lane.b32.xlu0 %v425, 64
        %v1157 = vpop.permute.xlu0 %1156
        %1158 = vrot.lane.b32.xlu0 %v426, 64
        %v1159 = vpop.permute.xlu0 %1158
        %1160 = vrot.lane.b32.xlu0 %v427, 64
        %v1161 = vpop.permute.xlu0 %1160
        %1162 = vrot.lane.b32.xlu0 %v428, 64
        %v1163 = vpop.permute.xlu0 %1162
        %1164 = vrot.lane.b32.xlu0 %v429, 64
        %v1165 = vpop.permute.xlu0 %1164
        %1166 = vrot.lane.b32.xlu0 %v430, 64
        %v1167 = vpop.permute.xlu0 %1166
        %1168 = vrot.lane.b32.xlu0 %v431, 64
        %v1169 = vpop.permute.xlu0 %1168
        %1170 = vrot.lane.b32.xlu0 %v432, 64
        %v1171 = vpop.permute.xlu0 %1170
        %1172 = vrot.lane.b32.xlu0 %v433, 64
        %v1173 = vpop.permute.xlu0 %1172
        %1174 = vrot.lane.b32.xlu0 %v434, 64
        %v1175 = vpop.permute.xlu0 %1174
        %1176 = vrot.lane.b32.xlu0 %v435, 64
        %v1177 = vpop.permute.xlu0 %1176
        %1178 = vrot.lane.b32.xlu0 %v436, 64
        %v1179 = vpop.permute.xlu0 %1178
        %1180 = vrot.lane.b32.xlu0 %v437, 64
        %v1181 = vpop.permute.xlu0 %1180
        %1182 = vrot.lane.b32.xlu0 %v438, 64
        %v1183 = vpop.permute.xlu0 %1182
        %1184 = vrot.lane.b32.xlu0 %v439, 64
        %v1185 = vpop.permute.xlu0 %1184
        %1186 = vrot.lane.b32.xlu0 %v440, 64
        %v1187 = vpop.permute.xlu0 %1186
        %1188 = vrot.lane.b32.xlu0 %v441, 64
        %v1189 = vpop.permute.xlu0 %1188
        %1190 = vrot.lane.b32.xlu0 %v442, 64
        %v1191 = vpop.permute.xlu0 %1190
        %1192 = vrot.lane.b32.xlu0 %v443, 64
        %v1193 = vpop.permute.xlu0 %1192
        %1194 = vrot.lane.b32.xlu0 %v444, 64
        %v1195 = vpop.permute.xlu0 %1194
        %1196 = vrot.lane.b32.xlu0 %v445, 64
        %v1197 = vpop.permute.xlu0 %1196
        %1198 = vrot.lane.b32.xlu0 %v446, 64
        %v1199 = vpop.permute.xlu0 %1198
        %1200 = vrot.lane.b32.xlu0 %v447, 64
        %v1201 = vpop.permute.xlu0 %1200
        %1202 = vrot.lane.b32.xlu0 %v448, 64
        %v1203 = vpop.permute.xlu0 %1202
        %1204 = vrot.lane.b32.xlu0 %v449, 64
        %v1205 = vpop.permute.xlu0 %1204
        %1206 = vrot.lane.b32.xlu0 %v450, 64
        %v1207 = vpop.permute.xlu0 %1206
        %1208 = vrot.lane.b32.xlu0 %v451, 64
        %v1209 = vpop.permute.xlu0 %1208
        %1210 = vrot.lane.b32.xlu0 %v452, 64
        %v1211 = vpop.permute.xlu0 %1210
        %1212 = vrot.lane.b32.xlu0 %v453, 64
        %v1213 = vpop.permute.xlu0 %1212
        %1214 = vrot.lane.b32.xlu0 %v454, 64
        %v1215 = vpop.permute.xlu0 %1214
        %1216 = vrot.lane.b32.xlu0 %v455, 64
        %v1217 = vpop.permute.xlu0 %1216
        %1218 = vrot.lane.b32.xlu0 %v456, 64
        %v1219 = vpop.permute.xlu0 %1218
        %1220 = vrot.lane.b32.xlu0 %v457, 64
        %v1221 = vpop.permute.xlu0 %1220
        %1222 = vrot.lane.b32.xlu0 %v458, 64
        %v1223 = vpop.permute.xlu0 %1222
        %1224 = vrot.lane.b32.xlu0 %v459, 64
        %v1225 = vpop.permute.xlu0 %1224
        %1226 = vrot.lane.b32.xlu0 %v460, 64
        %v1227 = vpop.permute.xlu0 %1226
        %1228 = vrot.lane.b32.xlu0 %v461, 64
        %v1229 = vpop.permute.xlu0 %1228
        %1230 = vrot.lane.b32.xlu0 %v462, 64
        %v1231 = vpop.permute.xlu0 %1230
        %1232 = vrot.lane.b32.xlu0 %v463, 64
        %v1233 = vpop.permute.xlu0 %1232
        %1234 = vrot.lane.b32.xlu0 %v464, 64
        %v1235 = vpop.permute.xlu0 %1234
        %1236 = vrot.lane.b32.xlu0 %v465, 64
        %v1237 = vpop.permute.xlu0 %1236
        %1238 = vrot.lane.b32.xlu0 %v466, 64
        %v1239 = vpop.permute.xlu0 %1238
        %1240 = vrot.lane.b32.xlu0 %v467, 64
        %v1241 = vpop.permute.xlu0 %1240
        %1242 = vrot.lane.b32.xlu0 %v468, 64
        %v1243 = vpop.permute.xlu0 %1242
        %1244 = vrot.lane.b32.xlu0 %v469, 64
        %v1245 = vpop.permute.xlu0 %1244
        %1246 = vrot.lane.b32.xlu0 %v470, 64
        %v1247 = vpop.permute.xlu0 %1246
        %1248 = vrot.lane.b32.xlu0 %v471, 64
        %v1249 = vpop.permute.xlu0 %1248
        %1250 = vrot.lane.b32.xlu0 %v472, 64
        %v1251 = vpop.permute.xlu0 %1250
        %1252 = vrot.lane.b32.xlu0 %v473, 64
        %v1253 = vpop.permute.xlu0 %1252
        %1254 = vrot.lane.b32.xlu0 %v474, 64
        %v1255 = vpop.permute.xlu0 %1254
        %1256 = vrot.lane.b32.xlu0 %v475, 64
        %v1257 = vpop.permute.xlu0 %1256
        %1258 = vrot.lane.b32.xlu0 %v476, 64
        %v1259 = vpop.permute.xlu0 %1258
        %1260 = vrot.lane.b32.xlu0 %v477, 64
        %v1261 = vpop.permute.xlu0 %1260
        %1262 = vrot.lane.b32.xlu0 %v478, 64
        %v1263 = vpop.permute.xlu0 %1262
        %1264 = vrot.lane.b32.xlu0 %v479, 64
        %v1265 = vpop.permute.xlu0 %1264
        %1266 = vrot.lane.b32.xlu0 %v480, 64
        %v1267 = vpop.permute.xlu0 %1266
        %1268 = vrot.lane.b32.xlu0 %v481, 64
        %v1269 = vpop.permute.xlu0 %1268
        %1270 = vrot.lane.b32.xlu0 %v482, 64
        %v1271 = vpop.permute.xlu0 %1270
        %1272 = vrot.lane.b32.xlu0 %v483, 64
        %v1273 = vpop.permute.xlu0 %1272
        %1274 = vrot.lane.b32.xlu0 %v484, 64
        %v1275 = vpop.permute.xlu0 %1274
        %1276 = vrot.lane.b32.xlu0 %v485, 64
        %v1277 = vpop.permute.xlu0 %1276
        %1278 = vrot.lane.b32.xlu0 %v486, 64
        %v1279 = vpop.permute.xlu0 %1278
        %1280 = vrot.lane.b32.xlu0 %v487, 64
        %v1281 = vpop.permute.xlu0 %1280
        %1282 = vrot.lane.b32.xlu0 %v488, 64
        %v1283 = vpop.permute.xlu0 %1282
        %1284 = vrot.lane.b32.xlu0 %v489, 64
        %v1285 = vpop.permute.xlu0 %1284
        %1286 = vrot.lane.b32.xlu0 %v490, 64
        %v1287 = vpop.permute.xlu0 %1286
        %1288 = vrot.lane.b32.xlu0 %v491, 64
        %v1289 = vpop.permute.xlu0 %1288
        %1290 = vrot.lane.b32.xlu0 %v492, 64
        %v1291 = vpop.permute.xlu0 %1290
        %1292 = vrot.lane.b32.xlu0 %v493, 64
        %v1293 = vpop.permute.xlu0 %1292
        %1294 = vrot.lane.b32.xlu0 %v494, 64
        %v1295 = vpop.permute.xlu0 %1294
        %1296 = vrot.lane.b32.xlu0 %v495, 64
        %v1297 = vpop.permute.xlu0 %1296
        %1298 = vrot.lane.b32.xlu0 %v496, 64
        %v1299 = vpop.permute.xlu0 %1298
        %1300 = vrot.lane.b32.xlu0 %v497, 64
        %v1301 = vpop.permute.xlu0 %1300
        %1302 = vrot.lane.b32.xlu0 %v498, 64
        %v1303 = vpop.permute.xlu0 %1302
        %1304 = vrot.lane.b32.xlu0 %v499, 64
        %v1305 = vpop.permute.xlu0 %1304
        %1306 = vrot.lane.b32.xlu0 %v500, 64
        %v1307 = vpop.permute.xlu0 %1306
        %1308 = vrot.lane.b32.xlu0 %v501, 64
        %v1309 = vpop.permute.xlu0 %1308
        %1310 = vrot.lane.b32.xlu0 %v502, 64
        %v1311 = vpop.permute.xlu0 %1310
        %1312 = vrot.lane.b32.xlu0 %v503, 64
        %v1313 = vpop.permute.xlu0 %1312
        %1314 = vrot.lane.b32.xlu0 %v504, 64
        %v1315 = vpop.permute.xlu0 %1314
        %1316 = vrot.lane.b32.xlu0 %v505, 64
        %v1317 = vpop.permute.xlu0 %1316
        %1318 = vrot.lane.b32.xlu0 %v506, 64
        %v1319 = vpop.permute.xlu0 %1318
        %1320 = vrot.lane.b32.xlu0 %v507, 64
        %v1321 = vpop.permute.xlu0 %1320
        %1322 = vrot.lane.b32.xlu0 %v508, 64
        %v1323 = vpop.permute.xlu0 %1322
        %1324 = vrot.lane.b32.xlu0 %v509, 64
        %v1325 = vpop.permute.xlu0 %1324
        %1326 = vrot.lane.b32.xlu0 %v510, 64
        %v1327 = vpop.permute.xlu0 %1326
        %1328 = vrot.lane.b32.xlu0 %v511, 64
        %v1329 = vpop.permute.xlu0 %1328
        %1330 = vrot.lane.b32.xlu0 %v512, 64
        %v1331 = vpop.permute.xlu0 %1330
        %1332 = vrot.lane.b32.xlu0 %v513, 64
        %v1333 = vpop.permute.xlu0 %1332
        %1334 = vrot.lane.b32.xlu0 %v514, 64
        %v1335 = vpop.permute.xlu0 %1334
        %1336 = vrot.lane.b32.xlu0 %v515, 64
        %v1337 = vpop.permute.xlu0 %1336
        %1338 = vrot.lane.b32.xlu0 %v516, 64
        %v1339 = vpop.permute.xlu0 %1338
        %1340 = vrot.lane.b32.xlu0 %v517, 64
        %v1341 = vpop.permute.xlu0 %1340
        %1342 = vrot.lane.b32.xlu0 %v518, 64
        %v1343 = vpop.permute.xlu0 %1342
        %1344 = vrot.lane.b32.xlu0 %v519, 64
        %v1345 = vpop.permute.xlu0 %1344
        %1346 = vrot.lane.b32.xlu0 %v520, 64
        %v1347 = vpop.permute.xlu0 %1346
        %1348 = vrot.lane.b32.xlu0 %v521, 64
        %v1349 = vpop.permute.xlu0 %1348
        %1350 = vrot.lane.b32.xlu0 %v522, 64
        %v1351 = vpop.permute.xlu0 %1350
        %1352 = vrot.lane.b32.xlu0 %v523, 64
        %v1353 = vpop.permute.xlu0 %1352
        %1354 = vrot.lane.b32.xlu0 %v524, 64
        %v1355 = vpop.permute.xlu0 %1354
        %1356 = vrot.lane.b32.xlu0 %v525, 64
        %v1357 = vpop.permute.xlu0 %1356
        %1358 = vrot.lane.b32.xlu0 %v526, 64
        %v1359 = vpop.permute.xlu0 %1358
        %1360 = vrot.lane.b32.xlu0 %v527, 64
        %v1361 = vpop.permute.xlu0 %1360
        %1362 = vrot.lane.b32.xlu0 %v528, 64
        %v1363 = vpop.permute.xlu0 %1362
        %1364 = vrot.lane.b32.xlu0 %v529, 64
        %v1365 = vpop.permute.xlu0 %1364
        %1366 = vrot.lane.b32.xlu0 %v530, 64
        %v1367 = vpop.permute.xlu0 %1366
        %1368 = vrot.lane.b32.xlu0 %v531, 64
        %v1369 = vpop.permute.xlu0 %1368
        %1370 = vrot.lane.b32.xlu0 %v532, 64
        %v1371 = vpop.permute.xlu0 %1370
        %1372 = vrot.lane.b32.xlu0 %v533, 64
        %v1373 = vpop.permute.xlu0 %1372
        %1374 = vrot.lane.b32.xlu0 %v534, 64
        %v1375 = vpop.permute.xlu0 %1374
        %1376 = vrot.lane.b32.xlu0 %v535, 64
        %v1377 = vpop.permute.xlu0 %1376
        %1378 = vrot.lane.b32.xlu0 %v536, 64
        %v1379 = vpop.permute.xlu0 %1378
        %1380 = vrot.lane.b32.xlu0 %v537, 64
        %v1381 = vpop.permute.xlu0 %1380
        %1382 = vrot.lane.b32.xlu0 %v538, 64
        %v1383 = vpop.permute.xlu0 %1382
        %1384 = vrot.lane.b32.xlu0 %v539, 64
        %v1385 = vpop.permute.xlu0 %1384
        %1386 = vrot.lane.b32.xlu0 %v540, 64
        %v1387 = vpop.permute.xlu0 %1386
        %1388 = vrot.lane.b32.xlu0 %v541, 64
        %v1389 = vpop.permute.xlu0 %1388
        %1390 = vrot.lane.b32.xlu0 %v542, 64
        %v1391 = vpop.permute.xlu0 %1390
        %1392 = vrot.lane.b32.xlu0 %v543, 64
        %v1393 = vpop.permute.xlu0 %1392
        %1394 = vrot.lane.b32.xlu0 %v544, 64
        %v1395 = vpop.permute.xlu0 %1394
        %1396 = vrot.lane.b32.xlu0 %v545, 64
        %v1397 = vpop.permute.xlu0 %1396
        %1398 = vrot.lane.b32.xlu0 %v546, 64
        %v1399 = vpop.permute.xlu0 %1398
        %1400 = vrot.lane.b32.xlu0 %v547, 64
        %v1401 = vpop.permute.xlu0 %1400
        %1402 = vrot.lane.b32.xlu0 %v548, 64
        %v1403 = vpop.permute.xlu0 %1402
        %1404 = vrot.lane.b32.xlu0 %v549, 64
        %v1405 = vpop.permute.xlu0 %1404
        %1406 = vrot.lane.b32.xlu0 %v550, 64
        %v1407 = vpop.permute.xlu0 %1406
        %1408 = vrot.lane.b32.xlu0 %v551, 64
        %v1409 = vpop.permute.xlu0 %1408
        %1410 = vrot.lane.b32.xlu0 %v552, 64
        %v1411 = vpop.permute.xlu0 %1410
        %1412 = vrot.lane.b32.xlu0 %v553, 64
        %v1413 = vpop.permute.xlu0 %1412
        %1414 = vrot.lane.b32.xlu0 %v554, 64
        %v1415 = vpop.permute.xlu0 %1414
        %1416 = vrot.lane.b32.xlu0 %v555, 64
        %v1417 = vpop.permute.xlu0 %1416
        %1418 = vrot.lane.b32.xlu0 %v556, 64
        %v1419 = vpop.permute.xlu0 %1418
        %1420 = vrot.lane.b32.xlu0 %v557, 64
        %v1421 = vpop.permute.xlu0 %1420
        %1422 = vrot.lane.b32.xlu0 %v558, 64
        %v1423 = vpop.permute.xlu0 %1422
        %1424 = vrot.lane.b32.xlu0 %v559, 64
        %v1425 = vpop.permute.xlu0 %1424
        %1426 = vrot.lane.b32.xlu0 %v560, 64
        %v1427 = vpop.permute.xlu0 %1426
        %1428 = vrot.lane.b32.xlu0 %v561, 64
        %v1429 = vpop.permute.xlu0 %1428
        %1430 = vrot.lane.b32.xlu0 %v562, 64
        %v1431 = vpop.permute.xlu0 %1430
        %1432 = vrot.lane.b32.xlu0 %v563, 64
        %v1433 = vpop.permute.xlu0 %1432
        %1434 = vrot.lane.b32.xlu0 %v564, 64
        %v1435 = vpop.permute.xlu0 %1434
        %1436 = vrot.lane.b32.xlu0 %v565, 64
        %v1437 = vpop.permute.xlu0 %1436
        %1438 = vrot.lane.b32.xlu0 %v566, 64
        %v1439 = vpop.permute.xlu0 %1438
        %1440 = vrot.lane.b32.xlu0 %v567, 64
        %v1441 = vpop.permute.xlu0 %1440
        %1442 = vrot.lane.b32.xlu0 %v568, 64
        %v1443 = vpop.permute.xlu0 %1442
        %1444 = vrot.lane.b32.xlu0 %v569, 64
        %v1445 = vpop.permute.xlu0 %1444
        %1446 = vrot.lane.b32.xlu0 %v570, 64
        %v1447 = vpop.permute.xlu0 %1446
        %1448 = vrot.lane.b32.xlu0 %v571, 64
        %v1449 = vpop.permute.xlu0 %1448
        %1450 = vrot.lane.b32.xlu0 %v572, 64
        %v1451 = vpop.permute.xlu0 %1450
        %1452 = vrot.lane.b32.xlu0 %v573, 64
        %v1453 = vpop.permute.xlu0 %1452
        %1454 = vrot.lane.b32.xlu0 %v574, 64
        %v1455 = vpop.permute.xlu0 %1454
        %1456 = vrot.lane.b32.xlu0 %v575, 64
        %v1457 = vpop.permute.xlu0 %1456
        %1458 = vrot.lane.b32.xlu0 %v576, 64
        %v1459 = vpop.permute.xlu0 %1458
        %1460 = vrot.lane.b32.xlu0 %v577, 64
        %v1461 = vpop.permute.xlu0 %1460
        %1462 = vrot.lane.b32.xlu0 %v578, 64
        %v1463 = vpop.permute.xlu0 %1462
        %1464 = vrot.lane.b32.xlu0 %v579, 64
        %v1465 = vpop.permute.xlu0 %1464
        %1466 = vrot.lane.b32.xlu0 %v580, 64
        %v1467 = vpop.permute.xlu0 %1466
        %1468 = vrot.lane.b32.xlu0 %v581, 64
        %v1469 = vpop.permute.xlu0 %1468
        %1470 = vrot.lane.b32.xlu0 %v582, 64
        %v1471 = vpop.permute.xlu0 %1470
        %1472 = vrot.lane.b32.xlu0 %v583, 64
        %v1473 = vpop.permute.xlu0 %1472
        %1474 = vrot.lane.b32.xlu0 %v584, 64
        %v1475 = vpop.permute.xlu0 %1474
        %1476 = vrot.lane.b32.xlu0 %v585, 64
        %v1477 = vpop.permute.xlu0 %1476
        %1478 = vrot.lane.b32.xlu0 %v586, 64
        %v1479 = vpop.permute.xlu0 %1478
        %1480 = vrot.lane.b32.xlu0 %v587, 64
        %v1481 = vpop.permute.xlu0 %1480
        %1482 = vrot.lane.b32.xlu0 %v588, 64
        %v1483 = vpop.permute.xlu0 %1482
        %1484 = vrot.lane.b32.xlu0 %v589, 64
        %v1485 = vpop.permute.xlu0 %1484
        %1486 = vrot.lane.b32.xlu0 %v590, 64
        %v1487 = vpop.permute.xlu0 %1486
        %1488 = vrot.lane.b32.xlu0 %v591, 64
        %v1489 = vpop.permute.xlu0 %1488
        %1490 = vrot.lane.b32.xlu0 %v592, 64
        %v1491 = vpop.permute.xlu0 %1490
        %1492 = vrot.lane.b32.xlu0 %v593, 64
        %v1493 = vpop.permute.xlu0 %1492
        %1494 = vrot.lane.b32.xlu0 %v594, 64
        %v1495 = vpop.permute.xlu0 %1494
        %1496 = vrot.lane.b32.xlu0 %v595, 64
        %v1497 = vpop.permute.xlu0 %1496
        %1498 = vrot.lane.b32.xlu0 %v596, 64
        %v1499 = vpop.permute.xlu0 %1498
        %1500 = vrot.lane.b32.xlu0 %v597, 64
        %v1501 = vpop.permute.xlu0 %1500
        %1502 = vrot.lane.b32.xlu0 %v598, 64
        %v1503 = vpop.permute.xlu0 %1502
        %1504 = vrot.lane.b32.xlu0 %v599, 64
        %v1505 = vpop.permute.xlu0 %1504
        %1506 = vrot.lane.b32.xlu0 %v600, 64
        %v1507 = vpop.permute.xlu0 %1506
        %1508 = vrot.lane.b32.xlu0 %v601, 64
        %v1509 = vpop.permute.xlu0 %1508
        %1510 = vrot.lane.b32.xlu0 %v602, 64
        %v1511 = vpop.permute.xlu0 %1510
        %1512 = vrot.lane.b32.xlu0 %v603, 64
        %v1513 = vpop.permute.xlu0 %1512
        %1514 = vrot.lane.b32.xlu0 %v604, 64
        %v1515 = vpop.permute.xlu0 %1514
        %1516 = vrot.lane.b32.xlu0 %v605, 64
        %v1517 = vpop.permute.xlu0 %1516
        %1518 = vrot.lane.b32.xlu0 %v606, 64
        %v1519 = vpop.permute.xlu0 %1518
        %1520 = vrot.lane.b32.xlu0 %v607, 64
        %v1521 = vpop.permute.xlu0 %1520
        %1522 = vrot.lane.b32.xlu0 %v608, 64
        %v1523 = vpop.permute.xlu0 %1522
        %1524 = vrot.lane.b32.xlu0 %v609, 64
        %v1525 = vpop.permute.xlu0 %1524
        %1526 = vrot.lane.b32.xlu0 %v610, 64
        %v1527 = vpop.permute.xlu0 %1526
        %1528 = vrot.lane.b32.xlu0 %v611, 64
        %v1529 = vpop.permute.xlu0 %1528
        %1530 = vrot.lane.b32.xlu0 %v612, 64
        %v1531 = vpop.permute.xlu0 %1530
        %1532 = vrot.lane.b32.xlu0 %v613, 64
        %v1533 = vpop.permute.xlu0 %1532
        %1534 = vrot.lane.b32.xlu0 %v614, 64
        %v1535 = vpop.permute.xlu0 %1534
        %1536 = vrot.lane.b32.xlu0 %v615, 64
        %v1537 = vpop.permute.xlu0 %1536
        %1538 = vrot.lane.b32.xlu0 %v616, 64
        %v1539 = vpop.permute.xlu0 %1538
        %1540 = vrot.lane.b32.xlu0 %v617, 64
        %v1541 = vpop.permute.xlu0 %1540
        %1542 = vrot.lane.b32.xlu0 %v618, 64
        %v1543 = vpop.permute.xlu0 %1542
        %1544 = vrot.lane.b32.xlu0 %v619, 64
        %v1545 = vpop.permute.xlu0 %1544
        %1546 = vrot.lane.b32.xlu0 %v620, 64
        %v1547 = vpop.permute.xlu0 %1546
        %1548 = vrot.lane.b32.xlu0 %v621, 64
        %v1549 = vpop.permute.xlu0 %1548
        %1550 = vrot.lane.b32.xlu0 %v622, 64
        %v1551 = vpop.permute.xlu0 %1550
        %1552 = vrot.lane.b32.xlu0 %v623, 64
        %v1553 = vpop.permute.xlu0 %1552
        %1554 = vrot.lane.b32.xlu0 %v624, 64
        %v1555 = vpop.permute.xlu0 %1554
        %1556 = vrot.lane.b32.xlu0 %v625, 64
        %v1557 = vpop.permute.xlu0 %1556
        %1558 = vrot.lane.b32.xlu0 %v626, 64
        %v1559 = vpop.permute.xlu0 %1558
        %1560 = vrot.lane.b32.xlu0 %v627, 64
        %v1561 = vpop.permute.xlu0 %1560
        %1562 = vrot.lane.b32.xlu0 %v628, 64
        %v1563 = vpop.permute.xlu0 %1562
        %1564 = vrot.lane.b32.xlu0 %v629, 64
        %v1565 = vpop.permute.xlu0 %1564
        %1566 = vrot.lane.b32.xlu0 %v630, 64
        %v1567 = vpop.permute.xlu0 %1566
        %1568 = vrot.lane.b32.xlu0 %v631, 64
        %v1569 = vpop.permute.xlu0 %1568
        %1570 = vrot.lane.b32.xlu0 %v632, 64
        %v1571 = vpop.permute.xlu0 %1570
        %1572 = vrot.lane.b32.xlu0 %v633, 64
        %v1573 = vpop.permute.xlu0 %1572
        %1574 = vrot.lane.b32.xlu0 %v634, 64
        %v1575 = vpop.permute.xlu0 %1574
        %1576 = vrot.lane.b32.xlu0 %v635, 64
        %v1577 = vpop.permute.xlu0 %1576
        %1578 = vrot.lane.b32.xlu0 %v636, 64
        %v1579 = vpop.permute.xlu0 %1578
        %1580 = vrot.lane.b32.xlu0 %v637, 64
        %v1581 = vpop.permute.xlu0 %1580
        %1582 = vrot.lane.b32.xlu0 %v638, 64
        %v1583 = vpop.permute.xlu0 %1582
        %1584 = vrot.lane.b32.xlu0 %v639, 64
        %v1585 = vpop.permute.xlu0 %1584
        %1586 = vrot.lane.b32.xlu0 %v640, 64
        %v1587 = vpop.permute.xlu0 %1586
        %1588 = vrot.lane.b32.xlu0 %v641, 64
        %v1589 = vpop.permute.xlu0 %1588
        %1590 = vrot.lane.b32.xlu0 %v642, 64
        %v1591 = vpop.permute.xlu0 %1590
        %1592 = vrot.lane.b32.xlu0 %v643, 64
        %v1593 = vpop.permute.xlu0 %1592
        %1594 = vrot.lane.b32.xlu0 %v644, 64
        %v1595 = vpop.permute.xlu0 %1594
        %1596 = vrot.lane.b32.xlu0 %v645, 64
        %v1597 = vpop.permute.xlu0 %1596
        %1598 = vrot.lane.b32.xlu0 %v646, 64
        %v1599 = vpop.permute.xlu0 %1598
        %1600 = vrot.lane.b32.xlu0 %v647, 64
        %v1601 = vpop.permute.xlu0 %1600
        %1602 = vrot.lane.b32.xlu0 %v648, 64
        %v1603 = vpop.permute.xlu0 %1602
        %1604 = vrot.lane.b32.xlu0 %v649, 64
        %v1605 = vpop.permute.xlu0 %1604
        %1606 = vrot.lane.b32.xlu0 %v650, 64
        %v1607 = vpop.permute.xlu0 %1606
        %1608 = vrot.lane.b32.xlu0 %v651, 64
        %v1609 = vpop.permute.xlu0 %1608
        %1610 = vrot.lane.b32.xlu0 %v652, 64
        %v1611 = vpop.permute.xlu0 %1610
        %1612 = vrot.lane.b32.xlu0 %v653, 64
        %v1613 = vpop.permute.xlu0 %1612
        %1614 = vrot.lane.b32.xlu0 %v654, 64
        %v1615 = vpop.permute.xlu0 %1614
        %1616 = vrot.lane.b32.xlu0 %v655, 64
        %v1617 = vpop.permute.xlu0 %1616
        %1618 = vrot.lane.b32.xlu0 %v656, 64
        %v1619 = vpop.permute.xlu0 %1618
        %1620 = vrot.lane.b32.xlu0 %v657, 64
        %v1621 = vpop.permute.xlu0 %1620
        %1622 = vrot.lane.b32.xlu0 %v658, 64
        %v1623 = vpop.permute.xlu0 %1622
        %1624 = vrot.lane.b32.xlu0 %v659, 64
        %v1625 = vpop.permute.xlu0 %1624
        %1626 = vrot.lane.b32.xlu0 %v660, 64
        %v1627 = vpop.permute.xlu0 %1626
        %1628 = vrot.lane.b32.xlu0 %v661, 64
        %v1629 = vpop.permute.xlu0 %1628
        %1630 = vrot.lane.b32.xlu0 %v662, 64
        %v1631 = vpop.permute.xlu0 %1630
        %1632 = vrot.lane.b32.xlu0 %v663, 64
        %v1633 = vpop.permute.xlu0 %1632
        %1634 = vrot.lane.b32.xlu0 %v664, 64
        %v1635 = vpop.permute.xlu0 %1634
        %1636 = vrot.lane.b32.xlu0 %v665, 64
        %v1637 = vpop.permute.xlu0 %1636
        %1638 = vrot.lane.b32.xlu0 %v666, 64
        %v1639 = vpop.permute.xlu0 %1638
        %1640 = vrot.lane.b32.xlu0 %v667, 64
        %v1641 = vpop.permute.xlu0 %1640
        %1642 = vrot.lane.b32.xlu0 %v668, 64
        %v1643 = vpop.permute.xlu0 %1642
        %1644 = vrot.lane.b32.xlu0 %v669, 64
        %v1645 = vpop.permute.xlu0 %1644
        %1646 = vrot.lane.b32.xlu0 %v670, 64
        %v1647 = vpop.permute.xlu0 %1646
        %1648 = vrot.lane.b32.xlu0 %v671, 64
        %v1649 = vpop.permute.xlu0 %1648
        %1650 = vrot.lane.b32.xlu0 %v672, 64
        %v1651 = vpop.permute.xlu0 %1650
        %1652 = vrot.lane.b32.xlu0 %v673, 64
        %v1653 = vpop.permute.xlu0 %1652
        %1654 = vrot.lane.b32.xlu0 %v674, 64
        %v1655 = vpop.permute.xlu0 %1654
        %1656 = vrot.lane.b32.xlu0 %v675, 64
        %v1657 = vpop.permute.xlu0 %1656
        %1658 = vrot.lane.b32.xlu0 %v676, 64
        %v1659 = vpop.permute.xlu0 %1658
        %1660 = vrot.lane.b32.xlu0 %v677, 64
        %v1661 = vpop.permute.xlu0 %1660
        %1662 = vrot.lane.b32.xlu0 %v678, 64
        %v1663 = vpop.permute.xlu0 %1662
        %1664 = vrot.lane.b32.xlu0 %v679, 64
        %v1665 = vpop.permute.xlu0 %1664
        %1666 = vrot.lane.b32.xlu0 %v680, 64
        %v1667 = vpop.permute.xlu0 %1666
        %1668 = vrot.lane.b32.xlu0 %v681, 64
        %v1669 = vpop.permute.xlu0 %1668
        %1670 = vrot.lane.b32.xlu0 %v682, 64
        %v1671 = vpop.permute.xlu0 %1670
        %1672 = vrot.lane.b32.xlu0 %v683, 64
        %v1673 = vpop.permute.xlu0 %1672
        %1674 = vrot.lane.b32.xlu0 %v684, 64
        %v1675 = vpop.permute.xlu0 %1674
        %1676 = vrot.lane.b32.xlu0 %v685, 64
        %v1677 = vpop.permute.xlu0 %1676
        %1678 = vrot.lane.b32.xlu0 %v686, 64
        %v1679 = vpop.permute.xlu0 %1678
        %1680 = vrot.lane.b32.xlu0 %v687, 64
        %v1681 = vpop.permute.xlu0 %1680
        %1682 = vrot.lane.b32.xlu0 %v688, 64
        %v1683 = vpop.permute.xlu0 %1682
        %1684 = vrot.lane.b32.xlu0 %v689, 64
        %v1685 = vpop.permute.xlu0 %1684
        %1686 = vrot.lane.b32.xlu0 %v690, 64
        %v1687 = vpop.permute.xlu0 %1686
        %1688 = vrot.lane.b32.xlu0 %v691, 64
        %v1689 = vpop.permute.xlu0 %1688
        %1690 = vrot.lane.b32.xlu0 %v692, 64
        %v1691 = vpop.permute.xlu0 %1690
        %1692 = vrot.lane.b32.xlu0 %v693, 64
        %v1693 = vpop.permute.xlu0 %1692
        %1694 = vrot.lane.b32.xlu0 %v694, 64
        %v1695 = vpop.permute.xlu0 %1694
        %1696 = vrot.lane.b32.xlu0 %v695, 64
        %v1697 = vpop.permute.xlu0 %1696
        %1698 = vrot.lane.b32.xlu0 %v696, 64
        %v1699 = vpop.permute.xlu0 %1698
        %1700 = vrot.lane.b32.xlu0 %v697, 64
        %v1701 = vpop.permute.xlu0 %1700
        %1702 = vrot.lane.b32.xlu0 %v698, 64
        %v1703 = vpop.permute.xlu0 %1702
        %1704 = vrot.lane.b32.xlu0 %v699, 64
        %v1705 = vpop.permute.xlu0 %1704
        %1706 = vrot.lane.b32.xlu0 %v700, 64
        %v1707 = vpop.permute.xlu0 %1706
        %1708 = vrot.lane.b32.xlu0 %v701, 64
        %v1709 = vpop.permute.xlu0 %1708
        %1710 = vrot.lane.b32.xlu0 %v702, 64
        %v1711 = vpop.permute.xlu0 %1710
        %1712 = vrot.lane.b32.xlu0 %v703, 64
        %v1713 = vpop.permute.xlu0 %1712
        %1714 = vrot.lane.b32.xlu0 %v704, 64
        %v1715 = vpop.permute.xlu0 %1714
        %1716 = vrot.lane.b32.xlu0 %v705, 64
        %v1717 = vpop.permute.xlu0 %1716
        %1718 = vrot.lane.b32.xlu0 %v706, 64
        %v1719 = vpop.permute.xlu0 %1718
        %1720 = vrot.lane.b32.xlu0 %v707, 64
        %v1721 = vpop.permute.xlu0 %1720
        %1722 = vrot.lane.b32.xlu0 %v708, 64
        %v1723 = vpop.permute.xlu0 %1722
        %1724 = vrot.lane.b32.xlu0 %v709, 64
        %v1725 = vpop.permute.xlu0 %1724
        %1726 = vrot.lane.b32.xlu0 %v710, 64
        %v1727 = vpop.permute.xlu0 %1726
        %1728 = vrot.lane.b32.xlu0 %v711, 64
        %v1729 = vpop.permute.xlu0 %1728
        %1730 = vrot.lane.b32.xlu0 %v712, 64
        %v1731 = vpop.permute.xlu0 %1730
        %1732 = vrot.lane.b32.xlu0 %v713, 64
        %v1733 = vpop.permute.xlu0 %1732
        %1734 = vrot.lane.b32.xlu0 %v714, 64
        %v1735 = vpop.permute.xlu0 %1734
        %1736 = vrot.lane.b32.xlu0 %v715, 64
        %v1737 = vpop.permute.xlu0 %1736
        %1738 = vrot.lane.b32.xlu0 %v716, 64
        %v1739 = vpop.permute.xlu0 %1738
        %1740 = vrot.lane.b32.xlu0 %v717, 64
        %v1741 = vpop.permute.xlu0 %1740
        %v1742 = vld [vmem:[#allocation5] sm:$0xff]
        %v1743 = vld [vmem:[#allocation5 + $0x8] sm:$0xff]
        %v1744 = vld [vmem:[#allocation5 + $0x10] sm:$0xff]
        %v1745 = vld [vmem:[#allocation5 + $0x18] sm:$0xff]
        %v1746 = vld [vmem:[#allocation5 + $0x20] sm:$0xff]
        %v1747 = vld [vmem:[#allocation5 + $0x28] sm:$0xff]
        %v1748 = vld [vmem:[#allocation5 + $0x30] sm:$0xff]
        %v1749 = vld [vmem:[#allocation5 + $0x38] sm:$0xff]
        %v1750 = vld [vmem:[#allocation5 + $0x40] sm:$0xff]
        %v1751 = vld [vmem:[#allocation5 + $0x48] sm:$0xff]
        %v1752 = vld [vmem:[#allocation5 + $0x50] sm:$0xff]
        %v1753 = vld [vmem:[#allocation5 + $0x58] sm:$0xff]
        %v1754 = vld [vmem:[#allocation5 + $0x60] sm:$0xff]
        %v1755 = vld [vmem:[#allocation5 + $0x68] sm:$0xff]
        %v1756 = vld [vmem:[#allocation5 + $0x70] sm:$0xff]
        %v1757 = vld [vmem:[#allocation5 + $0x78] sm:$0xff]
        %v1758 = vld [vmem:[#allocation5 + $0x80] sm:$0xff]
        %v1759 = vld [vmem:[#allocation5 + $0x88] sm:$0xff]
        %v1760 = vld [vmem:[#allocation5 + $0x90] sm:$0xff]
        %v1761 = vld [vmem:[#allocation5 + $0x98] sm:$0xff]
        %v1762 = vld [vmem:[#allocation5 + $0xa0] sm:$0xff]
        %v1763 = vld [vmem:[#allocation5 + $0xa8] sm:$0xff]
        %v1764 = vld [vmem:[#allocation5 + $0xb0] sm:$0xff]
        %v1765 = vld [vmem:[#allocation5 + $0xb8] sm:$0xff]
        %v1766 = vld [vmem:[#allocation5 + $0xc0] sm:$0xff]
        %v1767 = vld [vmem:[#allocation5 + $0xc8] sm:$0xff]
        %v1768 = vld [vmem:[#allocation5 + $0xd0] sm:$0xff]
        %v1769 = vld [vmem:[#allocation5 + $0xd8] sm:$0xff]
        %v1770 = vld [vmem:[#allocation5 + $0xe0] sm:$0xff]
        %v1771 = vld [vmem:[#allocation5 + $0xe8] sm:$0xff]
        %v1772 = vld [vmem:[#allocation5 + $0xf0] sm:$0xff]
        %v1773 = vld [vmem:[#allocation5 + $0xf8] sm:$0xff]
        %v1774 = vld [vmem:[#allocation5 + $0x100] sm:$0xff]
        %v1775 = vld [vmem:[#allocation5 + $0x108] sm:$0xff]
        %v1776 = vld [vmem:[#allocation5 + $0x110] sm:$0xff]
        %v1777 = vld [vmem:[#allocation5 + $0x118] sm:$0xff]
        %v1778 = vld [vmem:[#allocation5 + $0x120] sm:$0xff]
        %v1779 = vld [vmem:[#allocation5 + $0x128] sm:$0xff]
        %v1780 = vld [vmem:[#allocation5 + $0x130] sm:$0xff]
        %v1781 = vld [vmem:[#allocation5 + $0x138] sm:$0xff]
        %v1782 = vld [vmem:[#allocation5 + $0x140] sm:$0xff]
        %v1783 = vld [vmem:[#allocation5 + $0x148] sm:$0xff]
        %v1784 = vld [vmem:[#allocation5 + $0x150] sm:$0xff]
        %v1785 = vld [vmem:[#allocation5 + $0x158] sm:$0xff]
        %v1786 = vld [vmem:[#allocation5 + $0x160] sm:$0xff]
        %v1787 = vld [vmem:[#allocation5 + $0x168] sm:$0xff]
        %v1788 = vld [vmem:[#allocation5 + $0x170] sm:$0xff]
        %v1789 = vld [vmem:[#allocation5 + $0x178] sm:$0xff]
        %v1790 = vld [vmem:[#allocation5 + $0x180] sm:$0xff]
        %v1791 = vld [vmem:[#allocation5 + $0x188] sm:$0xff]
        %v1792 = vld [vmem:[#allocation5 + $0x190] sm:$0xff]
        %v1793 = vld [vmem:[#allocation5 + $0x198] sm:$0xff]
        %v1794 = vld [vmem:[#allocation5 + $0x1a0] sm:$0xff]
        %v1795 = vld [vmem:[#allocation5 + $0x1a8] sm:$0xff]
        %v1796 = vld [vmem:[#allocation5 + $0x1b0] sm:$0xff]
        %v1797 = vld [vmem:[#allocation5 + $0x1b8] sm:$0xff]
        %v1798 = vld [vmem:[#allocation5 + $0x1c0] sm:$0xff]
        %v1799 = vld [vmem:[#allocation5 + $0x1c8] sm:$0xff]
        %v1800 = vld [vmem:[#allocation5 + $0x1d0] sm:$0xff]
        %v1801 = vld [vmem:[#allocation5 + $0x1d8] sm:$0xff]
        %v1802 = vld [vmem:[#allocation5 + $0x1e0] sm:$0xff]
        %v1803 = vld [vmem:[#allocation5 + $0x1e8] sm:$0xff]
        %v1804 = vld [vmem:[#allocation5 + $0x1f0] sm:$0xff]
        %v1805 = vld [vmem:[#allocation5 + $0x1f8] sm:$0xff]
        %v1806 = vld [vmem:[#allocation5 + $0x200] sm:$0xff]
        %v1807 = vld [vmem:[#allocation5 + $0x208] sm:$0xff]
        %v1808 = vld [vmem:[#allocation5 + $0x210] sm:$0xff]
        %v1809 = vld [vmem:[#allocation5 + $0x218] sm:$0xff]
        %v1810 = vld [vmem:[#allocation5 + $0x220] sm:$0xff]
        %v1811 = vld [vmem:[#allocation5 + $0x228] sm:$0xff]
        %v1812 = vld [vmem:[#allocation5 + $0x230] sm:$0xff]
        %v1813 = vld [vmem:[#allocation5 + $0x238] sm:$0xff]
        %v1814 = vld [vmem:[#allocation5 + $0x240] sm:$0xff]
        %v1815 = vld [vmem:[#allocation5 + $0x248] sm:$0xff]
        %v1816 = vld [vmem:[#allocation5 + $0x250] sm:$0xff]
        %v1817 = vld [vmem:[#allocation5 + $0x258] sm:$0xff]
        %v1818 = vld [vmem:[#allocation5 + $0x260] sm:$0xff]
        %v1819 = vld [vmem:[#allocation5 + $0x268] sm:$0xff]
        %v1820 = vld [vmem:[#allocation5 + $0x270] sm:$0xff]
        %v1821 = vld [vmem:[#allocation5 + $0x278] sm:$0xff]
        %v1822 = vld [vmem:[#allocation5 + $0x280] sm:$0xff]
        %v1823 = vld [vmem:[#allocation5 + $0x288] sm:$0xff]
        %v1824 = vld [vmem:[#allocation5 + $0x290] sm:$0xff]
        %v1825 = vld [vmem:[#allocation5 + $0x298] sm:$0xff]
        %v1826 = vld [vmem:[#allocation5 + $0x2a0] sm:$0xff]
        %v1827 = vld [vmem:[#allocation5 + $0x2a8] sm:$0xff]
        %v1828 = vld [vmem:[#allocation5 + $0x2b0] sm:$0xff]
        %v1829 = vld [vmem:[#allocation5 + $0x2b8] sm:$0xff]
        %v1830 = vld [vmem:[#allocation5 + $0x2c0] sm:$0xff]
        %v1831 = vld [vmem:[#allocation5 + $0x2c8] sm:$0xff]
        %v1832 = vld [vmem:[#allocation5 + $0x2d0] sm:$0xff]
        %v1833 = vld [vmem:[#allocation5 + $0x2d8] sm:$0xff]
        %v1834 = vld [vmem:[#allocation5 + $0x2e0] sm:$0xff]
        %v1835 = vld [vmem:[#allocation5 + $0x2e8] sm:$0xff]
        %v1836 = vld [vmem:[#allocation5 + $0x2f0] sm:$0xff]
        %v1837 = vld [vmem:[#allocation5 + $0x2f8] sm:$0xff]
        %v1838 = vld [vmem:[#allocation5 + $0x300] sm:$0xff]
        %v1839 = vld [vmem:[#allocation5 + $0x308] sm:$0xff]
        %v1840 = vld [vmem:[#allocation5 + $0x310] sm:$0xff]
        %v1841 = vld [vmem:[#allocation5 + $0x318] sm:$0xff]
        %v1842 = vld [vmem:[#allocation5 + $0x320] sm:$0xff]
        %v1843 = vld [vmem:[#allocation5 + $0x328] sm:$0xff]
        %v1844 = vld [vmem:[#allocation5 + $0x330] sm:$0xff]
        %v1845 = vld [vmem:[#allocation5 + $0x338] sm:$0xff]
        %v1846 = vld [vmem:[#allocation5 + $0x340] sm:$0xff]
        %v1847 = vld [vmem:[#allocation5 + $0x348] sm:$0xff]
        %v1848 = vld [vmem:[#allocation5 + $0x350] sm:$0xff]
        %v1849 = vld [vmem:[#allocation5 + $0x358] sm:$0xff]
        %v1850 = vld [vmem:[#allocation5 + $0x360] sm:$0xff]
        %v1851 = vld [vmem:[#allocation5 + $0x368] sm:$0xff]
        %v1852 = vld [vmem:[#allocation5 + $0x370] sm:$0xff]
        %v1853 = vld [vmem:[#allocation5 + $0x378] sm:$0xff]
        %v1854 = vld [vmem:[#allocation5 + $0x380] sm:$0xff]
        %v1855 = vld [vmem:[#allocation5 + $0x388] sm:$0xff]
        %v1856 = vld [vmem:[#allocation5 + $0x390] sm:$0xff]
        %v1857 = vld [vmem:[#allocation5 + $0x398] sm:$0xff]
        %v1858 = vld [vmem:[#allocation5 + $0x3a0] sm:$0xff]
        %v1859 = vld [vmem:[#allocation5 + $0x3a8] sm:$0xff]
        %v1860 = vld [vmem:[#allocation5 + $0x3b0] sm:$0xff]
        %v1861 = vld [vmem:[#allocation5 + $0x3b8] sm:$0xff]
        %v1862 = vld [vmem:[#allocation5 + $0x3c0] sm:$0xff]
        %v1863 = vld [vmem:[#allocation5 + $0x3c8] sm:$0xff]
        %v1864 = vld [vmem:[#allocation5 + $0x3d0] sm:$0xff]
        %v1865 = vld [vmem:[#allocation5 + $0x3d8] sm:$0xff]
        %v1866 = vld [vmem:[#allocation5 + $0x3e0] sm:$0xff]
        %v1867 = vld [vmem:[#allocation5 + $0x3e8] sm:$0xff]
        %v1868 = vld [vmem:[#allocation5 + $0x3f0] sm:$0xff]
        %v1869 = vld [vmem:[#allocation5 + $0x3f8] sm:$0xff]
        %v1870 = vld [vmem:[#allocation5 + $0x400] sm:$0xff]
        %v1871 = vld [vmem:[#allocation5 + $0x408] sm:$0xff]
        %v1872 = vld [vmem:[#allocation5 + $0x410] sm:$0xff]
        %v1873 = vld [vmem:[#allocation5 + $0x418] sm:$0xff]
        %v1874 = vld [vmem:[#allocation5 + $0x420] sm:$0xff]
        %v1875 = vld [vmem:[#allocation5 + $0x428] sm:$0xff]
        %v1876 = vld [vmem:[#allocation5 + $0x430] sm:$0xff]
        %v1877 = vld [vmem:[#allocation5 + $0x438] sm:$0xff]
        %v1878 = vld [vmem:[#allocation5 + $0x440] sm:$0xff]
        %v1879 = vld [vmem:[#allocation5 + $0x448] sm:$0xff]
        %v1880 = vld [vmem:[#allocation5 + $0x450] sm:$0xff]
        %v1881 = vld [vmem:[#allocation5 + $0x458] sm:$0xff]
        %v1882 = vld [vmem:[#allocation5 + $0x460] sm:$0xff]
        %v1883 = vld [vmem:[#allocation5 + $0x468] sm:$0xff]
        %v1884 = vld [vmem:[#allocation5 + $0x470] sm:$0xff]
        %v1885 = vld [vmem:[#allocation5 + $0x478] sm:$0xff]
        %v1886 = vld [vmem:[#allocation5 + $0x480] sm:$0xff]
        %v1887 = vld [vmem:[#allocation5 + $0x488] sm:$0xff]
        %v1888 = vld [vmem:[#allocation5 + $0x490] sm:$0xff]
        %v1889 = vld [vmem:[#allocation5 + $0x498] sm:$0xff]
        %v1890 = vld [vmem:[#allocation5 + $0x4a0] sm:$0xff]
        %v1891 = vld [vmem:[#allocation5 + $0x4a8] sm:$0xff]
        %v1892 = vld [vmem:[#allocation5 + $0x4b0] sm:$0xff]
        %v1893 = vld [vmem:[#allocation5 + $0x4b8] sm:$0xff]
        %v1894 = vld [vmem:[#allocation5 + $0x4c0] sm:$0xff]
        %v1895 = vld [vmem:[#allocation5 + $0x4c8] sm:$0xff]
        %v1896 = vld [vmem:[#allocation5 + $0x4d0] sm:$0xff]
        %v1897 = vld [vmem:[#allocation5 + $0x4d8] sm:$0xff]
        %v1898 = vld [vmem:[#allocation5 + $0x4e0] sm:$0xff]
        %v1899 = vld [vmem:[#allocation5 + $0x4e8] sm:$0xff]
        %v1900 = vld [vmem:[#allocation5 + $0x4f0] sm:$0xff]
        %v1901 = vld [vmem:[#allocation5 + $0x4f8] sm:$0xff]
        %v1902 = vld [vmem:[#allocation5 + $0x500] sm:$0xff]
        %v1903 = vld [vmem:[#allocation5 + $0x508] sm:$0xff]
        %v1904 = vld [vmem:[#allocation5 + $0x510] sm:$0xff]
        %v1905 = vld [vmem:[#allocation5 + $0x518] sm:$0xff]
        %v1906 = vld [vmem:[#allocation5 + $0x520] sm:$0xff]
        %v1907 = vld [vmem:[#allocation5 + $0x528] sm:$0xff]
        %v1908 = vld [vmem:[#allocation5 + $0x530] sm:$0xff]
        %v1909 = vld [vmem:[#allocation5 + $0x538] sm:$0xff]
        %v1910 = vld [vmem:[#allocation5 + $0x540] sm:$0xff]
        %v1911 = vld [vmem:[#allocation5 + $0x548] sm:$0xff]
        %v1912 = vld [vmem:[#allocation5 + $0x550] sm:$0xff]
        %v1913 = vld [vmem:[#allocation5 + $0x558] sm:$0xff]
        %v1914 = vld [vmem:[#allocation5 + $0x560] sm:$0xff]
        %v1915 = vld [vmem:[#allocation5 + $0x568] sm:$0xff]
        %v1916 = vld [vmem:[#allocation5 + $0x570] sm:$0xff]
        %v1917 = vld [vmem:[#allocation5 + $0x578] sm:$0xff]
        %v1918 = vld [vmem:[#allocation5 + $0x580] sm:$0xff]
        %v1919 = vld [vmem:[#allocation5 + $0x588] sm:$0xff]
        %v1920 = vld [vmem:[#allocation5 + $0x590] sm:$0xff]
        %v1921 = vld [vmem:[#allocation5 + $0x598] sm:$0xff]
        %v1922 = vld [vmem:[#allocation5 + $0x5a0] sm:$0xff]
        %v1923 = vld [vmem:[#allocation5 + $0x5a8] sm:$0xff]
        %v1924 = vld [vmem:[#allocation5 + $0x5b0] sm:$0xff]
        %v1925 = vld [vmem:[#allocation5 + $0x5b8] sm:$0xff]
        %v1926 = vld [vmem:[#allocation5 + $0x5c0] sm:$0xff]
        %v1927 = vld [vmem:[#allocation5 + $0x5c8] sm:$0xff]
        %v1928 = vld [vmem:[#allocation5 + $0x5d0] sm:$0xff]
        %v1929 = vld [vmem:[#allocation5 + $0x5d8] sm:$0xff]
        %v1930 = vld [vmem:[#allocation5 + $0x5e0] sm:$0xff]
        %v1931 = vld [vmem:[#allocation5 + $0x5e8] sm:$0xff]
        %v1932 = vld [vmem:[#allocation5 + $0x5f0] sm:$0xff]
        %v1933 = vld [vmem:[#allocation5 + $0x5f8] sm:$0xff]
        %v1934 = vld [vmem:[#allocation5 + $0x600] sm:$0xff]
        %v1935 = vld [vmem:[#allocation5 + $0x608] sm:$0xff]
        %v1936 = vld [vmem:[#allocation5 + $0x610] sm:$0xff]
        %v1937 = vld [vmem:[#allocation5 + $0x618] sm:$0xff]
        %v1938 = vld [vmem:[#allocation5 + $0x620] sm:$0xff]
        %v1939 = vld [vmem:[#allocation5 + $0x628] sm:$0xff]
        %v1940 = vld [vmem:[#allocation5 + $0x630] sm:$0xff]
        %v1941 = vld [vmem:[#allocation5 + $0x638] sm:$0xff]
        %v1942 = vld [vmem:[#allocation5 + $0x640] sm:$0xff]
        %v1943 = vld [vmem:[#allocation5 + $0x648] sm:$0xff]
        %v1944 = vld [vmem:[#allocation5 + $0x650] sm:$0xff]
        %v1945 = vld [vmem:[#allocation5 + $0x658] sm:$0xff]
        %v1946 = vld [vmem:[#allocation5 + $0x660] sm:$0xff]
        %v1947 = vld [vmem:[#allocation5 + $0x668] sm:$0xff]
        %v1948 = vld [vmem:[#allocation5 + $0x670] sm:$0xff]
        %v1949 = vld [vmem:[#allocation5 + $0x678] sm:$0xff]
        %v1950 = vld [vmem:[#allocation5 + $0x680] sm:$0xff]
        %v1951 = vld [vmem:[#allocation5 + $0x688] sm:$0xff]
        %v1952 = vld [vmem:[#allocation5 + $0x690] sm:$0xff]
        %v1953 = vld [vmem:[#allocation5 + $0x698] sm:$0xff]
        %v1954 = vld [vmem:[#allocation5 + $0x6a0] sm:$0xff]
        %v1955 = vld [vmem:[#allocation5 + $0x6a8] sm:$0xff]
        %v1956 = vld [vmem:[#allocation5 + $0x6b0] sm:$0xff]
        %v1957 = vld [vmem:[#allocation5 + $0x6b8] sm:$0xff]
        %v1958 = vld [vmem:[#allocation5 + $0x6c0] sm:$0xff]
        %v1959 = vld [vmem:[#allocation5 + $0x6c8] sm:$0xff]
        %v1960 = vld [vmem:[#allocation5 + $0x6d0] sm:$0xff]
        %v1961 = vld [vmem:[#allocation5 + $0x6d8] sm:$0xff]
        %v1962 = vld [vmem:[#allocation5 + $0x6e0] sm:$0xff]
        %v1963 = vld [vmem:[#allocation5 + $0x6e8] sm:$0xff]
        %v1964 = vld [vmem:[#allocation5 + $0x6f0] sm:$0xff]
        %v1965 = vld [vmem:[#allocation5 + $0x6f8] sm:$0xff]
        %v1966 = vld [vmem:[#allocation5 + $0x700] sm:$0xff]
        %v1967 = vld [vmem:[#allocation5 + $0x708] sm:$0xff]
        %v1968 = vld [vmem:[#allocation5 + $0x710] sm:$0xff]
        %v1969 = vld [vmem:[#allocation5 + $0x718] sm:$0xff]
        %v1970 = vld [vmem:[#allocation5 + $0x720] sm:$0xff]
        %v1971 = vld [vmem:[#allocation5 + $0x728] sm:$0xff]
        %v1972 = vld [vmem:[#allocation5 + $0x730] sm:$0xff]
        %v1973 = vld [vmem:[#allocation5 + $0x738] sm:$0xff]
        %v1974 = vld [vmem:[#allocation5 + $0x740] sm:$0xff]
        %v1975 = vld [vmem:[#allocation5 + $0x748] sm:$0xff]
        %v1976 = vld [vmem:[#allocation5 + $0x750] sm:$0xff]
        %v1977 = vld [vmem:[#allocation5 + $0x758] sm:$0xff]
        %v1978 = vld [vmem:[#allocation5 + $0x760] sm:$0xff]
        %v1979 = vld [vmem:[#allocation5 + $0x768] sm:$0xff]
        %v1980 = vld [vmem:[#allocation5 + $0x770] sm:$0xff]
        %v1981 = vld [vmem:[#allocation5 + $0x778] sm:$0xff]
        %v1982 = vld [vmem:[#allocation5 + $0x780] sm:$0xff]
        %v1983 = vld [vmem:[#allocation5 + $0x788] sm:$0xff]
        %v1984 = vld [vmem:[#allocation5 + $0x790] sm:$0xff]
        %v1985 = vld [vmem:[#allocation5 + $0x798] sm:$0xff]
        %v1986 = vld [vmem:[#allocation5 + $0x7a0] sm:$0xff]
        %v1987 = vld [vmem:[#allocation5 + $0x7a8] sm:$0xff]
        %v1988 = vld [vmem:[#allocation5 + $0x7b0] sm:$0xff]
        %v1989 = vld [vmem:[#allocation5 + $0x7b8] sm:$0xff]
        %v1990 = vld [vmem:[#allocation5 + $0x7c0] sm:$0xff]
        %v1991 = vld [vmem:[#allocation5 + $0x7c8] sm:$0xff]
        %v1992 = vld [vmem:[#allocation5 + $0x7d0] sm:$0xff]
        %v1993 = vld [vmem:[#allocation5 + $0x7d8] sm:$0xff]
        %v1994 = vld [vmem:[#allocation5 + $0x7e0] sm:$0xff]
        %v1995 = vld [vmem:[#allocation5 + $0x7e8] sm:$0xff]
        %v1996 = vld [vmem:[#allocation5 + $0x7f0] sm:$0xff]
        %v1997 = vld [vmem:[#allocation5 + $0x7f8] sm:$0xff]
        %v1998 = vld [vmem:[#allocation5 + $0x800] sm:$0xff]
        %v1999 = vld [vmem:[#allocation5 + $0x808] sm:$0xff]
        %v2000 = vld [vmem:[#allocation5 + $0x810] sm:$0xff]
        %v2001 = vld [vmem:[#allocation5 + $0x818] sm:$0xff]
        %v2002 = vld [vmem:[#allocation5 + $0x820] sm:$0xff]
        %v2003 = vld [vmem:[#allocation5 + $0x828] sm:$0xff]
        %v2004 = vld [vmem:[#allocation5 + $0x830] sm:$0xff]
        %v2005 = vld [vmem:[#allocation5 + $0x838] sm:$0xff]
        %v2006 = vld [vmem:[#allocation5 + $0x840] sm:$0xff]
        %v2007 = vld [vmem:[#allocation5 + $0x848] sm:$0xff]
        %v2008 = vld [vmem:[#allocation5 + $0x850] sm:$0xff]
        %v2009 = vld [vmem:[#allocation5 + $0x858] sm:$0xff]
        %v2010 = vld [vmem:[#allocation5 + $0x860] sm:$0xff]
        %v2011 = vld [vmem:[#allocation5 + $0x868] sm:$0xff]
        %v2012 = vld [vmem:[#allocation5 + $0x870] sm:$0xff]
        %v2013 = vld [vmem:[#allocation5 + $0x878] sm:$0xff]
        %v2014 = vld [vmem:[#allocation5 + $0x880] sm:$0xff]
        %v2015 = vld [vmem:[#allocation5 + $0x888] sm:$0xff]
        %v2016 = vld [vmem:[#allocation5 + $0x890] sm:$0xff]
        %v2017 = vld [vmem:[#allocation5 + $0x898] sm:$0xff]
        %v2018 = vld [vmem:[#allocation5 + $0x8a0] sm:$0xff]
        %v2019 = vld [vmem:[#allocation5 + $0x8a8] sm:$0xff]
        %v2020 = vld [vmem:[#allocation5 + $0x8b0] sm:$0xff]
        %v2021 = vld [vmem:[#allocation5 + $0x8b8] sm:$0xff]
        %v2022 = vld [vmem:[#allocation5 + $0x8c0] sm:$0xff]
        %v2023 = vld [vmem:[#allocation5 + $0x8c8] sm:$0xff]
        %v2024 = vld [vmem:[#allocation5 + $0x8d0] sm:$0xff]
        %v2025 = vld [vmem:[#allocation5 + $0x8d8] sm:$0xff]
        %v2026 = vld [vmem:[#allocation5 + $0x8e0] sm:$0xff]
        %v2027 = vld [vmem:[#allocation5 + $0x8e8] sm:$0xff]
        %v2028 = vld [vmem:[#allocation5 + $0x8f0] sm:$0xff]
        %v2029 = vld [vmem:[#allocation5 + $0x8f8] sm:$0xff]
        %v2030 = vld [vmem:[#allocation5 + $0x900] sm:$0xff]
        %v2031 = vld [vmem:[#allocation5 + $0x908] sm:$0xff]
        %v2032 = vld [vmem:[#allocation5 + $0x910] sm:$0xff]
        %v2033 = vld [vmem:[#allocation5 + $0x918] sm:$0xff]
        %v2034 = vld [vmem:[#allocation5 + $0x920] sm:$0xff]
        %v2035 = vld [vmem:[#allocation5 + $0x928] sm:$0xff]
        %v2036 = vld [vmem:[#allocation5 + $0x930] sm:$0xff]
        %v2037 = vld [vmem:[#allocation5 + $0x938] sm:$0xff]
        %v2038 = vld [vmem:[#allocation5 + $0x940] sm:$0xff]
        %v2039 = vld [vmem:[#allocation5 + $0x948] sm:$0xff]
        %v2040 = vld [vmem:[#allocation5 + $0x950] sm:$0xff]
        %v2041 = vld [vmem:[#allocation5 + $0x958] sm:$0xff]
        %v2042 = vld [vmem:[#allocation5 + $0x960] sm:$0xff]
        %v2043 = vld [vmem:[#allocation5 + $0x968] sm:$0xff]
        %v2044 = vld [vmem:[#allocation5 + $0x970] sm:$0xff]
        %v2045 = vld [vmem:[#allocation5 + $0x978] sm:$0xff]
        %v2046 = vld [vmem:[#allocation5 + $0x980] sm:$0xff]
        %v2047 = vld [vmem:[#allocation5 + $0x988] sm:$0xff]
        %v2048 = vld [vmem:[#allocation5 + $0x990] sm:$0xff]
        %v2049 = vld [vmem:[#allocation5 + $0x998] sm:$0xff]
        %v2050 = vld [vmem:[#allocation5 + $0x9a0] sm:$0xff]
        %v2051 = vld [vmem:[#allocation5 + $0x9a8] sm:$0xff]
        %v2052 = vld [vmem:[#allocation5 + $0x9b0] sm:$0xff]
        %v2053 = vld [vmem:[#allocation5 + $0x9b8] sm:$0xff]
        %v2054 = vld [vmem:[#allocation5 + $0x9c0] sm:$0xff]
        %v2055 = vld [vmem:[#allocation5 + $0x9c8] sm:$0xff]
        %v2056 = vld [vmem:[#allocation5 + $0x9d0] sm:$0xff]
        %v2057 = vld [vmem:[#allocation5 + $0x9d8] sm:$0xff]
        %v2058 = vld [vmem:[#allocation5 + $0x9e0] sm:$0xff]
        %v2059 = vld [vmem:[#allocation5 + $0x9e8] sm:$0xff]
        %v2060 = vld [vmem:[#allocation5 + $0x9f0] sm:$0xff]
        %v2061 = vld [vmem:[#allocation5 + $0x9f8] sm:$0xff]
        %v2062 = vld [vmem:[#allocation5 + $0xa00] sm:$0xff]
        %v2063 = vld [vmem:[#allocation5 + $0xa08] sm:$0xff]
        %v2064 = vld [vmem:[#allocation5 + $0xa10] sm:$0xff]
        %v2065 = vld [vmem:[#allocation5 + $0xa18] sm:$0xff]
        %v2066 = vld [vmem:[#allocation5 + $0xa20] sm:$0xff]
        %v2067 = vld [vmem:[#allocation5 + $0xa28] sm:$0xff]
        %v2068 = vld [vmem:[#allocation5 + $0xa30] sm:$0xff]
        %v2069 = vld [vmem:[#allocation5 + $0xa38] sm:$0xff]
        %v2070 = vld [vmem:[#allocation5 + $0xa40] sm:$0xff]
        %v2071 = vld [vmem:[#allocation5 + $0xa48] sm:$0xff]
        %v2072 = vld [vmem:[#allocation5 + $0xa50] sm:$0xff]
        %v2073 = vld [vmem:[#allocation5 + $0xa58] sm:$0xff]
        %v2074 = vld [vmem:[#allocation5 + $0xa60] sm:$0xff]
        %v2075 = vld [vmem:[#allocation5 + $0xa68] sm:$0xff]
        %v2076 = vld [vmem:[#allocation5 + $0xa70] sm:$0xff]
        %v2077 = vld [vmem:[#allocation5 + $0xa78] sm:$0xff]
        %v2078 = vld [vmem:[#allocation5 + $0xa80] sm:$0xff]
        %v2079 = vld [vmem:[#allocation5 + $0xa88] sm:$0xff]
        %v2080 = vld [vmem:[#allocation5 + $0xa90] sm:$0xff]
        %v2081 = vld [vmem:[#allocation5 + $0xa98] sm:$0xff]
        %v2082 = vld [vmem:[#allocation5 + $0xaa0] sm:$0xff]
        %v2083 = vld [vmem:[#allocation5 + $0xaa8] sm:$0xff]
        %v2084 = vld [vmem:[#allocation5 + $0xab0] sm:$0xff]
        %v2085 = vld [vmem:[#allocation5 + $0xab8] sm:$0xff]
        %v2086 = vld [vmem:[#allocation5 + $0xac0] sm:$0xff]
        %v2087 = vld [vmem:[#allocation5 + $0xac8] sm:$0xff]
        %v2088 = vld [vmem:[#allocation5 + $0xad0] sm:$0xff]
        %v2089 = vld [vmem:[#allocation5 + $0xad8] sm:$0xff]
        %v2090 = vld [vmem:[#allocation5 + $0xae0] sm:$0xff]
        %v2091 = vld [vmem:[#allocation5 + $0xae8] sm:$0xff]
        %v2092 = vld [vmem:[#allocation5 + $0xaf0] sm:$0xff]
        %v2093 = vld [vmem:[#allocation5 + $0xaf8] sm:$0xff]
        %v2094 = vld [vmem:[#allocation5 + $0xb00] sm:$0xff]
        %v2095 = vld [vmem:[#allocation5 + $0xb08] sm:$0xff]
        %v2096 = vld [vmem:[#allocation5 + $0xb10] sm:$0xff]
        %v2097 = vld [vmem:[#allocation5 + $0xb18] sm:$0xff]
        %v2098 = vld [vmem:[#allocation5 + $0xb20] sm:$0xff]
        %v2099 = vld [vmem:[#allocation5 + $0xb28] sm:$0xff]
        %v2100 = vld [vmem:[#allocation5 + $0xb30] sm:$0xff]
        %v2101 = vld [vmem:[#allocation5 + $0xb38] sm:$0xff]
        %v2102 = vld [vmem:[#allocation5 + $0xb40] sm:$0xff]
        %v2103 = vld [vmem:[#allocation5 + $0xb48] sm:$0xff]
        %v2104 = vld [vmem:[#allocation5 + $0xb50] sm:$0xff]
        %v2105 = vld [vmem:[#allocation5 + $0xb58] sm:$0xff]
        %v2106 = vld [vmem:[#allocation5 + $0xb60] sm:$0xff]
        %v2107 = vld [vmem:[#allocation5 + $0xb68] sm:$0xff]
        %v2108 = vld [vmem:[#allocation5 + $0xb70] sm:$0xff]
        %v2109 = vld [vmem:[#allocation5 + $0xb78] sm:$0xff]
        %v2110 = vld [vmem:[#allocation5 + $0xb80] sm:$0xff]
        %v2111 = vld [vmem:[#allocation5 + $0xb88] sm:$0xff]
        %v2112 = vld [vmem:[#allocation5 + $0xb90] sm:$0xff]
        %v2113 = vld [vmem:[#allocation5 + $0xb98] sm:$0xff]
        %v2114 = vld [vmem:[#allocation5 + $0xba0] sm:$0xff]
        %v2115 = vld [vmem:[#allocation5 + $0xba8] sm:$0xff]
        %v2116 = vld [vmem:[#allocation5 + $0xbb0] sm:$0xff]
        %v2117 = vld [vmem:[#allocation5 + $0xbb8] sm:$0xff]
        %v2118 = vld [vmem:[#allocation5 + $0xbc0] sm:$0xff]
        %v2119 = vld [vmem:[#allocation5 + $0xbc8] sm:$0xff]
        %v2120 = vld [vmem:[#allocation5 + $0xbd0] sm:$0xff]
        %v2121 = vld [vmem:[#allocation5 + $0xbd8] sm:$0xff]
        %v2122 = vld [vmem:[#allocation5 + $0xbe0] sm:$0xff]
        %v2123 = vld [vmem:[#allocation5 + $0xbe8] sm:$0xff]
        %v2124 = vld [vmem:[#allocation5 + $0xbf0] sm:$0xff]
        %v2125 = vld [vmem:[#allocation5 + $0xbf8] sm:$0xff]
        %v2126 = vld [vmem:[#allocation5 + $0xc00] sm:$0xff]
        %v2127 = vld [vmem:[#allocation5 + $0xc08] sm:$0xff]
        %v2128 = vld [vmem:[#allocation5 + $0xc10] sm:$0xff]
        %v2129 = vld [vmem:[#allocation5 + $0xc18] sm:$0xff]
        %v2130 = vld [vmem:[#allocation5 + $0xc20] sm:$0xff]
        %v2131 = vld [vmem:[#allocation5 + $0xc28] sm:$0xff]
        %v2132 = vld [vmem:[#allocation5 + $0xc30] sm:$0xff]
        %v2133 = vld [vmem:[#allocation5 + $0xc38] sm:$0xff]
        %v2134 = vld [vmem:[#allocation5 + $0xc40] sm:$0xff]
        %v2135 = vld [vmem:[#allocation5 + $0xc48] sm:$0xff]
        %v2136 = vld [vmem:[#allocation5 + $0xc50] sm:$0xff]
        %v2137 = vld [vmem:[#allocation5 + $0xc58] sm:$0xff]
        %v2138 = vld [vmem:[#allocation5 + $0xc60] sm:$0xff]
        %v2139 = vld [vmem:[#allocation5 + $0xc68] sm:$0xff]
        %v2140 = vld [vmem:[#allocation5 + $0xc70] sm:$0xff]
        %v2141 = vld [vmem:[#allocation5 + $0xc78] sm:$0xff]
        %v2142 = vld [vmem:[#allocation5 + $0xc80] sm:$0xff]
        %v2143 = vld [vmem:[#allocation5 + $0xc88] sm:$0xff]
        %v2144 = vld [vmem:[#allocation5 + $0xc90] sm:$0xff]
        %v2145 = vld [vmem:[#allocation5 + $0xc98] sm:$0xff]
        %v2146 = vld [vmem:[#allocation5 + $0xca0] sm:$0xff]
        %v2147 = vld [vmem:[#allocation5 + $0xca8] sm:$0xff]
        %v2148 = vld [vmem:[#allocation5 + $0xcb0] sm:$0xff]
        %v2149 = vld [vmem:[#allocation5 + $0xcb8] sm:$0xff]
        %v2150 = vld [vmem:[#allocation5 + $0xcc0] sm:$0xff]
        %v2151 = vld [vmem:[#allocation5 + $0xcc8] sm:$0xff]
        %v2152 = vld [vmem:[#allocation5 + $0xcd0] sm:$0xff]
        %v2153 = vld [vmem:[#allocation5 + $0xcd8] sm:$0xff]
        %v2154 = vld [vmem:[#allocation5 + $0xce0] sm:$0xff]
        %v2155 = vld [vmem:[#allocation5 + $0xce8] sm:$0xff]
        %v2156 = vld [vmem:[#allocation5 + $0xcf0] sm:$0xff]
        %v2157 = vld [vmem:[#allocation5 + $0xcf8] sm:$0xff]
        %v2158 = vld [vmem:[#allocation5 + $0xd00] sm:$0xff]
        %v2159 = vld [vmem:[#allocation5 + $0xd08] sm:$0xff]
        %v2160 = vld [vmem:[#allocation5 + $0xd10] sm:$0xff]
        %v2161 = vld [vmem:[#allocation5 + $0xd18] sm:$0xff]
        %v2162 = vld [vmem:[#allocation5 + $0xd20] sm:$0xff]
        %v2163 = vld [vmem:[#allocation5 + $0xd28] sm:$0xff]
        %v2164 = vld [vmem:[#allocation5 + $0xd30] sm:$0xff]
        %v2165 = vld [vmem:[#allocation5 + $0xd38] sm:$0xff]
        %v2166 = vld [vmem:[#allocation5 + $0xd40] sm:$0xff]
        %v2167 = vld [vmem:[#allocation5 + $0xd48] sm:$0xff]
        %v2168 = vld [vmem:[#allocation5 + $0xd50] sm:$0xff]
        %v2169 = vld [vmem:[#allocation5 + $0xd58] sm:$0xff]
        %v2170 = vld [vmem:[#allocation5 + $0xd60] sm:$0xff]
        %v2171 = vld [vmem:[#allocation5 + $0xd68] sm:$0xff]
        %v2172 = vld [vmem:[#allocation5 + $0xd70] sm:$0xff]
        %v2173 = vld [vmem:[#allocation5 + $0xd78] sm:$0xff]
        %v2174 = vld [vmem:[#allocation5 + $0xd80] sm:$0xff]
        %v2175 = vld [vmem:[#allocation5 + $0xd88] sm:$0xff]
        %v2176 = vld [vmem:[#allocation5 + $0xd90] sm:$0xff]
        %v2177 = vld [vmem:[#allocation5 + $0xd98] sm:$0xff]
        %v2178 = vld [vmem:[#allocation5 + $0xda0] sm:$0xff]
        %v2179 = vld [vmem:[#allocation5 + $0xda8] sm:$0xff]
        %v2180 = vld [vmem:[#allocation5 + $0xdb0] sm:$0xff]
        %v2181 = vld [vmem:[#allocation5 + $0xdb8] sm:$0xff]
        %v2182 = vld [vmem:[#allocation5 + $0xdc0] sm:$0xff]
        %v2183 = vld [vmem:[#allocation5 + $0xdc8] sm:$0xff]
        %v2184 = vld [vmem:[#allocation5 + $0xdd0] sm:$0xff]
        %v2185 = vld [vmem:[#allocation5 + $0xdd8] sm:$0xff]
        %v2186 = vld [vmem:[#allocation5 + $0xde0] sm:$0xff]
        %v2187 = vld [vmem:[#allocation5 + $0xde8] sm:$0xff]
        %v2188 = vld [vmem:[#allocation5 + $0xdf0] sm:$0xff]
        %v2189 = vld [vmem:[#allocation5 + $0xdf8] sm:$0xff]
        %v2190 = vld [vmem:[#allocation5 + $0xe00] sm:$0xff]
        %v2191 = vld [vmem:[#allocation5 + $0xe08] sm:$0xff]
        %v2192 = vld [vmem:[#allocation5 + $0xe10] sm:$0xff]
        %v2193 = vld [vmem:[#allocation5 + $0xe18] sm:$0xff]
        %v2194 = vld [vmem:[#allocation5 + $0xe20] sm:$0xff]
        %v2195 = vld [vmem:[#allocation5 + $0xe28] sm:$0xff]
        %v2196 = vld [vmem:[#allocation5 + $0xe30] sm:$0xff]
        %v2197 = vld [vmem:[#allocation5 + $0xe38] sm:$0xff]
        %v2198 = vld [vmem:[#allocation5 + $0xe40] sm:$0xff]
        %v2199 = vld [vmem:[#allocation5 + $0xe48] sm:$0xff]
        %v2200 = vld [vmem:[#allocation5 + $0xe50] sm:$0xff]
        %v2201 = vld [vmem:[#allocation5 + $0xe58] sm:$0xff]
        %v2202 = vld [vmem:[#allocation5 + $0xe60] sm:$0xff]
        %v2203 = vld [vmem:[#allocation5 + $0xe68] sm:$0xff]
        %v2204 = vld [vmem:[#allocation5 + $0xe70] sm:$0xff]
        %v2205 = vld [vmem:[#allocation5 + $0xe78] sm:$0xff]
        %v2206 = vld [vmem:[#allocation5 + $0xe80] sm:$0xff]
        %v2207 = vld [vmem:[#allocation5 + $0xe88] sm:$0xff]
        %v2208 = vld [vmem:[#allocation5 + $0xe90] sm:$0xff]
        %v2209 = vld [vmem:[#allocation5 + $0xe98] sm:$0xff]
        %v2210 = vld [vmem:[#allocation5 + $0xea0] sm:$0xff]
        %v2211 = vld [vmem:[#allocation5 + $0xea8] sm:$0xff]
        %v2212 = vld [vmem:[#allocation5 + $0xeb0] sm:$0xff]
        %v2213 = vld [vmem:[#allocation5 + $0xeb8] sm:$0xff]
        %v2214 = vld [vmem:[#allocation5 + $0xec0] sm:$0xff]
        %v2215 = vld [vmem:[#allocation5 + $0xec8] sm:$0xff]
        %v2216 = vld [vmem:[#allocation5 + $0xed0] sm:$0xff]
        %v2217 = vld [vmem:[#allocation5 + $0xed8] sm:$0xff]
        %v2218 = vld [vmem:[#allocation5 + $0xee0] sm:$0xff]
        %v2219 = vld [vmem:[#allocation5 + $0xee8] sm:$0xff]
        %v2220 = vld [vmem:[#allocation5 + $0xef0] sm:$0xff]
        %v2221 = vld [vmem:[#allocation5 + $0xef8] sm:$0xff]
        %v2222 = vld [vmem:[#allocation5 + $0xf00] sm:$0xff]
        %v2223 = vld [vmem:[#allocation5 + $0xf08] sm:$0xff]
        %v2224 = vld [vmem:[#allocation5 + $0xf10] sm:$0xff]
        %v2225 = vld [vmem:[#allocation5 + $0xf18] sm:$0xff]
        %v2226 = vld [vmem:[#allocation5 + $0xf20] sm:$0xff]
        %v2227 = vld [vmem:[#allocation5 + $0xf28] sm:$0xff]
        %v2228 = vld [vmem:[#allocation5 + $0xf30] sm:$0xff]
        %v2229 = vld [vmem:[#allocation5 + $0xf38] sm:$0xff]
        %v2230 = vld [vmem:[#allocation5 + $0xf40] sm:$0xff]
        %v2231 = vld [vmem:[#allocation5 + $0xf48] sm:$0xff]
        %v2232 = vld [vmem:[#allocation5 + $0xf50] sm:$0xff]
        %v2233 = vld [vmem:[#allocation5 + $0xf58] sm:$0xff]
        %v2234 = vld [vmem:[#allocation5 + $0xf60] sm:$0xff]
        %v2235 = vld [vmem:[#allocation5 + $0xf68] sm:$0xff]
        %v2236 = vld [vmem:[#allocation5 + $0xf70] sm:$0xff]
        %v2237 = vld [vmem:[#allocation5 + $0xf78] sm:$0xff]
        %v2238 = vld [vmem:[#allocation5 + $0xf80] sm:$0xff]
        %v2239 = vld [vmem:[#allocation5 + $0xf88] sm:$0xff]
        %v2240 = vld [vmem:[#allocation5 + $0xf90] sm:$0xff]
        %v2241 = vld [vmem:[#allocation5 + $0xf98] sm:$0xff]
        %v2242 = vld [vmem:[#allocation5 + $0xfa0] sm:$0xff]
        %v2243 = vld [vmem:[#allocation5 + $0xfa8] sm:$0xff]
        %v2244 = vld [vmem:[#allocation5 + $0xfb0] sm:$0xff]
        %v2245 = vld [vmem:[#allocation5 + $0xfb8] sm:$0xff]
        %v2246 = vld [vmem:[#allocation5 + $0xfc0] sm:$0xff]
        %v2247 = vld [vmem:[#allocation5 + $0xfc8] sm:$0xff]
        %v2248 = vld [vmem:[#allocation5 + $0xfd0] sm:$0xff]
        %v2249 = vld [vmem:[#allocation5 + $0xfd8] sm:$0xff]
        %v2250 = vld [vmem:[#allocation5 + $0xfe0] sm:$0xff]
        %v2251 = vld [vmem:[#allocation5 + $0xfe8] sm:$0xff]
        %v2252 = vld [vmem:[#allocation5 + $0xff0] sm:$0xff]
        %v2253 = vld [vmem:[#allocation5 + $0xff8] sm:$0xff]
        %v2254 = vmul.f32 %v719, %v1742
        %v2255 = vmul.f32 %v721, %v1743
        %v2256 = vmul.f32 %v723, %v1744
        %v2257 = vmul.f32 %v725, %v1745
        %v2258 = vmul.f32 %v727, %v1746
        %v2259 = vmul.f32 %v729, %v1747
        %v2260 = vmul.f32 %v731, %v1748
        %v2261 = vmul.f32 %v733, %v1749
        %v2262 = vmul.f32 %v735, %v1750
        %v2263 = vmul.f32 %v737, %v1751
        %v2264 = vmul.f32 %v739, %v1752
        %v2265 = vmul.f32 %v741, %v1753
        %v2266 = vmul.f32 %v743, %v1754
        %v2267 = vmul.f32 %v745, %v1755
        %v2268 = vmul.f32 %v747, %v1756
        %v2269 = vmul.f32 %v749, %v1757
        %v2270 = vmul.f32 %v751, %v1758
        %v2271 = vmul.f32 %v753, %v1759
        %v2272 = vmul.f32 %v755, %v1760
        %v2273 = vmul.f32 %v757, %v1761
        %v2274 = vmul.f32 %v759, %v1762
        %v2275 = vmul.f32 %v761, %v1763
        %v2276 = vmul.f32 %v763, %v1764
        %v2277 = vmul.f32 %v765, %v1765
        %v2278 = vmul.f32 %v767, %v1766
        %v2279 = vmul.f32 %v769, %v1767
        %v2280 = vmul.f32 %v771, %v1768
        %v2281 = vmul.f32 %v773, %v1769
        %v2282 = vmul.f32 %v775, %v1770
        %v2283 = vmul.f32 %v777, %v1771
        %v2284 = vmul.f32 %v779, %v1772
        %v2285 = vmul.f32 %v781, %v1773
        %v2286 = vmul.f32 %v783, %v1774
        %v2287 = vmul.f32 %v785, %v1775
        %v2288 = vmul.f32 %v787, %v1776
        %v2289 = vmul.f32 %v789, %v1777
        %v2290 = vmul.f32 %v791, %v1778
        %v2291 = vmul.f32 %v793, %v1779
        %v2292 = vmul.f32 %v795, %v1780
        %v2293 = vmul.f32 %v797, %v1781
        %v2294 = vmul.f32 %v799, %v1782
        %v2295 = vmul.f32 %v801, %v1783
        %v2296 = vmul.f32 %v803, %v1784
        %v2297 = vmul.f32 %v805, %v1785
        %v2298 = vmul.f32 %v807, %v1786
        %v2299 = vmul.f32 %v809, %v1787
        %v2300 = vmul.f32 %v811, %v1788
        %v2301 = vmul.f32 %v813, %v1789
        %v2302 = vmul.f32 %v815, %v1790
        %v2303 = vmul.f32 %v817, %v1791
        %v2304 = vmul.f32 %v819, %v1792
        %v2305 = vmul.f32 %v821, %v1793
        %v2306 = vmul.f32 %v823, %v1794
        %v2307 = vmul.f32 %v825, %v1795
        %v2308 = vmul.f32 %v827, %v1796
        %v2309 = vmul.f32 %v829, %v1797
        %v2310 = vmul.f32 %v831, %v1798
        %v2311 = vmul.f32 %v833, %v1799
        %v2312 = vmul.f32 %v835, %v1800
        %v2313 = vmul.f32 %v837, %v1801
        %v2314 = vmul.f32 %v839, %v1802
        %v2315 = vmul.f32 %v841, %v1803
        %v2316 = vmul.f32 %v843, %v1804
        %v2317 = vmul.f32 %v845, %v1805
        %v2318 = vmul.f32 %v847, %v1806
        %v2319 = vmul.f32 %v849, %v1807
        %v2320 = vmul.f32 %v851, %v1808
        %v2321 = vmul.f32 %v853, %v1809
        %v2322 = vmul.f32 %v855, %v1810
        %v2323 = vmul.f32 %v857, %v1811
        %v2324 = vmul.f32 %v859, %v1812
        %v2325 = vmul.f32 %v861, %v1813
        %v2326 = vmul.f32 %v863, %v1814
        %v2327 = vmul.f32 %v865, %v1815
        %v2328 = vmul.f32 %v867, %v1816
        %v2329 = vmul.f32 %v869, %v1817
        %v2330 = vmul.f32 %v871, %v1818
        %v2331 = vmul.f32 %v873, %v1819
        %v2332 = vmul.f32 %v875, %v1820
        %v2333 = vmul.f32 %v877, %v1821
        %v2334 = vmul.f32 %v879, %v1822
        %v2335 = vmul.f32 %v881, %v1823
        %v2336 = vmul.f32 %v883, %v1824
        %v2337 = vmul.f32 %v885, %v1825
        %v2338 = vmul.f32 %v887, %v1826
        %v2339 = vmul.f32 %v889, %v1827
        %v2340 = vmul.f32 %v891, %v1828
        %v2341 = vmul.f32 %v893, %v1829
        %v2342 = vmul.f32 %v895, %v1830
        %v2343 = vmul.f32 %v897, %v1831
        %v2344 = vmul.f32 %v899, %v1832
        %v2345 = vmul.f32 %v901, %v1833
        %v2346 = vmul.f32 %v903, %v1834
        %v2347 = vmul.f32 %v905, %v1835
        %v2348 = vmul.f32 %v907, %v1836
        %v2349 = vmul.f32 %v909, %v1837
        %v2350 = vmul.f32 %v911, %v1838
        %v2351 = vmul.f32 %v913, %v1839
        %v2352 = vmul.f32 %v915, %v1840
        %v2353 = vmul.f32 %v917, %v1841
        %v2354 = vmul.f32 %v919, %v1842
        %v2355 = vmul.f32 %v921, %v1843
        %v2356 = vmul.f32 %v923, %v1844
        %v2357 = vmul.f32 %v925, %v1845
        %v2358 = vmul.f32 %v927, %v1846
        %v2359 = vmul.f32 %v929, %v1847
        %v2360 = vmul.f32 %v931, %v1848
        %v2361 = vmul.f32 %v933, %v1849
        %v2362 = vmul.f32 %v935, %v1850
        %v2363 = vmul.f32 %v937, %v1851
        %v2364 = vmul.f32 %v939, %v1852
        %v2365 = vmul.f32 %v941, %v1853
        %v2366 = vmul.f32 %v943, %v1854
        %v2367 = vmul.f32 %v945, %v1855
        %v2368 = vmul.f32 %v947, %v1856
        %v2369 = vmul.f32 %v949, %v1857
        %v2370 = vmul.f32 %v951, %v1858
        %v2371 = vmul.f32 %v953, %v1859
        %v2372 = vmul.f32 %v955, %v1860
        %v2373 = vmul.f32 %v957, %v1861
        %v2374 = vmul.f32 %v959, %v1862
        %v2375 = vmul.f32 %v961, %v1863
        %v2376 = vmul.f32 %v963, %v1864
        %v2377 = vmul.f32 %v965, %v1865
        %v2378 = vmul.f32 %v967, %v1866
        %v2379 = vmul.f32 %v969, %v1867
        %v2380 = vmul.f32 %v971, %v1868
        %v2381 = vmul.f32 %v973, %v1869
        %v2382 = vmul.f32 %v975, %v1870
        %v2383 = vmul.f32 %v977, %v1871
        %v2384 = vmul.f32 %v979, %v1872
        %v2385 = vmul.f32 %v981, %v1873
        %v2386 = vmul.f32 %v983, %v1874
        %v2387 = vmul.f32 %v985, %v1875
        %v2388 = vmul.f32 %v987, %v1876
        %v2389 = vmul.f32 %v989, %v1877
        %v2390 = vmul.f32 %v991, %v1878
        %v2391 = vmul.f32 %v993, %v1879
        %v2392 = vmul.f32 %v995, %v1880
        %v2393 = vmul.f32 %v997, %v1881
        %v2394 = vmul.f32 %v999, %v1882
        %v2395 = vmul.f32 %v1001, %v1883
        %v2396 = vmul.f32 %v1003, %v1884
        %v2397 = vmul.f32 %v1005, %v1885
        %v2398 = vmul.f32 %v1007, %v1886
        %v2399 = vmul.f32 %v1009, %v1887
        %v2400 = vmul.f32 %v1011, %v1888
        %v2401 = vmul.f32 %v1013, %v1889
        %v2402 = vmul.f32 %v1015, %v1890
        %v2403 = vmul.f32 %v1017, %v1891
        %v2404 = vmul.f32 %v1019, %v1892
        %v2405 = vmul.f32 %v1021, %v1893
        %v2406 = vmul.f32 %v1023, %v1894
        %v2407 = vmul.f32 %v1025, %v1895
        %v2408 = vmul.f32 %v1027, %v1896
        %v2409 = vmul.f32 %v1029, %v1897
        %v2410 = vmul.f32 %v1031, %v1898
        %v2411 = vmul.f32 %v1033, %v1899
        %v2412 = vmul.f32 %v1035, %v1900
        %v2413 = vmul.f32 %v1037, %v1901
        %v2414 = vmul.f32 %v1039, %v1902
        %v2415 = vmul.f32 %v1041, %v1903
        %v2416 = vmul.f32 %v1043, %v1904
        %v2417 = vmul.f32 %v1045, %v1905
        %v2418 = vmul.f32 %v1047, %v1906
        %v2419 = vmul.f32 %v1049, %v1907
        %v2420 = vmul.f32 %v1051, %v1908
        %v2421 = vmul.f32 %v1053, %v1909
        %v2422 = vmul.f32 %v1055, %v1910
        %v2423 = vmul.f32 %v1057, %v1911
        %v2424 = vmul.f32 %v1059, %v1912
        %v2425 = vmul.f32 %v1061, %v1913
        %v2426 = vmul.f32 %v1063, %v1914
        %v2427 = vmul.f32 %v1065, %v1915
        %v2428 = vmul.f32 %v1067, %v1916
        %v2429 = vmul.f32 %v1069, %v1917
        %v2430 = vmul.f32 %v1071, %v1918
        %v2431 = vmul.f32 %v1073, %v1919
        %v2432 = vmul.f32 %v1075, %v1920
        %v2433 = vmul.f32 %v1077, %v1921
        %v2434 = vmul.f32 %v1079, %v1922
        %v2435 = vmul.f32 %v1081, %v1923
        %v2436 = vmul.f32 %v1083, %v1924
        %v2437 = vmul.f32 %v1085, %v1925
        %v2438 = vmul.f32 %v1087, %v1926
        %v2439 = vmul.f32 %v1089, %v1927
        %v2440 = vmul.f32 %v1091, %v1928
        %v2441 = vmul.f32 %v1093, %v1929
        %v2442 = vmul.f32 %v1095, %v1930
        %v2443 = vmul.f32 %v1097, %v1931
        %v2444 = vmul.f32 %v1099, %v1932
        %v2445 = vmul.f32 %v1101, %v1933
        %v2446 = vmul.f32 %v1103, %v1934
        %v2447 = vmul.f32 %v1105, %v1935
        %v2448 = vmul.f32 %v1107, %v1936
        %v2449 = vmul.f32 %v1109, %v1937
        %v2450 = vmul.f32 %v1111, %v1938
        %v2451 = vmul.f32 %v1113, %v1939
        %v2452 = vmul.f32 %v1115, %v1940
        %v2453 = vmul.f32 %v1117, %v1941
        %v2454 = vmul.f32 %v1119, %v1942
        %v2455 = vmul.f32 %v1121, %v1943
        %v2456 = vmul.f32 %v1123, %v1944
        %v2457 = vmul.f32 %v1125, %v1945
        %v2458 = vmul.f32 %v1127, %v1946
        %v2459 = vmul.f32 %v1129, %v1947
        %v2460 = vmul.f32 %v1131, %v1948
        %v2461 = vmul.f32 %v1133, %v1949
        %v2462 = vmul.f32 %v1135, %v1950
        %v2463 = vmul.f32 %v1137, %v1951
        %v2464 = vmul.f32 %v1139, %v1952
        %v2465 = vmul.f32 %v1141, %v1953
        %v2466 = vmul.f32 %v1143, %v1954
        %v2467 = vmul.f32 %v1145, %v1955
        %v2468 = vmul.f32 %v1147, %v1956
        %v2469 = vmul.f32 %v1149, %v1957
        %v2470 = vmul.f32 %v1151, %v1958
        %v2471 = vmul.f32 %v1153, %v1959
        %v2472 = vmul.f32 %v1155, %v1960
        %v2473 = vmul.f32 %v1157, %v1961
        %v2474 = vmul.f32 %v1159, %v1962
        %v2475 = vmul.f32 %v1161, %v1963
        %v2476 = vmul.f32 %v1163, %v1964
        %v2477 = vmul.f32 %v1165, %v1965
        %v2478 = vmul.f32 %v1167, %v1966
        %v2479 = vmul.f32 %v1169, %v1967
        %v2480 = vmul.f32 %v1171, %v1968
        %v2481 = vmul.f32 %v1173, %v1969
        %v2482 = vmul.f32 %v1175, %v1970
        %v2483 = vmul.f32 %v1177, %v1971
        %v2484 = vmul.f32 %v1179, %v1972
        %v2485 = vmul.f32 %v1181, %v1973
        %v2486 = vmul.f32 %v1183, %v1974
        %v2487 = vmul.f32 %v1185, %v1975
        %v2488 = vmul.f32 %v1187, %v1976
        %v2489 = vmul.f32 %v1189, %v1977
        %v2490 = vmul.f32 %v1191, %v1978
        %v2491 = vmul.f32 %v1193, %v1979
        %v2492 = vmul.f32 %v1195, %v1980
        %v2493 = vmul.f32 %v1197, %v1981
        %v2494 = vmul.f32 %v1199, %v1982
        %v2495 = vmul.f32 %v1201, %v1983
        %v2496 = vmul.f32 %v1203, %v1984
        %v2497 = vmul.f32 %v1205, %v1985
        %v2498 = vmul.f32 %v1207, %v1986
        %v2499 = vmul.f32 %v1209, %v1987
        %v2500 = vmul.f32 %v1211, %v1988
        %v2501 = vmul.f32 %v1213, %v1989
        %v2502 = vmul.f32 %v1215, %v1990
        %v2503 = vmul.f32 %v1217, %v1991
        %v2504 = vmul.f32 %v1219, %v1992
        %v2505 = vmul.f32 %v1221, %v1993
        %v2506 = vmul.f32 %v1223, %v1994
        %v2507 = vmul.f32 %v1225, %v1995
        %v2508 = vmul.f32 %v1227, %v1996
        %v2509 = vmul.f32 %v1229, %v1997
        %v2510 = vmul.f32 %v1231, %v1998
        %v2511 = vmul.f32 %v1233, %v1999
        %v2512 = vmul.f32 %v1235, %v2000
        %v2513 = vmul.f32 %v1237, %v2001
        %v2514 = vmul.f32 %v1239, %v2002
        %v2515 = vmul.f32 %v1241, %v2003
        %v2516 = vmul.f32 %v1243, %v2004
        %v2517 = vmul.f32 %v1245, %v2005
        %v2518 = vmul.f32 %v1247, %v2006
        %v2519 = vmul.f32 %v1249, %v2007
        %v2520 = vmul.f32 %v1251, %v2008
        %v2521 = vmul.f32 %v1253, %v2009
        %v2522 = vmul.f32 %v1255, %v2010
        %v2523 = vmul.f32 %v1257, %v2011
        %v2524 = vmul.f32 %v1259, %v2012
        %v2525 = vmul.f32 %v1261, %v2013
        %v2526 = vmul.f32 %v1263, %v2014
        %v2527 = vmul.f32 %v1265, %v2015
        %v2528 = vmul.f32 %v1267, %v2016
        %v2529 = vmul.f32 %v1269, %v2017
        %v2530 = vmul.f32 %v1271, %v2018
        %v2531 = vmul.f32 %v1273, %v2019
        %v2532 = vmul.f32 %v1275, %v2020
        %v2533 = vmul.f32 %v1277, %v2021
        %v2534 = vmul.f32 %v1279, %v2022
        %v2535 = vmul.f32 %v1281, %v2023
        %v2536 = vmul.f32 %v1283, %v2024
        %v2537 = vmul.f32 %v1285, %v2025
        %v2538 = vmul.f32 %v1287, %v2026
        %v2539 = vmul.f32 %v1289, %v2027
        %v2540 = vmul.f32 %v1291, %v2028
        %v2541 = vmul.f32 %v1293, %v2029
        %v2542 = vmul.f32 %v1295, %v2030
        %v2543 = vmul.f32 %v1297, %v2031
        %v2544 = vmul.f32 %v1299, %v2032
        %v2545 = vmul.f32 %v1301, %v2033
        %v2546 = vmul.f32 %v1303, %v2034
        %v2547 = vmul.f32 %v1305, %v2035
        %v2548 = vmul.f32 %v1307, %v2036
        %v2549 = vmul.f32 %v1309, %v2037
        %v2550 = vmul.f32 %v1311, %v2038
        %v2551 = vmul.f32 %v1313, %v2039
        %v2552 = vmul.f32 %v1315, %v2040
        %v2553 = vmul.f32 %v1317, %v2041
        %v2554 = vmul.f32 %v1319, %v2042
        %v2555 = vmul.f32 %v1321, %v2043
        %v2556 = vmul.f32 %v1323, %v2044
        %v2557 = vmul.f32 %v1325, %v2045
        %v2558 = vmul.f32 %v1327, %v2046
        %v2559 = vmul.f32 %v1329, %v2047
        %v2560 = vmul.f32 %v1331, %v2048
        %v2561 = vmul.f32 %v1333, %v2049
        %v2562 = vmul.f32 %v1335, %v2050
        %v2563 = vmul.f32 %v1337, %v2051
        %v2564 = vmul.f32 %v1339, %v2052
        %v2565 = vmul.f32 %v1341, %v2053
        %v2566 = vmul.f32 %v1343, %v2054
        %v2567 = vmul.f32 %v1345, %v2055
        %v2568 = vmul.f32 %v1347, %v2056
        %v2569 = vmul.f32 %v1349, %v2057
        %v2570 = vmul.f32 %v1351, %v2058
        %v2571 = vmul.f32 %v1353, %v2059
        %v2572 = vmul.f32 %v1355, %v2060
        %v2573 = vmul.f32 %v1357, %v2061
        %v2574 = vmul.f32 %v1359, %v2062
        %v2575 = vmul.f32 %v1361, %v2063
        %v2576 = vmul.f32 %v1363, %v2064
        %v2577 = vmul.f32 %v1365, %v2065
        %v2578 = vmul.f32 %v1367, %v2066
        %v2579 = vmul.f32 %v1369, %v2067
        %v2580 = vmul.f32 %v1371, %v2068
        %v2581 = vmul.f32 %v1373, %v2069
        %v2582 = vmul.f32 %v1375, %v2070
        %v2583 = vmul.f32 %v1377, %v2071
        %v2584 = vmul.f32 %v1379, %v2072
        %v2585 = vmul.f32 %v1381, %v2073
        %v2586 = vmul.f32 %v1383, %v2074
        %v2587 = vmul.f32 %v1385, %v2075
        %v2588 = vmul.f32 %v1387, %v2076
        %v2589 = vmul.f32 %v1389, %v2077
        %v2590 = vmul.f32 %v1391, %v2078
        %v2591 = vmul.f32 %v1393, %v2079
        %v2592 = vmul.f32 %v1395, %v2080
        %v2593 = vmul.f32 %v1397, %v2081
        %v2594 = vmul.f32 %v1399, %v2082
        %v2595 = vmul.f32 %v1401, %v2083
        %v2596 = vmul.f32 %v1403, %v2084
        %v2597 = vmul.f32 %v1405, %v2085
        %v2598 = vmul.f32 %v1407, %v2086
        %v2599 = vmul.f32 %v1409, %v2087
        %v2600 = vmul.f32 %v1411, %v2088
        %v2601 = vmul.f32 %v1413, %v2089
        %v2602 = vmul.f32 %v1415, %v2090
        %v2603 = vmul.f32 %v1417, %v2091
        %v2604 = vmul.f32 %v1419, %v2092
        %v2605 = vmul.f32 %v1421, %v2093
        %v2606 = vmul.f32 %v1423, %v2094
        %v2607 = vmul.f32 %v1425, %v2095
        %v2608 = vmul.f32 %v1427, %v2096
        %v2609 = vmul.f32 %v1429, %v2097
        %v2610 = vmul.f32 %v1431, %v2098
        %v2611 = vmul.f32 %v1433, %v2099
        %v2612 = vmul.f32 %v1435, %v2100
        %v2613 = vmul.f32 %v1437, %v2101
        %v2614 = vmul.f32 %v1439, %v2102
        %v2615 = vmul.f32 %v1441, %v2103
        %v2616 = vmul.f32 %v1443, %v2104
        %v2617 = vmul.f32 %v1445, %v2105
        %v2618 = vmul.f32 %v1447, %v2106
        %v2619 = vmul.f32 %v1449, %v2107
        %v2620 = vmul.f32 %v1451, %v2108
        %v2621 = vmul.f32 %v1453, %v2109
        %v2622 = vmul.f32 %v1455, %v2110
        %v2623 = vmul.f32 %v1457, %v2111
        %v2624 = vmul.f32 %v1459, %v2112
        %v2625 = vmul.f32 %v1461, %v2113
        %v2626 = vmul.f32 %v1463, %v2114
        %v2627 = vmul.f32 %v1465, %v2115
        %v2628 = vmul.f32 %v1467, %v2116
        %v2629 = vmul.f32 %v1469, %v2117
        %v2630 = vmul.f32 %v1471, %v2118
        %v2631 = vmul.f32 %v1473, %v2119
        %v2632 = vmul.f32 %v1475, %v2120
        %v2633 = vmul.f32 %v1477, %v2121
        %v2634 = vmul.f32 %v1479, %v2122
        %v2635 = vmul.f32 %v1481, %v2123
        %v2636 = vmul.f32 %v1483, %v2124
        %v2637 = vmul.f32 %v1485, %v2125
        %v2638 = vmul.f32 %v1487, %v2126
        %v2639 = vmul.f32 %v1489, %v2127
        %v2640 = vmul.f32 %v1491, %v2128
        %v2641 = vmul.f32 %v1493, %v2129
        %v2642 = vmul.f32 %v1495, %v2130
        %v2643 = vmul.f32 %v1497, %v2131
        %v2644 = vmul.f32 %v1499, %v2132
        %v2645 = vmul.f32 %v1501, %v2133
        %v2646 = vmul.f32 %v1503, %v2134
        %v2647 = vmul.f32 %v1505, %v2135
        %v2648 = vmul.f32 %v1507, %v2136
        %v2649 = vmul.f32 %v1509, %v2137
        %v2650 = vmul.f32 %v1511, %v2138
        %v2651 = vmul.f32 %v1513, %v2139
        %v2652 = vmul.f32 %v1515, %v2140
        %v2653 = vmul.f32 %v1517, %v2141
        %v2654 = vmul.f32 %v1519, %v2142
        %v2655 = vmul.f32 %v1521, %v2143
        %v2656 = vmul.f32 %v1523, %v2144
        %v2657 = vmul.f32 %v1525, %v2145
        %v2658 = vmul.f32 %v1527, %v2146
        %v2659 = vmul.f32 %v1529, %v2147
        %v2660 = vmul.f32 %v1531, %v2148
        %v2661 = vmul.f32 %v1533, %v2149
        %v2662 = vmul.f32 %v1535, %v2150
        %v2663 = vmul.f32 %v1537, %v2151
        %v2664 = vmul.f32 %v1539, %v2152
        %v2665 = vmul.f32 %v1541, %v2153
        %v2666 = vmul.f32 %v1543, %v2154
        %v2667 = vmul.f32 %v1545, %v2155
        %v2668 = vmul.f32 %v1547, %v2156
        %v2669 = vmul.f32 %v1549, %v2157
        %v2670 = vmul.f32 %v1551, %v2158
        %v2671 = vmul.f32 %v1553, %v2159
        %v2672 = vmul.f32 %v1555, %v2160
        %v2673 = vmul.f32 %v1557, %v2161
        %v2674 = vmul.f32 %v1559, %v2162
        %v2675 = vmul.f32 %v1561, %v2163
        %v2676 = vmul.f32 %v1563, %v2164
        %v2677 = vmul.f32 %v1565, %v2165
        %v2678 = vmul.f32 %v1567, %v2166
        %v2679 = vmul.f32 %v1569, %v2167
        %v2680 = vmul.f32 %v1571, %v2168
        %v2681 = vmul.f32 %v1573, %v2169
        %v2682 = vmul.f32 %v1575, %v2170
        %v2683 = vmul.f32 %v1577, %v2171
        %v2684 = vmul.f32 %v1579, %v2172
        %v2685 = vmul.f32 %v1581, %v2173
        %v2686 = vmul.f32 %v1583, %v2174
        %v2687 = vmul.f32 %v1585, %v2175
        %v2688 = vmul.f32 %v1587, %v2176
        %v2689 = vmul.f32 %v1589, %v2177
        %v2690 = vmul.f32 %v1591, %v2178
        %v2691 = vmul.f32 %v1593, %v2179
        %v2692 = vmul.f32 %v1595, %v2180
        %v2693 = vmul.f32 %v1597, %v2181
        %v2694 = vmul.f32 %v1599, %v2182
        %v2695 = vmul.f32 %v1601, %v2183
        %v2696 = vmul.f32 %v1603, %v2184
        %v2697 = vmul.f32 %v1605, %v2185
        %v2698 = vmul.f32 %v1607, %v2186
        %v2699 = vmul.f32 %v1609, %v2187
        %v2700 = vmul.f32 %v1611, %v2188
        %v2701 = vmul.f32 %v1613, %v2189
        %v2702 = vmul.f32 %v1615, %v2190
        %v2703 = vmul.f32 %v1617, %v2191
        %v2704 = vmul.f32 %v1619, %v2192
        %v2705 = vmul.f32 %v1621, %v2193
        %v2706 = vmul.f32 %v1623, %v2194
        %v2707 = vmul.f32 %v1625, %v2195
        %v2708 = vmul.f32 %v1627, %v2196
        %v2709 = vmul.f32 %v1629, %v2197
        %v2710 = vmul.f32 %v1631, %v2198
        %v2711 = vmul.f32 %v1633, %v2199
        %v2712 = vmul.f32 %v1635, %v2200
        %v2713 = vmul.f32 %v1637, %v2201
        %v2714 = vmul.f32 %v1639, %v2202
        %v2715 = vmul.f32 %v1641, %v2203
        %v2716 = vmul.f32 %v1643, %v2204
        %v2717 = vmul.f32 %v1645, %v2205
        %v2718 = vmul.f32 %v1647, %v2206
        %v2719 = vmul.f32 %v1649, %v2207
        %v2720 = vmul.f32 %v1651, %v2208
        %v2721 = vmul.f32 %v1653, %v2209
        %v2722 = vmul.f32 %v1655, %v2210
        %v2723 = vmul.f32 %v1657, %v2211
        %v2724 = vmul.f32 %v1659, %v2212
        %v2725 = vmul.f32 %v1661, %v2213
        %v2726 = vmul.f32 %v1663, %v2214
        %v2727 = vmul.f32 %v1665, %v2215
        %v2728 = vmul.f32 %v1667, %v2216
        %v2729 = vmul.f32 %v1669, %v2217
        %v2730 = vmul.f32 %v1671, %v2218
        %v2731 = vmul.f32 %v1673, %v2219
        %v2732 = vmul.f32 %v1675, %v2220
        %v2733 = vmul.f32 %v1677, %v2221
        %v2734 = vmul.f32 %v1679, %v2222
        %v2735 = vmul.f32 %v1681, %v2223
        %v2736 = vmul.f32 %v1683, %v2224
        %v2737 = vmul.f32 %v1685, %v2225
        %v2738 = vmul.f32 %v1687, %v2226
        %v2739 = vmul.f32 %v1689, %v2227
        %v2740 = vmul.f32 %v1691, %v2228
        %v2741 = vmul.f32 %v1693, %v2229
        %v2742 = vmul.f32 %v1695, %v2230
        %v2743 = vmul.f32 %v1697, %v2231
        %v2744 = vmul.f32 %v1699, %v2232
        %v2745 = vmul.f32 %v1701, %v2233
        %v2746 = vmul.f32 %v1703, %v2234
        %v2747 = vmul.f32 %v1705, %v2235
        %v2748 = vmul.f32 %v1707, %v2236
        %v2749 = vmul.f32 %v1709, %v2237
        %v2750 = vmul.f32 %v1711, %v2238
        %v2751 = vmul.f32 %v1713, %v2239
        %v2752 = vmul.f32 %v1715, %v2240
        %v2753 = vmul.f32 %v1717, %v2241
        %v2754 = vmul.f32 %v1719, %v2242
        %v2755 = vmul.f32 %v1721, %v2243
        %v2756 = vmul.f32 %v1723, %v2244
        %v2757 = vmul.f32 %v1725, %v2245
        %v2758 = vmul.f32 %v1727, %v2246
        %v2759 = vmul.f32 %v1729, %v2247
        %v2760 = vmul.f32 %v1731, %v2248
        %v2761 = vmul.f32 %v1733, %v2249
        %v2762 = vmul.f32 %v1735, %v2250
        %v2763 = vmul.f32 %v1737, %v2251
        %v2764 = vmul.f32 %v1739, %v2252
        %v2765 = vmul.f32 %v1741, %v2253
        %2766 = vst [vmem:[%s202] sm:$0xff] %v2254
        %2767 = vst [vmem:[%s202 + $0x8] sm:$0xff] %v2255
        %2768 = vst [vmem:[%s202 + $0x10] sm:$0xff] %v2256
        %2769 = vst [vmem:[%s202 + $0x18] sm:$0xff] %v2257
        %2770 = vst [vmem:[%s202 + $0x20] sm:$0xff] %v2258
        %2771 = vst [vmem:[%s202 + $0x28] sm:$0xff] %v2259
        %2772 = vst [vmem:[%s202 + $0x30] sm:$0xff] %v2260
        %2773 = vst [vmem:[%s202 + $0x38] sm:$0xff] %v2261
        %2774 = vst [vmem:[%s202 + $0x40] sm:$0xff] %v2262
        %2775 = vst [vmem:[%s202 + $0x48] sm:$0xff] %v2263
        %2776 = vst [vmem:[%s202 + $0x50] sm:$0xff] %v2264
        %2777 = vst [vmem:[%s202 + $0x58] sm:$0xff] %v2265
        %2778 = vst [vmem:[%s202 + $0x60] sm:$0xff] %v2266
        %2779 = vst [vmem:[%s202 + $0x68] sm:$0xff] %v2267
        %2780 = vst [vmem:[%s202 + $0x70] sm:$0xff] %v2268
        %2781 = vst [vmem:[%s202 + $0x78] sm:$0xff] %v2269
        %2782 = vst [vmem:[%s202 + $0x80] sm:$0xff] %v2270
        %2783 = vst [vmem:[%s202 + $0x88] sm:$0xff] %v2271
        %2784 = vst [vmem:[%s202 + $0x90] sm:$0xff] %v2272
        %2785 = vst [vmem:[%s202 + $0x98] sm:$0xff] %v2273
        %2786 = vst [vmem:[%s202 + $0xa0] sm:$0xff] %v2274
        %2787 = vst [vmem:[%s202 + $0xa8] sm:$0xff] %v2275
        %2788 = vst [vmem:[%s202 + $0xb0] sm:$0xff] %v2276
        %2789 = vst [vmem:[%s202 + $0xb8] sm:$0xff] %v2277
        %2790 = vst [vmem:[%s202 + $0xc0] sm:$0xff] %v2278
        %2791 = vst [vmem:[%s202 + $0xc8] sm:$0xff] %v2279
        %2792 = vst [vmem:[%s202 + $0xd0] sm:$0xff] %v2280
        %2793 = vst [vmem:[%s202 + $0xd8] sm:$0xff] %v2281
        %2794 = vst [vmem:[%s202 + $0xe0] sm:$0xff] %v2282
        %2795 = vst [vmem:[%s202 + $0xe8] sm:$0xff] %v2283
        %2796 = vst [vmem:[%s202 + $0xf0] sm:$0xff] %v2284
        %2797 = vst [vmem:[%s202 + $0xf8] sm:$0xff] %v2285
        %2798 = vst [vmem:[%s202 + $0x100] sm:$0xff] %v2286
        %2799 = vst [vmem:[%s202 + $0x108] sm:$0xff] %v2287
        %2800 = vst [vmem:[%s202 + $0x110] sm:$0xff] %v2288
        %2801 = vst [vmem:[%s202 + $0x118] sm:$0xff] %v2289
        %2802 = vst [vmem:[%s202 + $0x120] sm:$0xff] %v2290
        %2803 = vst [vmem:[%s202 + $0x128] sm:$0xff] %v2291
        %2804 = vst [vmem:[%s202 + $0x130] sm:$0xff] %v2292
        %2805 = vst [vmem:[%s202 + $0x138] sm:$0xff] %v2293
        %2806 = vst [vmem:[%s202 + $0x140] sm:$0xff] %v2294
        %2807 = vst [vmem:[%s202 + $0x148] sm:$0xff] %v2295
        %2808 = vst [vmem:[%s202 + $0x150] sm:$0xff] %v2296
        %2809 = vst [vmem:[%s202 + $0x158] sm:$0xff] %v2297
        %2810 = vst [vmem:[%s202 + $0x160] sm:$0xff] %v2298
        %2811 = vst [vmem:[%s202 + $0x168] sm:$0xff] %v2299
        %2812 = vst [vmem:[%s202 + $0x170] sm:$0xff] %v2300
        %2813 = vst [vmem:[%s202 + $0x178] sm:$0xff] %v2301
        %2814 = vst [vmem:[%s202 + $0x180] sm:$0xff] %v2302
        %2815 = vst [vmem:[%s202 + $0x188] sm:$0xff] %v2303
        %2816 = vst [vmem:[%s202 + $0x190] sm:$0xff] %v2304
        %2817 = vst [vmem:[%s202 + $0x198] sm:$0xff] %v2305
        %2818 = vst [vmem:[%s202 + $0x1a0] sm:$0xff] %v2306
        %2819 = vst [vmem:[%s202 + $0x1a8] sm:$0xff] %v2307
        %2820 = vst [vmem:[%s202 + $0x1b0] sm:$0xff] %v2308
        %2821 = vst [vmem:[%s202 + $0x1b8] sm:$0xff] %v2309
        %2822 = vst [vmem:[%s202 + $0x1c0] sm:$0xff] %v2310
        %2823 = vst [vmem:[%s202 + $0x1c8] sm:$0xff] %v2311
        %2824 = vst [vmem:[%s202 + $0x1d0] sm:$0xff] %v2312
        %2825 = vst [vmem:[%s202 + $0x1d8] sm:$0xff] %v2313
        %2826 = vst [vmem:[%s202 + $0x1e0] sm:$0xff] %v2314
        %2827 = vst [vmem:[%s202 + $0x1e8] sm:$0xff] %v2315
        %2828 = vst [vmem:[%s202 + $0x1f0] sm:$0xff] %v2316
        %2829 = vst [vmem:[%s202 + $0x1f8] sm:$0xff] %v2317
        %2830 = vst [vmem:[%s202 + $0x200] sm:$0xff] %v2318
        %2831 = vst [vmem:[%s202 + $0x208] sm:$0xff] %v2319
        %2832 = vst [vmem:[%s202 + $0x210] sm:$0xff] %v2320
        %2833 = vst [vmem:[%s202 + $0x218] sm:$0xff] %v2321
        %2834 = vst [vmem:[%s202 + $0x220] sm:$0xff] %v2322
        %2835 = vst [vmem:[%s202 + $0x228] sm:$0xff] %v2323
        %2836 = vst [vmem:[%s202 + $0x230] sm:$0xff] %v2324
        %2837 = vst [vmem:[%s202 + $0x238] sm:$0xff] %v2325
        %2838 = vst [vmem:[%s202 + $0x240] sm:$0xff] %v2326
        %2839 = vst [vmem:[%s202 + $0x248] sm:$0xff] %v2327
        %2840 = vst [vmem:[%s202 + $0x250] sm:$0xff] %v2328
        %2841 = vst [vmem:[%s202 + $0x258] sm:$0xff] %v2329
        %2842 = vst [vmem:[%s202 + $0x260] sm:$0xff] %v2330
        %2843 = vst [vmem:[%s202 + $0x268] sm:$0xff] %v2331
        %2844 = vst [vmem:[%s202 + $0x270] sm:$0xff] %v2332
        %2845 = vst [vmem:[%s202 + $0x278] sm:$0xff] %v2333
        %2846 = vst [vmem:[%s202 + $0x280] sm:$0xff] %v2334
        %2847 = vst [vmem:[%s202 + $0x288] sm:$0xff] %v2335
        %2848 = vst [vmem:[%s202 + $0x290] sm:$0xff] %v2336
        %2849 = vst [vmem:[%s202 + $0x298] sm:$0xff] %v2337
        %2850 = vst [vmem:[%s202 + $0x2a0] sm:$0xff] %v2338
        %2851 = vst [vmem:[%s202 + $0x2a8] sm:$0xff] %v2339
        %2852 = vst [vmem:[%s202 + $0x2b0] sm:$0xff] %v2340
        %2853 = vst [vmem:[%s202 + $0x2b8] sm:$0xff] %v2341
        %2854 = vst [vmem:[%s202 + $0x2c0] sm:$0xff] %v2342
        %2855 = vst [vmem:[%s202 + $0x2c8] sm:$0xff] %v2343
        %2856 = vst [vmem:[%s202 + $0x2d0] sm:$0xff] %v2344
        %2857 = vst [vmem:[%s202 + $0x2d8] sm:$0xff] %v2345
        %2858 = vst [vmem:[%s202 + $0x2e0] sm:$0xff] %v2346
        %2859 = vst [vmem:[%s202 + $0x2e8] sm:$0xff] %v2347
        %2860 = vst [vmem:[%s202 + $0x2f0] sm:$0xff] %v2348
        %2861 = vst [vmem:[%s202 + $0x2f8] sm:$0xff] %v2349
        %2862 = vst [vmem:[%s202 + $0x300] sm:$0xff] %v2350
        %2863 = vst [vmem:[%s202 + $0x308] sm:$0xff] %v2351
        %2864 = vst [vmem:[%s202 + $0x310] sm:$0xff] %v2352
        %2865 = vst [vmem:[%s202 + $0x318] sm:$0xff] %v2353
        %2866 = vst [vmem:[%s202 + $0x320] sm:$0xff] %v2354
        %2867 = vst [vmem:[%s202 + $0x328] sm:$0xff] %v2355
        %2868 = vst [vmem:[%s202 + $0x330] sm:$0xff] %v2356
        %2869 = vst [vmem:[%s202 + $0x338] sm:$0xff] %v2357
        %2870 = vst [vmem:[%s202 + $0x340] sm:$0xff] %v2358
        %2871 = vst [vmem:[%s202 + $0x348] sm:$0xff] %v2359
        %2872 = vst [vmem:[%s202 + $0x350] sm:$0xff] %v2360
        %2873 = vst [vmem:[%s202 + $0x358] sm:$0xff] %v2361
        %2874 = vst [vmem:[%s202 + $0x360] sm:$0xff] %v2362
        %2875 = vst [vmem:[%s202 + $0x368] sm:$0xff] %v2363
        %2876 = vst [vmem:[%s202 + $0x370] sm:$0xff] %v2364
        %2877 = vst [vmem:[%s202 + $0x378] sm:$0xff] %v2365
        %2878 = vst [vmem:[%s202 + $0x380] sm:$0xff] %v2366
        %2879 = vst [vmem:[%s202 + $0x388] sm:$0xff] %v2367
        %2880 = vst [vmem:[%s202 + $0x390] sm:$0xff] %v2368
        %2881 = vst [vmem:[%s202 + $0x398] sm:$0xff] %v2369
        %2882 = vst [vmem:[%s202 + $0x3a0] sm:$0xff] %v2370
        %2883 = vst [vmem:[%s202 + $0x3a8] sm:$0xff] %v2371
        %2884 = vst [vmem:[%s202 + $0x3b0] sm:$0xff] %v2372
        %2885 = vst [vmem:[%s202 + $0x3b8] sm:$0xff] %v2373
        %2886 = vst [vmem:[%s202 + $0x3c0] sm:$0xff] %v2374
        %2887 = vst [vmem:[%s202 + $0x3c8] sm:$0xff] %v2375
        %2888 = vst [vmem:[%s202 + $0x3d0] sm:$0xff] %v2376
        %2889 = vst [vmem:[%s202 + $0x3d8] sm:$0xff] %v2377
        %2890 = vst [vmem:[%s202 + $0x3e0] sm:$0xff] %v2378
        %2891 = vst [vmem:[%s202 + $0x3e8] sm:$0xff] %v2379
        %2892 = vst [vmem:[%s202 + $0x3f0] sm:$0xff] %v2380
        %2893 = vst [vmem:[%s202 + $0x3f8] sm:$0xff] %v2381
        %2894 = vst [vmem:[%s202 + $0x400] sm:$0xff] %v2382
        %2895 = vst [vmem:[%s202 + $0x408] sm:$0xff] %v2383
        %2896 = vst [vmem:[%s202 + $0x410] sm:$0xff] %v2384
        %2897 = vst [vmem:[%s202 + $0x418] sm:$0xff] %v2385
        %2898 = vst [vmem:[%s202 + $0x420] sm:$0xff] %v2386
        %2899 = vst [vmem:[%s202 + $0x428] sm:$0xff] %v2387
        %2900 = vst [vmem:[%s202 + $0x430] sm:$0xff] %v2388
        %2901 = vst [vmem:[%s202 + $0x438] sm:$0xff] %v2389
        %2902 = vst [vmem:[%s202 + $0x440] sm:$0xff] %v2390
        %2903 = vst [vmem:[%s202 + $0x448] sm:$0xff] %v2391
        %2904 = vst [vmem:[%s202 + $0x450] sm:$0xff] %v2392
        %2905 = vst [vmem:[%s202 + $0x458] sm:$0xff] %v2393
        %2906 = vst [vmem:[%s202 + $0x460] sm:$0xff] %v2394
        %2907 = vst [vmem:[%s202 + $0x468] sm:$0xff] %v2395
        %2908 = vst [vmem:[%s202 + $0x470] sm:$0xff] %v2396
        %2909 = vst [vmem:[%s202 + $0x478] sm:$0xff] %v2397
        %2910 = vst [vmem:[%s202 + $0x480] sm:$0xff] %v2398
        %2911 = vst [vmem:[%s202 + $0x488] sm:$0xff] %v2399
        %2912 = vst [vmem:[%s202 + $0x490] sm:$0xff] %v2400
        %2913 = vst [vmem:[%s202 + $0x498] sm:$0xff] %v2401
        %2914 = vst [vmem:[%s202 + $0x4a0] sm:$0xff] %v2402
        %2915 = vst [vmem:[%s202 + $0x4a8] sm:$0xff] %v2403
        %2916 = vst [vmem:[%s202 + $0x4b0] sm:$0xff] %v2404
        %2917 = vst [vmem:[%s202 + $0x4b8] sm:$0xff] %v2405
        %2918 = vst [vmem:[%s202 + $0x4c0] sm:$0xff] %v2406
        %2919 = vst [vmem:[%s202 + $0x4c8] sm:$0xff] %v2407
        %2920 = vst [vmem:[%s202 + $0x4d0] sm:$0xff] %v2408
        %2921 = vst [vmem:[%s202 + $0x4d8] sm:$0xff] %v2409
        %2922 = vst [vmem:[%s202 + $0x4e0] sm:$0xff] %v2410
        %2923 = vst [vmem:[%s202 + $0x4e8] sm:$0xff] %v2411
        %2924 = vst [vmem:[%s202 + $0x4f0] sm:$0xff] %v2412
        %2925 = vst [vmem:[%s202 + $0x4f8] sm:$0xff] %v2413
        %2926 = vst [vmem:[%s202 + $0x500] sm:$0xff] %v2414
        %2927 = vst [vmem:[%s202 + $0x508] sm:$0xff] %v2415
        %2928 = vst [vmem:[%s202 + $0x510] sm:$0xff] %v2416
        %2929 = vst [vmem:[%s202 + $0x518] sm:$0xff] %v2417
        %2930 = vst [vmem:[%s202 + $0x520] sm:$0xff] %v2418
        %2931 = vst [vmem:[%s202 + $0x528] sm:$0xff] %v2419
        %2932 = vst [vmem:[%s202 + $0x530] sm:$0xff] %v2420
        %2933 = vst [vmem:[%s202 + $0x538] sm:$0xff] %v2421
        %2934 = vst [vmem:[%s202 + $0x540] sm:$0xff] %v2422
        %2935 = vst [vmem:[%s202 + $0x548] sm:$0xff] %v2423
        %2936 = vst [vmem:[%s202 + $0x550] sm:$0xff] %v2424
        %2937 = vst [vmem:[%s202 + $0x558] sm:$0xff] %v2425
        %2938 = vst [vmem:[%s202 + $0x560] sm:$0xff] %v2426
        %2939 = vst [vmem:[%s202 + $0x568] sm:$0xff] %v2427
        %2940 = vst [vmem:[%s202 + $0x570] sm:$0xff] %v2428
        %2941 = vst [vmem:[%s202 + $0x578] sm:$0xff] %v2429
        %2942 = vst [vmem:[%s202 + $0x580] sm:$0xff] %v2430
        %2943 = vst [vmem:[%s202 + $0x588] sm:$0xff] %v2431
        %2944 = vst [vmem:[%s202 + $0x590] sm:$0xff] %v2432
        %2945 = vst [vmem:[%s202 + $0x598] sm:$0xff] %v2433
        %2946 = vst [vmem:[%s202 + $0x5a0] sm:$0xff] %v2434
        %2947 = vst [vmem:[%s202 + $0x5a8] sm:$0xff] %v2435
        %2948 = vst [vmem:[%s202 + $0x5b0] sm:$0xff] %v2436
        %2949 = vst [vmem:[%s202 + $0x5b8] sm:$0xff] %v2437
        %2950 = vst [vmem:[%s202 + $0x5c0] sm:$0xff] %v2438
        %2951 = vst [vmem:[%s202 + $0x5c8] sm:$0xff] %v2439
        %2952 = vst [vmem:[%s202 + $0x5d0] sm:$0xff] %v2440
        %2953 = vst [vmem:[%s202 + $0x5d8] sm:$0xff] %v2441
        %2954 = vst [vmem:[%s202 + $0x5e0] sm:$0xff] %v2442
        %2955 = vst [vmem:[%s202 + $0x5e8] sm:$0xff] %v2443
        %2956 = vst [vmem:[%s202 + $0x5f0] sm:$0xff] %v2444
        %2957 = vst [vmem:[%s202 + $0x5f8] sm:$0xff] %v2445
        %2958 = vst [vmem:[%s202 + $0x600] sm:$0xff] %v2446
        %2959 = vst [vmem:[%s202 + $0x608] sm:$0xff] %v2447
        %2960 = vst [vmem:[%s202 + $0x610] sm:$0xff] %v2448
        %2961 = vst [vmem:[%s202 + $0x618] sm:$0xff] %v2449
        %2962 = vst [vmem:[%s202 + $0x620] sm:$0xff] %v2450
        %2963 = vst [vmem:[%s202 + $0x628] sm:$0xff] %v2451
        %2964 = vst [vmem:[%s202 + $0x630] sm:$0xff] %v2452
        %2965 = vst [vmem:[%s202 + $0x638] sm:$0xff] %v2453
        %2966 = vst [vmem:[%s202 + $0x640] sm:$0xff] %v2454
        %2967 = vst [vmem:[%s202 + $0x648] sm:$0xff] %v2455
        %2968 = vst [vmem:[%s202 + $0x650] sm:$0xff] %v2456
        %2969 = vst [vmem:[%s202 + $0x658] sm:$0xff] %v2457
        %2970 = vst [vmem:[%s202 + $0x660] sm:$0xff] %v2458
        %2971 = vst [vmem:[%s202 + $0x668] sm:$0xff] %v2459
        %2972 = vst [vmem:[%s202 + $0x670] sm:$0xff] %v2460
        %2973 = vst [vmem:[%s202 + $0x678] sm:$0xff] %v2461
        %2974 = vst [vmem:[%s202 + $0x680] sm:$0xff] %v2462
        %2975 = vst [vmem:[%s202 + $0x688] sm:$0xff] %v2463
        %2976 = vst [vmem:[%s202 + $0x690] sm:$0xff] %v2464
        %2977 = vst [vmem:[%s202 + $0x698] sm:$0xff] %v2465
        %2978 = vst [vmem:[%s202 + $0x6a0] sm:$0xff] %v2466
        %2979 = vst [vmem:[%s202 + $0x6a8] sm:$0xff] %v2467
        %2980 = vst [vmem:[%s202 + $0x6b0] sm:$0xff] %v2468
        %2981 = vst [vmem:[%s202 + $0x6b8] sm:$0xff] %v2469
        %2982 = vst [vmem:[%s202 + $0x6c0] sm:$0xff] %v2470
        %2983 = vst [vmem:[%s202 + $0x6c8] sm:$0xff] %v2471
        %2984 = vst [vmem:[%s202 + $0x6d0] sm:$0xff] %v2472
        %2985 = vst [vmem:[%s202 + $0x6d8] sm:$0xff] %v2473
        %2986 = vst [vmem:[%s202 + $0x6e0] sm:$0xff] %v2474
        %2987 = vst [vmem:[%s202 + $0x6e8] sm:$0xff] %v2475
        %2988 = vst [vmem:[%s202 + $0x6f0] sm:$0xff] %v2476
        %2989 = vst [vmem:[%s202 + $0x6f8] sm:$0xff] %v2477
        %2990 = vst [vmem:[%s202 + $0x700] sm:$0xff] %v2478
        %2991 = vst [vmem:[%s202 + $0x708] sm:$0xff] %v2479
        %2992 = vst [vmem:[%s202 + $0x710] sm:$0xff] %v2480
        %2993 = vst [vmem:[%s202 + $0x718] sm:$0xff] %v2481
        %2994 = vst [vmem:[%s202 + $0x720] sm:$0xff] %v2482
        %2995 = vst [vmem:[%s202 + $0x728] sm:$0xff] %v2483
        %2996 = vst [vmem:[%s202 + $0x730] sm:$0xff] %v2484
        %2997 = vst [vmem:[%s202 + $0x738] sm:$0xff] %v2485
        %2998 = vst [vmem:[%s202 + $0x740] sm:$0xff] %v2486
        %2999 = vst [vmem:[%s202 + $0x748] sm:$0xff] %v2487
        %3000 = vst [vmem:[%s202 + $0x750] sm:$0xff] %v2488
        %3001 = vst [vmem:[%s202 + $0x758] sm:$0xff] %v2489
        %3002 = vst [vmem:[%s202 + $0x760] sm:$0xff] %v2490
        %3003 = vst [vmem:[%s202 + $0x768] sm:$0xff] %v2491
        %3004 = vst [vmem:[%s202 + $0x770] sm:$0xff] %v2492
        %3005 = vst [vmem:[%s202 + $0x778] sm:$0xff] %v2493
        %3006 = vst [vmem:[%s202 + $0x780] sm:$0xff] %v2494
        %3007 = vst [vmem:[%s202 + $0x788] sm:$0xff] %v2495
        %3008 = vst [vmem:[%s202 + $0x790] sm:$0xff] %v2496
        %3009 = vst [vmem:[%s202 + $0x798] sm:$0xff] %v2497
        %3010 = vst [vmem:[%s202 + $0x7a0] sm:$0xff] %v2498
        %3011 = vst [vmem:[%s202 + $0x7a8] sm:$0xff] %v2499
        %3012 = vst [vmem:[%s202 + $0x7b0] sm:$0xff] %v2500
        %3013 = vst [vmem:[%s202 + $0x7b8] sm:$0xff] %v2501
        %3014 = vst [vmem:[%s202 + $0x7c0] sm:$0xff] %v2502
        %3015 = vst [vmem:[%s202 + $0x7c8] sm:$0xff] %v2503
        %3016 = vst [vmem:[%s202 + $0x7d0] sm:$0xff] %v2504
        %3017 = vst [vmem:[%s202 + $0x7d8] sm:$0xff] %v2505
        %3018 = vst [vmem:[%s202 + $0x7e0] sm:$0xff] %v2506
        %3019 = vst [vmem:[%s202 + $0x7e8] sm:$0xff] %v2507
        %3020 = vst [vmem:[%s202 + $0x7f0] sm:$0xff] %v2508
        %3021 = vst [vmem:[%s202 + $0x7f8] sm:$0xff] %v2509
        %3022 = vst [vmem:[%s202 + $0x800] sm:$0xff] %v2510
        %3023 = vst [vmem:[%s202 + $0x808] sm:$0xff] %v2511
        %3024 = vst [vmem:[%s202 + $0x810] sm:$0xff] %v2512
        %3025 = vst [vmem:[%s202 + $0x818] sm:$0xff] %v2513
        %3026 = vst [vmem:[%s202 + $0x820] sm:$0xff] %v2514
        %3027 = vst [vmem:[%s202 + $0x828] sm:$0xff] %v2515
        %3028 = vst [vmem:[%s202 + $0x830] sm:$0xff] %v2516
        %3029 = vst [vmem:[%s202 + $0x838] sm:$0xff] %v2517
        %3030 = vst [vmem:[%s202 + $0x840] sm:$0xff] %v2518
        %3031 = vst [vmem:[%s202 + $0x848] sm:$0xff] %v2519
        %3032 = vst [vmem:[%s202 + $0x850] sm:$0xff] %v2520
        %3033 = vst [vmem:[%s202 + $0x858] sm:$0xff] %v2521
        %3034 = vst [vmem:[%s202 + $0x860] sm:$0xff] %v2522
        %3035 = vst [vmem:[%s202 + $0x868] sm:$0xff] %v2523
        %3036 = vst [vmem:[%s202 + $0x870] sm:$0xff] %v2524
        %3037 = vst [vmem:[%s202 + $0x878] sm:$0xff] %v2525
        %3038 = vst [vmem:[%s202 + $0x880] sm:$0xff] %v2526
        %3039 = vst [vmem:[%s202 + $0x888] sm:$0xff] %v2527
        %3040 = vst [vmem:[%s202 + $0x890] sm:$0xff] %v2528
        %3041 = vst [vmem:[%s202 + $0x898] sm:$0xff] %v2529
        %3042 = vst [vmem:[%s202 + $0x8a0] sm:$0xff] %v2530
        %3043 = vst [vmem:[%s202 + $0x8a8] sm:$0xff] %v2531
        %3044 = vst [vmem:[%s202 + $0x8b0] sm:$0xff] %v2532
        %3045 = vst [vmem:[%s202 + $0x8b8] sm:$0xff] %v2533
        %3046 = vst [vmem:[%s202 + $0x8c0] sm:$0xff] %v2534
        %3047 = vst [vmem:[%s202 + $0x8c8] sm:$0xff] %v2535
        %3048 = vst [vmem:[%s202 + $0x8d0] sm:$0xff] %v2536
        %3049 = vst [vmem:[%s202 + $0x8d8] sm:$0xff] %v2537
        %3050 = vst [vmem:[%s202 + $0x8e0] sm:$0xff] %v2538
        %3051 = vst [vmem:[%s202 + $0x8e8] sm:$0xff] %v2539
        %3052 = vst [vmem:[%s202 + $0x8f0] sm:$0xff] %v2540
        %3053 = vst [vmem:[%s202 + $0x8f8] sm:$0xff] %v2541
        %3054 = vst [vmem:[%s202 + $0x900] sm:$0xff] %v2542
        %3055 = vst [vmem:[%s202 + $0x908] sm:$0xff] %v2543
        %3056 = vst [vmem:[%s202 + $0x910] sm:$0xff] %v2544
        %3057 = vst [vmem:[%s202 + $0x918] sm:$0xff] %v2545
        %3058 = vst [vmem:[%s202 + $0x920] sm:$0xff] %v2546
        %3059 = vst [vmem:[%s202 + $0x928] sm:$0xff] %v2547
        %3060 = vst [vmem:[%s202 + $0x930] sm:$0xff] %v2548
        %3061 = vst [vmem:[%s202 + $0x938] sm:$0xff] %v2549
        %3062 = vst [vmem:[%s202 + $0x940] sm:$0xff] %v2550
        %3063 = vst [vmem:[%s202 + $0x948] sm:$0xff] %v2551
        %3064 = vst [vmem:[%s202 + $0x950] sm:$0xff] %v2552
        %3065 = vst [vmem:[%s202 + $0x958] sm:$0xff] %v2553
        %3066 = vst [vmem:[%s202 + $0x960] sm:$0xff] %v2554
        %3067 = vst [vmem:[%s202 + $0x968] sm:$0xff] %v2555
        %3068 = vst [vmem:[%s202 + $0x970] sm:$0xff] %v2556
        %3069 = vst [vmem:[%s202 + $0x978] sm:$0xff] %v2557
        %3070 = vst [vmem:[%s202 + $0x980] sm:$0xff] %v2558
        %3071 = vst [vmem:[%s202 + $0x988] sm:$0xff] %v2559
        %3072 = vst [vmem:[%s202 + $0x990] sm:$0xff] %v2560
        %3073 = vst [vmem:[%s202 + $0x998] sm:$0xff] %v2561
        %3074 = vst [vmem:[%s202 + $0x9a0] sm:$0xff] %v2562
        %3075 = vst [vmem:[%s202 + $0x9a8] sm:$0xff] %v2563
        %3076 = vst [vmem:[%s202 + $0x9b0] sm:$0xff] %v2564
        %3077 = vst [vmem:[%s202 + $0x9b8] sm:$0xff] %v2565
        %3078 = vst [vmem:[%s202 + $0x9c0] sm:$0xff] %v2566
        %3079 = vst [vmem:[%s202 + $0x9c8] sm:$0xff] %v2567
        %3080 = vst [vmem:[%s202 + $0x9d0] sm:$0xff] %v2568
        %3081 = vst [vmem:[%s202 + $0x9d8] sm:$0xff] %v2569
        %3082 = vst [vmem:[%s202 + $0x9e0] sm:$0xff] %v2570
        %3083 = vst [vmem:[%s202 + $0x9e8] sm:$0xff] %v2571
        %3084 = vst [vmem:[%s202 + $0x9f0] sm:$0xff] %v2572
        %3085 = vst [vmem:[%s202 + $0x9f8] sm:$0xff] %v2573
        %3086 = vst [vmem:[%s202 + $0xa00] sm:$0xff] %v2574
        %3087 = vst [vmem:[%s202 + $0xa08] sm:$0xff] %v2575
        %3088 = vst [vmem:[%s202 + $0xa10] sm:$0xff] %v2576
        %3089 = vst [vmem:[%s202 + $0xa18] sm:$0xff] %v2577
        %3090 = vst [vmem:[%s202 + $0xa20] sm:$0xff] %v2578
        %3091 = vst [vmem:[%s202 + $0xa28] sm:$0xff] %v2579
        %3092 = vst [vmem:[%s202 + $0xa30] sm:$0xff] %v2580
        %3093 = vst [vmem:[%s202 + $0xa38] sm:$0xff] %v2581
        %3094 = vst [vmem:[%s202 + $0xa40] sm:$0xff] %v2582
        %3095 = vst [vmem:[%s202 + $0xa48] sm:$0xff] %v2583
        %3096 = vst [vmem:[%s202 + $0xa50] sm:$0xff] %v2584
        %3097 = vst [vmem:[%s202 + $0xa58] sm:$0xff] %v2585
        %3098 = vst [vmem:[%s202 + $0xa60] sm:$0xff] %v2586
        %3099 = vst [vmem:[%s202 + $0xa68] sm:$0xff] %v2587
        %3100 = vst [vmem:[%s202 + $0xa70] sm:$0xff] %v2588
        %3101 = vst [vmem:[%s202 + $0xa78] sm:$0xff] %v2589
        %3102 = vst [vmem:[%s202 + $0xa80] sm:$0xff] %v2590
        %3103 = vst [vmem:[%s202 + $0xa88] sm:$0xff] %v2591
        %3104 = vst [vmem:[%s202 + $0xa90] sm:$0xff] %v2592
        %3105 = vst [vmem:[%s202 + $0xa98] sm:$0xff] %v2593
        %3106 = vst [vmem:[%s202 + $0xaa0] sm:$0xff] %v2594
        %3107 = vst [vmem:[%s202 + $0xaa8] sm:$0xff] %v2595
        %3108 = vst [vmem:[%s202 + $0xab0] sm:$0xff] %v2596
        %3109 = vst [vmem:[%s202 + $0xab8] sm:$0xff] %v2597
        %3110 = vst [vmem:[%s202 + $0xac0] sm:$0xff] %v2598
        %3111 = vst [vmem:[%s202 + $0xac8] sm:$0xff] %v2599
        %3112 = vst [vmem:[%s202 + $0xad0] sm:$0xff] %v2600
        %3113 = vst [vmem:[%s202 + $0xad8] sm:$0xff] %v2601
        %3114 = vst [vmem:[%s202 + $0xae0] sm:$0xff] %v2602
        %3115 = vst [vmem:[%s202 + $0xae8] sm:$0xff] %v2603
        %3116 = vst [vmem:[%s202 + $0xaf0] sm:$0xff] %v2604
        %3117 = vst [vmem:[%s202 + $0xaf8] sm:$0xff] %v2605
        %3118 = vst [vmem:[%s202 + $0xb00] sm:$0xff] %v2606
        %3119 = vst [vmem:[%s202 + $0xb08] sm:$0xff] %v2607
        %3120 = vst [vmem:[%s202 + $0xb10] sm:$0xff] %v2608
        %3121 = vst [vmem:[%s202 + $0xb18] sm:$0xff] %v2609
        %3122 = vst [vmem:[%s202 + $0xb20] sm:$0xff] %v2610
        %3123 = vst [vmem:[%s202 + $0xb28] sm:$0xff] %v2611
        %3124 = vst [vmem:[%s202 + $0xb30] sm:$0xff] %v2612
        %3125 = vst [vmem:[%s202 + $0xb38] sm:$0xff] %v2613
        %3126 = vst [vmem:[%s202 + $0xb40] sm:$0xff] %v2614
        %3127 = vst [vmem:[%s202 + $0xb48] sm:$0xff] %v2615
        %3128 = vst [vmem:[%s202 + $0xb50] sm:$0xff] %v2616
        %3129 = vst [vmem:[%s202 + $0xb58] sm:$0xff] %v2617
        %3130 = vst [vmem:[%s202 + $0xb60] sm:$0xff] %v2618
        %3131 = vst [vmem:[%s202 + $0xb68] sm:$0xff] %v2619
        %3132 = vst [vmem:[%s202 + $0xb70] sm:$0xff] %v2620
        %3133 = vst [vmem:[%s202 + $0xb78] sm:$0xff] %v2621
        %3134 = vst [vmem:[%s202 + $0xb80] sm:$0xff] %v2622
        %3135 = vst [vmem:[%s202 + $0xb88] sm:$0xff] %v2623
        %3136 = vst [vmem:[%s202 + $0xb90] sm:$0xff] %v2624
        %3137 = vst [vmem:[%s202 + $0xb98] sm:$0xff] %v2625
        %3138 = vst [vmem:[%s202 + $0xba0] sm:$0xff] %v2626
        %3139 = vst [vmem:[%s202 + $0xba8] sm:$0xff] %v2627
        %3140 = vst [vmem:[%s202 + $0xbb0] sm:$0xff] %v2628
        %3141 = vst [vmem:[%s202 + $0xbb8] sm:$0xff] %v2629
        %3142 = vst [vmem:[%s202 + $0xbc0] sm:$0xff] %v2630
        %3143 = vst [vmem:[%s202 + $0xbc8] sm:$0xff] %v2631
        %3144 = vst [vmem:[%s202 + $0xbd0] sm:$0xff] %v2632
        %3145 = vst [vmem:[%s202 + $0xbd8] sm:$0xff] %v2633
        %3146 = vst [vmem:[%s202 + $0xbe0] sm:$0xff] %v2634
        %3147 = vst [vmem:[%s202 + $0xbe8] sm:$0xff] %v2635
        %3148 = vst [vmem:[%s202 + $0xbf0] sm:$0xff] %v2636
        %3149 = vst [vmem:[%s202 + $0xbf8] sm:$0xff] %v2637
        %3150 = vst [vmem:[%s202 + $0xc00] sm:$0xff] %v2638
        %3151 = vst [vmem:[%s202 + $0xc08] sm:$0xff] %v2639
        %3152 = vst [vmem:[%s202 + $0xc10] sm:$0xff] %v2640
        %3153 = vst [vmem:[%s202 + $0xc18] sm:$0xff] %v2641
        %3154 = vst [vmem:[%s202 + $0xc20] sm:$0xff] %v2642
        %3155 = vst [vmem:[%s202 + $0xc28] sm:$0xff] %v2643
        %3156 = vst [vmem:[%s202 + $0xc30] sm:$0xff] %v2644
        %3157 = vst [vmem:[%s202 + $0xc38] sm:$0xff] %v2645
        %3158 = vst [vmem:[%s202 + $0xc40] sm:$0xff] %v2646
        %3159 = vst [vmem:[%s202 + $0xc48] sm:$0xff] %v2647
        %3160 = vst [vmem:[%s202 + $0xc50] sm:$0xff] %v2648
        %3161 = vst [vmem:[%s202 + $0xc58] sm:$0xff] %v2649
        %3162 = vst [vmem:[%s202 + $0xc60] sm:$0xff] %v2650
        %3163 = vst [vmem:[%s202 + $0xc68] sm:$0xff] %v2651
        %3164 = vst [vmem:[%s202 + $0xc70] sm:$0xff] %v2652
        %3165 = vst [vmem:[%s202 + $0xc78] sm:$0xff] %v2653
        %3166 = vst [vmem:[%s202 + $0xc80] sm:$0xff] %v2654
        %3167 = vst [vmem:[%s202 + $0xc88] sm:$0xff] %v2655
        %3168 = vst [vmem:[%s202 + $0xc90] sm:$0xff] %v2656
        %3169 = vst [vmem:[%s202 + $0xc98] sm:$0xff] %v2657
        %3170 = vst [vmem:[%s202 + $0xca0] sm:$0xff] %v2658
        %3171 = vst [vmem:[%s202 + $0xca8] sm:$0xff] %v2659
        %3172 = vst [vmem:[%s202 + $0xcb0] sm:$0xff] %v2660
        %3173 = vst [vmem:[%s202 + $0xcb8] sm:$0xff] %v2661
        %3174 = vst [vmem:[%s202 + $0xcc0] sm:$0xff] %v2662
        %3175 = vst [vmem:[%s202 + $0xcc8] sm:$0xff] %v2663
        %3176 = vst [vmem:[%s202 + $0xcd0] sm:$0xff] %v2664
        %3177 = vst [vmem:[%s202 + $0xcd8] sm:$0xff] %v2665
        %3178 = vst [vmem:[%s202 + $0xce0] sm:$0xff] %v2666
        %3179 = vst [vmem:[%s202 + $0xce8] sm:$0xff] %v2667
        %3180 = vst [vmem:[%s202 + $0xcf0] sm:$0xff] %v2668
        %3181 = vst [vmem:[%s202 + $0xcf8] sm:$0xff] %v2669
        %3182 = vst [vmem:[%s202 + $0xd00] sm:$0xff] %v2670
        %3183 = vst [vmem:[%s202 + $0xd08] sm:$0xff] %v2671
        %3184 = vst [vmem:[%s202 + $0xd10] sm:$0xff] %v2672
        %3185 = vst [vmem:[%s202 + $0xd18] sm:$0xff] %v2673
        %3186 = vst [vmem:[%s202 + $0xd20] sm:$0xff] %v2674
        %3187 = vst [vmem:[%s202 + $0xd28] sm:$0xff] %v2675
        %3188 = vst [vmem:[%s202 + $0xd30] sm:$0xff] %v2676
        %3189 = vst [vmem:[%s202 + $0xd38] sm:$0xff] %v2677
        %3190 = vst [vmem:[%s202 + $0xd40] sm:$0xff] %v2678
        %3191 = vst [vmem:[%s202 + $0xd48] sm:$0xff] %v2679
        %3192 = vst [vmem:[%s202 + $0xd50] sm:$0xff] %v2680
        %3193 = vst [vmem:[%s202 + $0xd58] sm:$0xff] %v2681
        %3194 = vst [vmem:[%s202 + $0xd60] sm:$0xff] %v2682
        %3195 = vst [vmem:[%s202 + $0xd68] sm:$0xff] %v2683
        %3196 = vst [vmem:[%s202 + $0xd70] sm:$0xff] %v2684
        %3197 = vst [vmem:[%s202 + $0xd78] sm:$0xff] %v2685
        %3198 = vst [vmem:[%s202 + $0xd80] sm:$0xff] %v2686
        %3199 = vst [vmem:[%s202 + $0xd88] sm:$0xff] %v2687
        %3200 = vst [vmem:[%s202 + $0xd90] sm:$0xff] %v2688
        %3201 = vst [vmem:[%s202 + $0xd98] sm:$0xff] %v2689
        %3202 = vst [vmem:[%s202 + $0xda0] sm:$0xff] %v2690
        %3203 = vst [vmem:[%s202 + $0xda8] sm:$0xff] %v2691
        %3204 = vst [vmem:[%s202 + $0xdb0] sm:$0xff] %v2692
        %3205 = vst [vmem:[%s202 + $0xdb8] sm:$0xff] %v2693
        %3206 = vst [vmem:[%s202 + $0xdc0] sm:$0xff] %v2694
        %3207 = vst [vmem:[%s202 + $0xdc8] sm:$0xff] %v2695
        %3208 = vst [vmem:[%s202 + $0xdd0] sm:$0xff] %v2696
        %3209 = vst [vmem:[%s202 + $0xdd8] sm:$0xff] %v2697
        %3210 = vst [vmem:[%s202 + $0xde0] sm:$0xff] %v2698
        %3211 = vst [vmem:[%s202 + $0xde8] sm:$0xff] %v2699
        %3212 = vst [vmem:[%s202 + $0xdf0] sm:$0xff] %v2700
        %3213 = vst [vmem:[%s202 + $0xdf8] sm:$0xff] %v2701
        %3214 = vst [vmem:[%s202 + $0xe00] sm:$0xff] %v2702
        %3215 = vst [vmem:[%s202 + $0xe08] sm:$0xff] %v2703
        %3216 = vst [vmem:[%s202 + $0xe10] sm:$0xff] %v2704
        %3217 = vst [vmem:[%s202 + $0xe18] sm:$0xff] %v2705
        %3218 = vst [vmem:[%s202 + $0xe20] sm:$0xff] %v2706
        %3219 = vst [vmem:[%s202 + $0xe28] sm:$0xff] %v2707
        %3220 = vst [vmem:[%s202 + $0xe30] sm:$0xff] %v2708
        %3221 = vst [vmem:[%s202 + $0xe38] sm:$0xff] %v2709
        %3222 = vst [vmem:[%s202 + $0xe40] sm:$0xff] %v2710
        %3223 = vst [vmem:[%s202 + $0xe48] sm:$0xff] %v2711
        %3224 = vst [vmem:[%s202 + $0xe50] sm:$0xff] %v2712
        %3225 = vst [vmem:[%s202 + $0xe58] sm:$0xff] %v2713
        %3226 = vst [vmem:[%s202 + $0xe60] sm:$0xff] %v2714
        %3227 = vst [vmem:[%s202 + $0xe68] sm:$0xff] %v2715
        %3228 = vst [vmem:[%s202 + $0xe70] sm:$0xff] %v2716
        %3229 = vst [vmem:[%s202 + $0xe78] sm:$0xff] %v2717
        %3230 = vst [vmem:[%s202 + $0xe80] sm:$0xff] %v2718
        %3231 = vst [vmem:[%s202 + $0xe88] sm:$0xff] %v2719
        %3232 = vst [vmem:[%s202 + $0xe90] sm:$0xff] %v2720
        %3233 = vst [vmem:[%s202 + $0xe98] sm:$0xff] %v2721
        %3234 = vst [vmem:[%s202 + $0xea0] sm:$0xff] %v2722
        %3235 = vst [vmem:[%s202 + $0xea8] sm:$0xff] %v2723
        %3236 = vst [vmem:[%s202 + $0xeb0] sm:$0xff] %v2724
        %3237 = vst [vmem:[%s202 + $0xeb8] sm:$0xff] %v2725
        %3238 = vst [vmem:[%s202 + $0xec0] sm:$0xff] %v2726
        %3239 = vst [vmem:[%s202 + $0xec8] sm:$0xff] %v2727
        %3240 = vst [vmem:[%s202 + $0xed0] sm:$0xff] %v2728
        %3241 = vst [vmem:[%s202 + $0xed8] sm:$0xff] %v2729
        %3242 = vst [vmem:[%s202 + $0xee0] sm:$0xff] %v2730
        %3243 = vst [vmem:[%s202 + $0xee8] sm:$0xff] %v2731
        %3244 = vst [vmem:[%s202 + $0xef0] sm:$0xff] %v2732
        %3245 = vst [vmem:[%s202 + $0xef8] sm:$0xff] %v2733
        %3246 = vst [vmem:[%s202 + $0xf00] sm:$0xff] %v2734
        %3247 = vst [vmem:[%s202 + $0xf08] sm:$0xff] %v2735
        %3248 = vst [vmem:[%s202 + $0xf10] sm:$0xff] %v2736
        %3249 = vst [vmem:[%s202 + $0xf18] sm:$0xff] %v2737
        %3250 = vst [vmem:[%s202 + $0xf20] sm:$0xff] %v2738
        %3251 = vst [vmem:[%s202 + $0xf28] sm:$0xff] %v2739
        %3252 = vst [vmem:[%s202 + $0xf30] sm:$0xff] %v2740
        %3253 = vst [vmem:[%s202 + $0xf38] sm:$0xff] %v2741
        %3254 = vst [vmem:[%s202 + $0xf40] sm:$0xff] %v2742
        %3255 = vst [vmem:[%s202 + $0xf48] sm:$0xff] %v2743
        %3256 = vst [vmem:[%s202 + $0xf50] sm:$0xff] %v2744
        %3257 = vst [vmem:[%s202 + $0xf58] sm:$0xff] %v2745
        %3258 = vst [vmem:[%s202 + $0xf60] sm:$0xff] %v2746
        %3259 = vst [vmem:[%s202 + $0xf68] sm:$0xff] %v2747
        %3260 = vst [vmem:[%s202 + $0xf70] sm:$0xff] %v2748
        %3261 = vst [vmem:[%s202 + $0xf78] sm:$0xff] %v2749
        %3262 = vst [vmem:[%s202 + $0xf80] sm:$0xff] %v2750
        %3263 = vst [vmem:[%s202 + $0xf88] sm:$0xff] %v2751
        %3264 = vst [vmem:[%s202 + $0xf90] sm:$0xff] %v2752
        %3265 = vst [vmem:[%s202 + $0xf98] sm:$0xff] %v2753
        %3266 = vst [vmem:[%s202 + $0xfa0] sm:$0xff] %v2754
        %3267 = vst [vmem:[%s202 + $0xfa8] sm:$0xff] %v2755
        %3268 = vst [vmem:[%s202 + $0xfb0] sm:$0xff] %v2756
        %3269 = vst [vmem:[%s202 + $0xfb8] sm:$0xff] %v2757
        %3270 = vst [vmem:[%s202 + $0xfc0] sm:$0xff] %v2758
        %3271 = vst [vmem:[%s202 + $0xfc8] sm:$0xff] %v2759
        %3272 = vst [vmem:[%s202 + $0xfd0] sm:$0xff] %v2760
        %3273 = vst [vmem:[%s202 + $0xfd8] sm:$0xff] %v2761
        %3274 = vst [vmem:[%s202 + $0xfe0] sm:$0xff] %v2762
        %3275 = vst [vmem:[%s202 + $0xfe8] sm:$0xff] %v2763
        %3276 = vst [vmem:[%s202 + $0xff0] sm:$0xff] %v2764
        %3277 = vst [vmem:[%s202 + $0xff8] sm:$0xff] %v2765
        %s3278 = sand.u32 %s96, 1
        %s3279 = scalar_lea.sflag [#allocation4], %s3278
        %s3280 = sand.u32 %s96, 1
        %s3281 = smul.addr %s3280, 4096
        %s3282 = scalar_lea.vmem [#allocation7], %s3281
        // Predicated region
        $region37: #{tpu_custom_call.1} parent=27 // pred_check
          %p3283 = pneg %p106
        $region38: #{tpu_custom_call.1} parent=27 // pred_check_branch
          %3285 = sbr.rel (%p3283) target = $region40
        $region39: #{tpu_custom_call.1} parent=27 // pred_region
          %s3286 = smul.u32 512, %s24
          %s3288 = ssub.s32 65536, 65536
          %3289 = vsyncadd %s3279, %s3288
          %s3290 = smul.addr %s25, 512
          %s3291 = sadd.s32 %s3286, %s3290
          %s3292 = smul.addr %s3291, 128
          %s3293 = scalar_lea.hbm %s2, %s3292
          %s3294 = sshll.u32 %s3282, 4
          %s3295 = int_to_ptr.vmem [resolvable:$true] %s3294
          %3300 = dma.vmem_to_hbm [thread:$0]  %s3295, 65536, %s3293, %s3279, 128, 128, 8
        $region40: #{tpu_custom_call.1} parent=27 // pred_fallthru
          _
      $region28: #{tpu_custom_call.1} parent=5 // pred_fallthru
        _
      %p3301 = scmp.le.s32.totalorder 2, %s15
      // Predicated region
      $region41: #{tpu_custom_call.1} parent=5 // pred_check
        %p3302 = pneg %p3301
      $region42: #{tpu_custom_call.1} parent=5 // pred_check_branch
        %3304 = sbr.rel (%p3302) target = $region44
      $region43: #{tpu_custom_call.1} parent=5 // pred_region
        %s3305 = ssub.s32 %s15, 2
        // Predicated region
        $region45: #{tpu_custom_call.1} parent=43 // pred_check
          %p3306 = pneg %p112
        $region46: #{tpu_custom_call.1} parent=43 // pred_check_branch
          %3308 = sbr.rel (%p3306) target = $region48
        $region47: #{tpu_custom_call.1} parent=43 // pred_region
          %s3309 = sand.u32 %s97, 1
          %s3310 = scalar_lea.sflag [#allocation4], %s3309
          %s3311 = sand.u32 %s97, 1
          %s3312 = smul.addr %s3311, 4096
          %s3313 = scalar_lea.vmem [#allocation7], %s3312
          %3314 = dma.done %s3310, 65536
        $region48: #{tpu_custom_call.1} parent=43 // pred_fallthru
          _
      $region44: #{tpu_custom_call.1} parent=5 // pred_fallthru
        _
    $region6: #{tpu_custom_call.1} parent=1 // loop_footer
      %s19 = sadd.s32 1, %s15
    $region7: #{tpu_custom_call.1} parent=1 // loop_footer_branch
      %14 = sbr.rel target = $region3
    $region8: #{tpu_custom_call.1} parent=1 // loop_exit
      _
    %3315 = vsyncpa [#allocation3], 1
    %s3316 = scalar_lea.sflag [#allocation3], 1
    %3317 = vsyncpa %s3316, 1
    %3318 = vsyncpa [#allocation6], 1
    %3319 = vsyncpa [#allocation4], 1
    %s3320 = scalar_lea.sflag [#allocation4], 1
    %3321 = vsyncpa %s3320, 1

</llo_original>
